<compile_context>
chip_gen: v7x
topology: tpu7x:2x2x1
jax: 0.10.0
libtpu: 0.0.40
codegen_flags: <defaults>
</compile_context>

<pallas_src>
import functools
import math

import numpy as np
import jax
import jax.numpy as jnp
from jax import lax
from jax.experimental import pallas as pl
from jax.experimental.pallas import tpu as pltpu


# ------------------------------ small helpers -------------------------------

def _pick_tile(dim, cap, align):
    """Largest tile <= cap that divides dim (multiple of `align`), else full dim.

    Caps keep double-buffered blocks well inside scoped VMEM (32 MiB default)."""
    if dim <= cap:
        return dim
    t = (cap // align) * align
    while t >= align:
        if dim % t == 0:
            return t
        t -= align
    return dim


def _chunk(L, cap):
    if L <= cap:
        return L
    for c in range(cap, 0, -1):
        if L % c == 0:
            return c
    return L


def _silu(x):
    return x * jax.nn.sigmoid(x)


def _layernorm(x, g, b, eps=1e-5):
    mean = jnp.mean(x, axis=-1, keepdims=True)
    cent = x - mean
    var = jnp.mean(cent * cent, axis=-1, keepdims=True)
    return (cent * lax.rsqrt(var + eps)) * g + b


# ------------------------------ Pallas kernels ------------------------------

def _matmul_bias_kernel(x_ref, w_ref, b_ref, o_ref, acc_ref):
    # Tiled (M, N, K) matmul with f32 accumulator; bf16 MXU operands.
    @pl.when(pl.program_id(2) == 0)
    def _():
        acc_ref[...] = jnp.zeros_like(acc_ref)

    acc_ref[...] += jnp.dot(x_ref[...].astype(jnp.bfloat16), w_ref[...],
                            preferred_element_type=jnp.float32)

    @pl.when(pl.program_id(2) == pl.num_programs(2) - 1)
    def _():
        o_ref[...] = acc_ref[...] + b_ref[...]


def _ln_inproj_kernel(*refs, has_res):
    # fused (residual-add +) LayerNorm1 + in_proj, split into xc / z outputs.
    if has_res:
        (x_ref, r_ref, g_ref, b_ref, wx_ref, wz_ref,
         xc_ref, z_ref, res_ref) = refs
    else:
        (x_ref, g_ref, b_ref, wx_ref, wz_ref,
         xc_ref, z_ref, res_ref) = refs

    res = x_ref[...]
    if has_res:
        res = res + r_ref[...]
    normed = _layernorm(res, g_ref[...], b_ref[...]).astype(jnp.bfloat16)
    xc_ref[...] = jnp.dot(normed, wx_ref[...], preferred_element_type=jnp.float32)
    z_ref[...] = jnp.dot(normed, wz_ref[...], preferred_element_type=jnp.float32)
    res_ref[...] = res


def _conv_silu_kernel(x_ref, w_ref, b_ref, o_ref):
    # Causal depthwise conv1d + SiLU; causal padding handled in-kernel.
    # TODO(synk): for very long L, tile the sequence with a (d_conv-1) halo.
    x = x_ref[...]                                   # (L, C)
    L, C = x.shape
    d_conv = w_ref.shape[0]
    acc = b_ref[...] + x * w_ref[d_conv - 1:d_conv, :]
    for k in range(d_conv - 1):                      # d_conv is tiny & static
        shift = d_conv - 1 - k
        xs = jnp.concatenate(
            [jnp.zeros((shift, C), x.dtype), x[:L - shift, :]], axis=0)
        acc = acc + xs * w_ref[k:k + 1, :]
    o_ref[...] = _silu(acc)


def _xproj_dt_kernel(x_ref, wdt_in_ref, wb_ref, wc_ref, wdt_ref, bdt_ref,
                     dl_ref, bm_ref, cm_ref):
    # fused x_proj (dt/B/C heads emitted separately) + dt_proj.
    xb = x_ref[...].astype(jnp.bfloat16)
    dt_low = jnp.dot(xb, wdt_in_ref[...], preferred_element_type=jnp.float32)
    dl_ref[...] = jnp.dot(dt_low, wdt_ref[...],
                          preferred_element_type=jnp.float32) + bdt_ref[...]
    bm_ref[...] = jnp.dot(xb, wb_ref[...], preferred_element_type=jnp.float32)
    cm_ref[...] = jnp.dot(xb, wc_ref[...], preferred_element_type=jnp.float32)


def _scan_kernel(u_ref, dl_ref, bm_ref, cm_ref, z_ref, At_ref, D_ref, y_ref,
                 dA_s, dBuh_s, h_carry, *, unroll):
    # Selective scan over one (batch, L-chunk) block; SSM state carried in
    # h_carry across the "arbitrary" chunk grid axis.  dBuh_s is written with
    # dB*u in the prologue and overwritten in-place with the h-history during
    # the recurrence (saves one (Lc, S, I) scratch buffer).
    @pl.when(pl.program_id(1) == 0)
    def _():
        h_carry[...] = jnp.zeros_like(h_carry)

    u = u_ref[...]                                   # (Lc, d_inner)
    z = z_ref[...]
    dl = dl_ref[...]
    Bc = bm_ref[...]                                 # (Lc, d_state)
    Cc = cm_ref[...]
    At = At_ref[...]                                 # (d_state, d_inner)

    # softplus(dt), numerically stable, f32.
    delta = jnp.maximum(dl, 0.0) + jnp.log(1.0 + jnp.exp(-jnp.abs(dl)))
    du = delta * u
    # Hoist transcendentals / outer products out of the serial recurrence.
    dA_s[...] = jnp.exp(delta[:, None, :] * At[None, :, :])    # (Lc, S, I)
    dBuh_s[...] = Bc[:, :, None] * du[:, None, :]               # (Lc, S, I)

    def body(t, h):
        h = dA_s[t] * h + dBuh_s[t]
        dBuh_s[t] = h                               # reuse buffer as h-history
        return h

    Lc = u.shape[0]
    h_carry[...] = lax.fori_loop(0, Lc, body, h_carry[...], unroll=unroll)

    # y_t = sum_s h_t[s, :] * C_t[s]  -- vectorised over the whole chunk,
    # stored as one lane-dense chunk-sized block.
    y = jnp.sum(dBuh_s[...] * Cc[:, :, None], axis=1)           # (Lc, d_inner)
    y = y + D_ref[...] * u
    y_ref[...] = y * _silu(z)


def _outproj_addln_kernel(y_ref, r_ref, w_ref, g_ref, b_ref, h_ref, res_ref):
    # fused out_proj + residual add + LayerNorm2.
    proj = jnp.dot(y_ref[...].astype(jnp.bfloat16), w_ref[...],
                   preferred_element_type=jnp.float32)
    res = proj + r_ref[...]
    h_ref[...] = _layernorm(res, g_ref[...], b_ref[...])
    res_ref[...] = res


def _gated_mlp_kernel(x_ref, wv_ref, wg_ref, w2_ref, o_ref):
    # GatedMLP: fc2( value * silu(gate) ); fc1 pre-split into value/gate halves.
    xb = x_ref[...].astype(jnp.bfloat16)
    v = jnp.dot(xb, wv_ref[...], preferred_element_type=jnp.float32)
    g = jnp.dot(xb, wg_ref[...], preferred_element_type=jnp.float32)
    gated = (v * _silu(g)).astype(jnp.bfloat16)
    o_ref[...] = jnp.dot(gated, w2_ref[...], preferred_element_type=jnp.float32)


# -------------------------------- wrappers ----------------------------------

def linear(x, w_kn, b):
    """x: (..., K) f32; w_kn: (K, N) bf16 pre-transposed; b: (N,) f32."""
    *lead, K = x.shape
    N = w_kn.shape[1]
    M = int(np.prod(lead)) if lead else 1
    tm = _pick_tile(M, 256, 8)
    tn = _pick_tile(N, 256, 128)
    tk = _pick_tile(K, 512, 128)
    out = pl.pallas_call(
        _matmul_bias_kernel,
        out_shape=jax.ShapeDtypeStruct((M, N), jnp.float32),
        grid=(M // tm, N // tn, K // tk),
        in_specs=[pl.BlockSpec((tm, tk), lambda i, j, k: (i, k)),
                  pl.BlockSpec((tk, tn), lambda i, j, k: (k, j)),
                  pl.BlockSpec((1, tn), lambda i, j, k: (0, j))],
        out_specs=pl.BlockSpec((tm, tn), lambda i, j, k: (i, j)),
        scratch_shapes=[pltpu.VMEM((tm, tn), jnp.float32)],
        compiler_params=pltpu.CompilerParams(
            dimension_semantics=("parallel", "parallel", "arbitrary")),
    )(x.reshape(M, K), w_kn, b.reshape(1, N))
    return out.reshape(*lead, N)


def ln_inproj(x, residual, g, b, wx, wz):
    B, L, D = x.shape
    d_inner = wx.shape[1]
    M = B * L
    tm = _pick_tile(M, 512, 8)
    has_res = residual is not None

    inputs = [x.reshape(M, D)]
    in_specs = [pl.BlockSpec((tm, D), lambda i: (i, 0))]
    if has_res:
        inputs.append(residual.reshape(M, D))
        in_specs.append(pl.BlockSpec((tm, D), lambda i: (i, 0)))
    inputs += [g.reshape(1, D), b.reshape(1, D), wx, wz]
    in_specs += [pl.BlockSpec((1, D), lambda i: (0, 0)),
                 pl.BlockSpec((1, D), lambda i: (0, 0)),
                 pl.BlockSpec((D, d_inner), lambda i: (0, 0)),
                 pl.BlockSpec((D, d_inner), lambda i: (0, 0))]

    xc, z, res = pl.pallas_call(
        functools.partial(_ln_inproj_kernel, has_res=has_res),
        out_shape=(jax.ShapeDtypeStruct((M, d_inner), jnp.float32),
                   jax.ShapeDtypeStruct((M, d_inner), jnp.float32),
                   jax.ShapeDtypeStruct((M, D), jnp.float32)),
        grid=(M // tm,),
        in_specs=in_specs,
        out_specs=(pl.BlockSpec((tm, d_inner), lambda i: (i, 0)),
                   pl.BlockSpec((tm, d_inner), lambda i: (i, 0)),
                   pl.BlockSpec((tm, D), lambda i: (i, 0))),
        compiler_params=pltpu.CompilerParams(dimension_semantics=("parallel",)),
    )(*inputs)
    return (xc.reshape(B, L, d_inner), z.reshape(B, L, d_inner),
            res.reshape(B, L, D))


def conv1d_silu(x, w, b):
    B, L, C = x.shape
    d_conv = w.shape[0]
    return pl.pallas_call(
        _conv_silu_kernel,
        out_shape=jax.ShapeDtypeStruct((B, L, C), jnp.float32),
        grid=(B,),
        in_specs=[pl.BlockSpec((None, L, C), lambda i: (i, 0, 0)),
                  pl.BlockSpec((d_conv, C), lambda i: (0, 0)),
                  pl.BlockSpec((1, C), lambda i: (0, 0))],
        out_specs=pl.BlockSpec((None, L, C), lambda i: (i, 0, 0)),
        compiler_params=pltpu.CompilerParams(dimension_semantics=("parallel",)),
    )(x, w, b.reshape(1, C))


def xproj_dtproj(x, p):
    B, L, d_inner = x.shape
    dt_rank = p["x_proj_wdt"].shape[1]
    d_state = p["x_proj_wb"].shape[1]
    M = B * L
    tm = _pick_tile(M, 512, 8)
    dl, Bm, Cm = pl.pallas_call(
        _xproj_dt_kernel,
        out_shape=(jax.ShapeDtypeStruct((M, d_inner), jnp.float32),
                   jax.ShapeDtypeStruct((M, d_state), jnp.float32),
                   jax.ShapeDtypeStruct((M, d_state), jnp.float32)),
        grid=(M // tm,),
        in_specs=[pl.BlockSpec((tm, d_inner), lambda i: (i, 0)),
                  pl.BlockSpec((d_inner, dt_rank), lambda i: (0, 0)),
                  pl.BlockSpec((d_inner, d_state), lambda i: (0, 0)),
                  pl.BlockSpec((d_inner, d_state), lambda i: (0, 0)),
                  pl.BlockSpec((dt_rank, d_inner), lambda i: (0, 0)),
                  pl.BlockSpec((1, d_inner), lambda i: (0, 0))],
        out_specs=(pl.BlockSpec((tm, d_inner), lambda i: (i, 0)),
                   pl.BlockSpec((tm, d_state), lambda i: (i, 0)),
                   pl.BlockSpec((tm, d_state), lambda i: (i, 0))),
        compiler_params=pltpu.CompilerParams(dimension_semantics=("parallel",)),
    )(x.reshape(M, d_inner), p["x_proj_wdt"], p["x_proj_wb"], p["x_proj_wc"],
      p["dt_proj_w"], p["dt_proj_b"].reshape(1, d_inner))
    return (dl.reshape(B, L, d_inner), Bm.reshape(B, L, d_state),
            Cm.reshape(B, L, d_state))


def selective_scan(u, dl, Bm, Cm, z, At, Dvec):
    B, L, d_inner = u.shape
    d_state = Bm.shape[-1]
    Lc = _chunk(L, 32)                         # bound VMEM independent of L
    n_chunks = L // Lc
    seq_spec = pl.BlockSpec((None, Lc, d_inner), lambda bi, ci: (bi, ci, 0))
    bc_spec = pl.BlockSpec((None, Lc, d_state), lambda bi, ci: (bi, ci, 0))
    return pl.pallas_call(
        functools.partial(_scan_kernel, unroll=min(Lc, 8)),
        out_shape=jax.ShapeDtypeStruct((B, L, d_inner), jnp.float32),
        grid=(B, n_chunks),
        in_specs=[seq_spec, seq_spec, bc_spec, bc_spec, seq_spec,
                  pl.BlockSpec((d_state, d_inner), lambda bi, ci: (0, 0)),
                  pl.BlockSpec((1, d_inner), lambda bi, ci: (0, 0))],
        out_specs=pl.BlockSpec((None, Lc, d_inner), lambda bi, ci: (bi, ci, 0)),
        scratch_shapes=[pltpu.VMEM((Lc, d_state, d_inner), jnp.float32),  # dA
                        pltpu.VMEM((Lc, d_state, d_inner), jnp.float32),  # dBu/h
                        pltpu.VMEM((d_state, d_inner), jnp.float32)],     # carry
        compiler_params=pltpu.CompilerParams(
            dimension_semantics=("parallel", "arbitrary")),
    )(u, dl, Bm, Cm, z, At, Dvec.reshape(1, d_inner))


def outproj_addln(y, residual, w_out, g, b):
    B, L, d_inner = y.shape
    D = w_out.shape[1]
    M = B * L
    tm = _pick_tile(M, 512, 8)
    h, res = pl.pallas_call(
        _outproj_addln_kernel,
        out_shape=(jax.ShapeDtypeStruct((M, D), jnp.float32),
                   jax.ShapeDtypeStruct((M, D), jnp.float32)),
        grid=(M // tm,),
        in_specs=[pl.BlockSpec((tm, d_inner), lambda i: (i, 0)),
                  pl.BlockSpec((tm, D), lambda i: (i, 0)),
                  pl.BlockSpec((d_inner, D), lambda i: (0, 0)),
                  pl.BlockSpec((1, D), lambda i: (0, 0)),
                  pl.BlockSpec((1, D), lambda i: (0, 0))],
        out_specs=(pl.BlockSpec((tm, D), lambda i: (i, 0)),
                   pl.BlockSpec((tm, D), lambda i: (i, 0))),
        compiler_params=pltpu.CompilerParams(dimension_semantics=("parallel",)),
    )(y.reshape(M, d_inner), residual.reshape(M, D), w_out,
      g.reshape(1, D), b.reshape(1, D))
    return h.reshape(B, L, D), res.reshape(B, L, D)


def gated_mlp(x, wv, wg, w2):
    B, L, D = x.shape
    H = wv.shape[1]
    M = B * L
    tm = _pick_tile(M, 512, 8)
    out = pl.pallas_call(
        _gated_mlp_kernel,
        out_shape=jax.ShapeDtypeStruct((M, D), jnp.float32),
        grid=(M // tm,),
        in_specs=[pl.BlockSpec((tm, D), lambda i: (i, 0)),
                  pl.BlockSpec((D, H), lambda i: (0, 0)),
                  pl.BlockSpec((D, H), lambda i: (0, 0)),
                  pl.BlockSpec((H, D), lambda i: (0, 0))],
        out_specs=pl.BlockSpec((tm, D), lambda i: (i, 0)),
        compiler_params=pltpu.CompilerParams(dimension_semantics=("parallel",)),
    )(x.reshape(M, D), wv, wg, w2)
    return out.reshape(B, L, D)


# ------------------------------- model pieces --------------------------------

def mamba_block(x, residual, p, *, last=False):
    m = p["mixer"]
    # fused add + LayerNorm1 + in_proj (xc, z emitted separately)
    xc, z, residual = ln_inproj(x, residual, p["norm1_w"], p["norm1_b"],
                                m["in_proj_wx"], m["in_proj_wz"])
    xconv = conv1d_silu(xc, m["conv_w"], m["conv_b"])
    dl, Bm, Cm = xproj_dtproj(xconv, m)
    y = selective_scan(xconv, dl, Bm, Cm, z, m["At"], m["D"])
    if last:
        # Only the final timestep feeds the prediction head.
        y = y[:, -1:, :]
        residual = residual[:, -1:, :]
    h2, residual = outproj_addln(y, residual, m["out_proj_w"],
                                 p["norm2_w"], p["norm2_b"])
    x = gated_mlp(h2, p["fc1_wv"], p["fc1_wg"], p["fc2_w"])
    return x, residual


def forward(params, x):
    # x: (B, L, input_dim) -> prediction (B, output_dim)
    x = linear(x, params["emb_w"], params["emb_b"])          # input_embedding
    # nn.Dropout -> identity at inference; self.norm is unused in forward.
    residual = None
    n = len(params["blocks"])
    for i, p in enumerate(params["blocks"]):
        x, residual = mamba_block(x, residual, p, last=(i == n - 1))
    hidden = x[:, -1, :]                                     # last timestep
    return linear(hidden, params["pred_w"], params["pred_b"])  # pred_head


# ------------------------------ parameter init -------------------------------

def init_params(key, *, input_dim, d_model, d_state, d_conv, expand, n_layers,
                output_dim):
    """Weights are created directly in compute-ready layout:
    matmul weights (K, N) bf16 (pre-transposed / pre-split), element-wise
    parameters (LN, conv, dt bias, A, D) in f32."""
    d_inner = expand * d_model
    dt_rank = math.ceil(d_model / 16)
    h_mlp = ((int(8 * d_model / 3) + 127) // 128) * 128      # GatedMLP hidden
    keys = iter(jax.random.split(key, 4 + 12 * n_layers))

    def w(shape, fan_in, dtype=jnp.bfloat16):
        v = (jax.random.normal(next(keys), shape, jnp.float32)
             / jnp.sqrt(jnp.float32(fan_in)))
        return v.astype(dtype)

    params = {
        "emb_w": w((input_dim, d_model), input_dim),
        "emb_b": jnp.zeros((d_model,), jnp.float32),
        "pred_w": w((d_model, output_dim), d_model),
        "pred_b": jnp.zeros((output_dim,), jnp.float32),
        "blocks": [],
    }
    # Mamba default: A_log[c, s] = log(s+1), A = -exp(A_log); stored transposed.
    At = -jnp.tile(jnp.arange(1, d_state + 1, dtype=jnp.float32)[:, None],
                   (1, d_inner))
    for _ in range(n_layers):
        params["blocks"].append({
            "norm1_w": jnp.ones((d_model,), jnp.float32),
            "norm1_b": jnp.zeros((d_model,), jnp.float32),
            "norm2_w": jnp.ones((d_model,), jnp.float32),
            "norm2_b": jnp.zeros((d_model,), jnp.float32),
            "fc1_wv": w((d_model, h_mlp), d_model),          # value half of fc1
            "fc1_wg": w((d_model, h_mlp), d_model),          # gate half of fc1
            "fc2_w": w((h_mlp, d_model), h_mlp),
            "mixer": {
                "in_proj_wx": w((d_model, d_inner), d_model),
                "in_proj_wz": w((d_model, d_inner), d_model),
                "conv_w": w((d_conv, d_inner), d_conv, jnp.float32),
                "conv_b": jnp.zeros((d_inner,), jnp.float32),
                "x_proj_wdt": w((d_inner, dt_rank), d_inner),
                "x_proj_wb": w((d_inner, d_state), d_inner),
                "x_proj_wc": w((d_inner, d_state), d_inner),
                "dt_proj_w": w((dt_rank, d_inner), dt_rank, jnp.float32),
                "dt_proj_b": jnp.full((d_inner,), -2.0, jnp.float32),
                "out_proj_w": w((d_inner, d_model), d_inner),
                "At": At,
                "D": jnp.ones((d_inner,), jnp.float32),
            },
        })
    return params


# ----------------------------------- main ------------------------------------

if __name__ == "__main__":
    B, L = 2, 8
    input_dim, d_model, d_state = 4, 32, 16
    d_conv, expand, n_layers, output_dim = 4, 2, 2, 1

    key = jax.random.PRNGKey(0)
    pkey, xkey = jax.random.split(key)
    params = init_params(pkey, input_dim=input_dim, d_model=d_model,
                         d_state=d_state, d_conv=d_conv, expand=expand,
                         n_layers=n_layers, output_dim=output_dim)
    x = jax.random.normal(xkey, (B, L, input_dim), jnp.float32)

    pred = jax.jit(forward)(params, x)
    pred = jax.block_until_ready(pred)
    assert pred.shape == (B, output_dim), pred.shape
    assert bool(jnp.all(jnp.isfinite(pred)))
    print("KERNEL_OK")
</pallas_src>

<mosaic_0001>
module attributes {stable_mosaic.version = 11 : i64} {
  func.func @_conv_silu_kernel(%arg0: i32, %arg1: memref<1x8x64xf32, #tpu.memory_space<vmem>>, %arg2: memref<4x64xf32, #tpu.memory_space<vmem>>, %arg3: memref<1x64xf32, #tpu.memory_space<vmem>>, %arg4: memref<1x8x64xf32, #tpu.memory_space<vmem>>) attributes {dimension_semantics = [#tpu.dimension_semantics<parallel>], iteration_bounds = array<i64: 2>, scalar_prefetch = 0 : i64, scratch_operands = 0 : i64, tpu.core_type = #tpu.core_type<tc>, window_params = [{transform_indices = @transform_0, window_bounds = array<i64: 1, 8, 64>}, {pipeline_mode = #tpu.pipeline_mode<synchronous>, transform_indices = @transform_1, window_bounds = array<i64: 4, 64>}, {pipeline_mode = #tpu.pipeline_mode<synchronous>, transform_indices = @transform_2, window_bounds = array<i64: 1, 64>}, {transform_indices = @transform_3, window_bounds = array<i64: 1, 8, 64>}]} {
    %c0 = arith.constant 0 : index
    %c0_0 = arith.constant 0 : index
    %c0_1 = arith.constant 0 : index
    %0 = vector.load %arg1[%c0, %c0_0, %c0_1] : memref<1x8x64xf32, #tpu.memory_space<vmem>>, vector<1x8x64xf32>
    %1 = vector.shape_cast %0 : vector<1x8x64xf32> to vector<8x64xf32>
    %c0_2 = arith.constant 0 : index
    %c0_3 = arith.constant 0 : index
    %2 = vector.load %arg3[%c0_2, %c0_3] : memref<1x64xf32, #tpu.memory_space<vmem>>, vector<1x64xf32>
    %c3 = arith.constant 3 : index
    %c0_4 = arith.constant 0 : index
    %3 = vector.load %arg2[%c3, %c0_4] : memref<4x64xf32, #tpu.memory_space<vmem>>, vector<1x64xf32>
    %4 = vector.broadcast %3 : vector<1x64xf32> to vector<8x64xf32>
    %5 = arith.mulf %1, %4 : vector<8x64xf32>
    %6 = vector.broadcast %2 : vector<1x64xf32> to vector<8x64xf32>
    %7 = arith.addf %6, %5 : vector<8x64xf32>
    %cst = arith.constant 0.000000e+00 : f32
    %8 = vector.broadcast %cst : f32 to vector<3x64xf32>
    %9 = vector.extract_strided_slice %1 {offsets = [0, 0], sizes = [5, 64], strides = [1, 1]} : vector<8x64xf32> to vector<5x64xf32>
    %10 = tpu.concatenate %8, %9 in 0 : vector<3x64xf32>, vector<5x64xf32> -> vector<8x64xf32>
    %c0_5 = arith.constant 0 : index
    %c0_6 = arith.constant 0 : index
    %11 = vector.load %arg2[%c0_5, %c0_6] : memref<4x64xf32, #tpu.memory_space<vmem>>, vector<1x64xf32>
    %12 = vector.broadcast %11 : vector<1x64xf32> to vector<8x64xf32>
    %13 = arith.mulf %10, %12 : vector<8x64xf32>
    %14 = arith.addf %7, %13 : vector<8x64xf32>
    %cst_7 = arith.constant 0.000000e+00 : f32
    %15 = vector.broadcast %cst_7 : f32 to vector<2x64xf32>
    %16 = vector.extract_strided_slice %1 {offsets = [0, 0], sizes = [6, 64], strides = [1, 1]} : vector<8x64xf32> to vector<6x64xf32>
    %17 = tpu.concatenate %15, %16 in 0 : vector<2x64xf32>, vector<6x64xf32> -> vector<8x64xf32>
    %c1 = arith.constant 1 : index
    %c0_8 = arith.constant 0 : index
    %18 = vector.load %arg2[%c1, %c0_8] : memref<4x64xf32, #tpu.memory_space<vmem>>, vector<1x64xf32>
    %19 = vector.broadcast %18 : vector<1x64xf32> to vector<8x64xf32>
    %20 = arith.mulf %17, %19 : vector<8x64xf32>
    %21 = arith.addf %14, %20 : vector<8x64xf32>
    %cst_9 = arith.constant 0.000000e+00 : f32
    %22 = vector.broadcast %cst_9 : f32 to vector<1x64xf32>
    %23 = vector.extract_strided_slice %1 {offsets = [0, 0], sizes = [7, 64], strides = [1, 1]} : vector<8x64xf32> to vector<7x64xf32>
    %24 = tpu.concatenate %22, %23 in 0 : vector<1x64xf32>, vector<7x64xf32> -> vector<8x64xf32>
    %c2 = arith.constant 2 : index
    %c0_10 = arith.constant 0 : index
    %25 = vector.load %arg2[%c2, %c0_10] : memref<4x64xf32, #tpu.memory_space<vmem>>, vector<1x64xf32>
    %26 = vector.broadcast %25 : vector<1x64xf32> to vector<8x64xf32>
    %27 = arith.mulf %24, %26 : vector<8x64xf32>
    %28 = arith.addf %21, %27 : vector<8x64xf32>
    %29 = arith.negf %28 : vector<8x64xf32>
    %30 = math.exp %29 : vector<8x64xf32>
    %cst_11 = arith.constant 1.000000e+00 : f32
    %31 = vector.broadcast %cst_11 : f32 to vector<8x64xf32>
    %32 = arith.addf %31, %30 : vector<8x64xf32>
    %33 = arith.divf %31, %32 : vector<8x64xf32>
    %34 = arith.mulf %28, %33 : vector<8x64xf32>
    %c0_12 = arith.constant 0 : index
    %c0_13 = arith.constant 0 : index
    %c0_14 = arith.constant 0 : index
    %35 = vector.load %arg4[%c0_12, %c0_13, %c0_14] : memref<1x8x64xf32, #tpu.memory_space<vmem>>, vector<1x8x64xf32>
    %36 = vector.shape_cast %35 : vector<1x8x64xf32> to vector<8x64xf32>
    %37 = vector.shape_cast %34 : vector<8x64xf32> to vector<1x8x64xf32>
    tpu.vector_store %arg4[%c0_12, %c0_13, %c0_14], %37 {strides = array<i32>} : memref<1x8x64xf32, #tpu.memory_space<vmem>>, vector<1x8x64xf32>,
    return
  }
  func.func @transform_0(%arg0: i32) -> (i32, i32, i32) {
    %c0_i32 = arith.constant 0 : i32
    %c0_i32_0 = arith.constant 0 : i32
    %c0_i32_1 = arith.constant 0 : i32
    return %arg0, %c0_i32, %c0_i32_0 : i32, i32, i32
  }
  func.func @transform_1(%arg0: i32) -> (i32, i32) {
    %c0_i32 = arith.constant 0 : i32
    %c0_i32_0 = arith.constant 0 : i32
    %c0_i32_1 = arith.constant 0 : i32
    return %c0_i32, %c0_i32_0 : i32, i32
  }
  func.func @transform_2(%arg0: i32) -> (i32, i32) {
    %c0_i32 = arith.constant 0 : i32
    %c0_i32_0 = arith.constant 0 : i32
    %c0_i32_1 = arith.constant 0 : i32
    return %c0_i32, %c0_i32_0 : i32, i32
  }
  func.func @transform_3(%arg0: i32) -> (i32, i32, i32) {
    %c0_i32 = arith.constant 0 : i32
    %c0_i32_0 = arith.constant 0 : i32
    %c0_i32_1 = arith.constant 0 : i32
    return %arg0, %c0_i32, %c0_i32_0 : i32, i32, i32
  }
}

module attributes {stable_mosaic.version = 11 : i64} {
  func.func @_ln_inproj_kernel(%arg0: i32, %arg1: memref<16x32xf32, #tpu.memory_space<vmem>>, %arg2: memref<1x32xf32, #tpu.memory_space<vmem>>, %arg3: memref<1x32xf32, #tpu.memory_space<vmem>>, %arg4: memref<32x64xbf16, #tpu.memory_space<vmem>>, %arg5: memref<32x64xbf16, #tpu.memory_space<vmem>>, %arg6: memref<16x64xf32, #tpu.memory_space<vmem>>, %arg7: memref<16x64xf32, #tpu.memory_space<vmem>>, %arg8: memref<16x32xf32, #tpu.memory_space<vmem>>) attributes {dimension_semantics = [#tpu.dimension_semantics<parallel>], iteration_bounds = array<i64: 1>, scalar_prefetch = 0 : i64, scratch_operands = 0 : i64, tpu.core_type = #tpu.core_type<tc>, window_params = [{transform_indices = @transform_0, window_bounds = array<i64: 16, 32>}, {pipeline_mode = #tpu.pipeline_mode<synchronous>, transform_indices = @transform_1, window_bounds = array<i64: 1, 32>}, {pipeline_mode = #tpu.pipeline_mode<synchronous>, transform_indices = @transform_2, window_bounds = array<i64: 1, 32>}, {pipeline_mode = #tpu.pipeline_mode<synchronous>, transform_indices = @transform_3, window_bounds = array<i64: 32, 64>}, {pipeline_mode = #tpu.pipeline_mode<synchronous>, transform_indices = @transform_4, window_bounds = array<i64: 32, 64>}, {transform_indices = @transform_5, window_bounds = array<i64: 16, 64>}, {transform_indices = @transform_6, window_bounds = array<i64: 16, 64>}, {transform_indices = @transform_7, window_bounds = array<i64: 16, 32>}]} {
    %c0 = arith.constant 0 : index
    %c0_0 = arith.constant 0 : index
    %0 = vector.load %arg1[%c0, %c0_0] : memref<16x32xf32, #tpu.memory_space<vmem>>, vector<16x32xf32>
    %c0_1 = arith.constant 0 : index
    %c0_2 = arith.constant 0 : index
    %1 = vector.load %arg2[%c0_1, %c0_2] : memref<1x32xf32, #tpu.memory_space<vmem>>, vector<1x32xf32>
    %c0_3 = arith.constant 0 : index
    %c0_4 = arith.constant 0 : index
    %2 = vector.load %arg3[%c0_3, %c0_4] : memref<1x32xf32, #tpu.memory_space<vmem>>, vector<1x32xf32>
    %cst = arith.constant dense<0.000000e+00> : vector<16xf32>
    %3 = vector.multi_reduction <add>, %0, %cst [1] : vector<16x32xf32> to vector<16xf32>
    %4 = vector.shape_cast %3 : vector<16xf32> to vector<16x1xf32>
    %cst_5 = arith.constant 3.200000e+01 : f32
    %5 = vector.broadcast %cst_5 : f32 to vector<16x1xf32>
    %6 = arith.divf %4, %5 : vector<16x1xf32>
    %7 = vector.broadcast %6 : vector<16x1xf32> to vector<16x32xf32>
    %8 = arith.subf %0, %7 : vector<16x32xf32>
    %9 = arith.mulf %8, %8 : vector<16x32xf32>
    %cst_6 = arith.constant dense<0.000000e+00> : vector<16xf32>
    %10 = vector.multi_reduction <add>, %9, %cst_6 [1] : vector<16x32xf32> to vector<16xf32>
    %11 = vector.shape_cast %10 : vector<16xf32> to vector<16x1xf32>
    %cst_7 = arith.constant 3.200000e+01 : f32
    %12 = vector.broadcast %cst_7 : f32 to vector<16x1xf32>
    %13 = arith.divf %11, %12 : vector<16x1xf32>
    %cst_8 = arith.constant 9.99999974E-6 : f32
    %14 = vector.broadcast %cst_8 : f32 to vector<16x1xf32>
    %15 = arith.addf %13, %14 : vector<16x1xf32>
    %16 = math.rsqrt %15 : vector<16x1xf32>
    %17 = vector.broadcast %16 : vector<16x1xf32> to vector<16x32xf32>
    %18 = arith.mulf %8, %17 : vector<16x32xf32>
    %19 = vector.broadcast %1 : vector<1x32xf32> to vector<16x32xf32>
    %20 = arith.mulf %18, %19 : vector<16x32xf32>
    %21 = vector.broadcast %2 : vector<1x32xf32> to vector<16x32xf32>
    %22 = arith.addf %20, %21 : vector<16x32xf32>
    %23 = arith.truncf %22 : vector<16x32xf32> to vector<16x32xbf16>
    %c0_9 = arith.constant 0 : index
    %c0_10 = arith.constant 0 : index
    %24 = vector.load %arg4[%c0_9, %c0_10] : memref<32x64xbf16, #tpu.memory_space<vmem>>, vector<32x64xbf16>
    %cst_11 = arith.constant dense<0.000000e+00> : vector<16x64xf32>
    %25 = tpu.matmul %23, %24, %cst_11 {dimension_numbers = #tpu.dot_dimension_numbers<[1], [0], [0], [1], [0, 0, 1, 1], [], []>} : vector<16x32xbf16>, vector<32x64xbf16>, vector<16x64xf32> -> vector<16x64xf32>
    %c0_12 = arith.constant 0 : index
    %c0_13 = arith.constant 0 : index
    %26 = vector.load %arg6[%c0_12, %c0_13] : memref<16x64xf32, #tpu.memory_space<vmem>>, vector<16x64xf32>
    tpu.vector_store %arg6[%c0_12, %c0_13], %25 {strides = array<i32>} : memref<16x64xf32, #tpu.memory_space<vmem>>, vector<16x64xf32>,
    %c0_14 = arith.constant 0 : index
    %c0_15 = arith.constant 0 : index
    %27 = vector.load %arg5[%c0_14, %c0_15] : memref<32x64xbf16, #tpu.memory_space<vmem>>, vector<32x64xbf16>
    %cst_16 = arith.constant dense<0.000000e+00> : vector<16x64xf32>
    %28 = tpu.matmul %23, %27, %cst_16 {dimension_numbers = #tpu.dot_dimension_numbers<[1], [0], [0], [1], [0, 0, 1, 1], [], []>} : vector<16x32xbf16>, vector<32x64xbf16>, vector<16x64xf32> -> vector<16x64xf32>
    %c0_17 = arith.constant 0 : index
    %c0_18 = arith.constant 0 : index
    %29 = vector.load %arg7[%c0_17, %c0_18] : memref<16x64xf32, #tpu.memory_space<vmem>>, vector<16x64xf32>
    tpu.vector_store %arg7[%c0_17, %c0_18], %28 {strides = array<i32>} : memref<16x64xf32, #tpu.memory_space<vmem>>, vector<16x64xf32>,
    %c0_19 = arith.constant 0 : index
    %c0_20 = arith.constant 0 : index
    %30 = vector.load %arg8[%c0_19, %c0_20] : memref<16x32xf32, #tpu.memory_space<vmem>>, vector<16x32xf32>
    tpu.vector_store %arg8[%c0_19, %c0_20], %0 {strides = array<i32>} : memref<16x32xf32, #tpu.memory_space<vmem>>, vector<16x32xf32>,
    return
  }
  func.func @transform_0(%arg0: i32) -> (i32, i32) {
    %c0_i32 = arith.constant 0 : i32
    %c0_i32_0 = arith.constant 0 : i32
    return %arg0, %c0_i32 : i32, i32
  }
  func.func @transform_1(%arg0: i32) -> (i32, i32) {
    %c0_i32 = arith.constant 0 : i32
    %c0_i32_0 = arith.constant 0 : i32
    %c0_i32_1 = arith.constant 0 : i32
    return %c0_i32, %c0_i32_0 : i32, i32
  }
  func.func @transform_2(%arg0: i32) -> (i32, i32) {
    %c0_i32 = arith.constant 0 : i32
    %c0_i32_0 = arith.constant 0 : i32
    %c0_i32_1 = arith.constant 0 : i32
    return %c0_i32, %c0_i32_0 : i32, i32
  }
  func.func @transform_3(%arg0: i32) -> (i32, i32) {
    %c0_i32 = arith.constant 0 : i32
    %c0_i32_0 = arith.constant 0 : i32
    %c0_i32_1 = arith.constant 0 : i32
    return %c0_i32, %c0_i32_0 : i32, i32
  }
  func.func @transform_4(%arg0: i32) -> (i32, i32) {
    %c0_i32 = arith.constant 0 : i32
    %c0_i32_0 = arith.constant 0 : i32
    %c0_i32_1 = arith.constant 0 : i32
    return %c0_i32, %c0_i32_0 : i32, i32
  }
  func.func @transform_5(%arg0: i32) -> (i32, i32) {
    %c0_i32 = arith.constant 0 : i32
    %c0_i32_0 = arith.constant 0 : i32
    return %arg0, %c0_i32 : i32, i32
  }
  func.func @transform_6(%arg0: i32) -> (i32, i32) {
    %c0_i32 = arith.constant 0 : i32
    %c0_i32_0 = arith.constant 0 : i32
    return %arg0, %c0_i32 : i32, i32
  }
  func.func @transform_7(%arg0: i32) -> (i32, i32) {
    %c0_i32 = arith.constant 0 : i32
    %c0_i32_0 = arith.constant 0 : i32
    return %arg0, %c0_i32 : i32, i32
  }
}

module attributes {stable_mosaic.version = 11 : i64} {
  func.func @_matmul_bias_kernel(%arg0: i32, %arg1: i32, %arg2: i32, %arg3: memref<16x4xf32, #tpu.memory_space<vmem>>, %arg4: memref<4x32xbf16, #tpu.memory_space<vmem>>, %arg5: memref<1x32xf32, #tpu.memory_space<vmem>>, %arg6: memref<16x32xf32, #tpu.memory_space<vmem>>, %arg7: memref<16x32xf32, #tpu.memory_space<vmem>>) attributes {dimension_semantics = [#tpu.dimension_semantics<parallel>, #tpu.dimension_semantics<parallel>, #tpu.dimension_semantics<arbitrary>], iteration_bounds = array<i64: 1, 1, 1>, scalar_prefetch = 0 : i64, scratch_operands = 1 : i64, tpu.core_type = #tpu.core_type<tc>, window_params = [{transform_indices = @transform_0, window_bounds = array<i64: 16, 4>}, {transform_indices = @transform_1, window_bounds = array<i64: 4, 32>}, {transform_indices = @transform_2, window_bounds = array<i64: 1, 32>}, {transform_indices = @transform_3, window_bounds = array<i64: 16, 32>}]} {
    %c0_i32 = arith.constant 0 : i32
    %0 = arith.cmpi eq, %arg2, %c0_i32 : i32
    %1 = arith.extui %0 : i1 to i32
    %c0_i32_0 = arith.constant 0 : i32
    %2 = arith.cmpi ne, %1, %c0_i32_0 : i32
    scf.if %2 {
      %cst_10 = arith.constant 0.000000e+00 : f32
      %13 = vector.broadcast %cst_10 : f32 to vector<16x32xf32>
      %c0_11 = arith.constant 0 : index
      %c0_12 = arith.constant 0 : index
      %14 = vector.load %arg7[%c0_11, %c0_12] : memref<16x32xf32, #tpu.memory_space<vmem>>, vector<16x32xf32>
      tpu.vector_store %arg7[%c0_11, %c0_12], %13 {strides = array<i32>} : memref<16x32xf32, #tpu.memory_space<vmem>>, vector<16x32xf32>,
    } else {
    }
    %c0 = arith.constant 0 : index
    %c0_1 = arith.constant 0 : index
    %3 = vector.load %arg7[%c0, %c0_1] : memref<16x32xf32, #tpu.memory_space<vmem>>, vector<16x32xf32>
    %c0_2 = arith.constant 0 : index
    %c0_3 = arith.constant 0 : index
    %4 = vector.load %arg3[%c0_2, %c0_3] : memref<16x4xf32, #tpu.memory_space<vmem>>, vector<16x4xf32>
    %5 = arith.truncf %4 : vector<16x4xf32> to vector<16x4xbf16>
    %c0_4 = arith.constant 0 : index
    %c0_5 = arith.constant 0 : index
    %6 = vector.load %arg4[%c0_4, %c0_5] : memref<4x32xbf16, #tpu.memory_space<vmem>>, vector<4x32xbf16>
    %cst = arith.constant dense<0.000000e+00> : vector<16x32xf32>
    %7 = tpu.matmul %5, %6, %cst {dimension_numbers = #tpu.dot_dimension_numbers<[1], [0], [0], [1], [0, 0, 1, 1], [], []>} : vector<16x4xbf16>, vector<4x32xbf16>, vector<16x32xf32> -> vector<16x32xf32>
    %8 = arith.addf %3, %7 : vector<16x32xf32>
    %c0_6 = arith.constant 0 : index
    %c0_7 = arith.constant 0 : index
    %9 = vector.load %arg7[%c0_6, %c0_7] : memref<16x32xf32, #tpu.memory_space<vmem>>, vector<16x32xf32>
    tpu.vector_store %arg7[%c0_6, %c0_7], %8 {strides = array<i32>} : memref<16x32xf32, #tpu.memory_space<vmem>>, vector<16x32xf32>,
    %c0_i32_8 = arith.constant 0 : i32
    %10 = arith.cmpi eq, %arg2, %c0_i32_8 : i32
    %11 = arith.extui %10 : i1 to i32
    %c0_i32_9 = arith.constant 0 : i32
    %12 = arith.cmpi ne, %11, %c0_i32_9 : i32
    scf.if %12 {
      %c0_10 = arith.constant 0 : index
      %c0_11 = arith.constant 0 : index
      %13 = vector.load %arg7[%c0_10, %c0_11] : memref<16x32xf32, #tpu.memory_space<vmem>>, vector<16x32xf32>
      %c0_12 = arith.constant 0 : index
      %c0_13 = arith.constant 0 : index
      %14 = vector.load %arg5[%c0_12, %c0_13] : memref<1x32xf32, #tpu.memory_space<vmem>>, vector<1x32xf32>
      %15 = vector.broadcast %14 : vector<1x32xf32> to vector<16x32xf32>
      %16 = arith.addf %13, %15 : vector<16x32xf32>
      %c0_14 = arith.constant 0 : index
      %c0_15 = arith.constant 0 : index
      %17 = vector.load %arg6[%c0_14, %c0_15] : memref<16x32xf32, #tpu.memory_space<vmem>>, vector<16x32xf32>
      tpu.vector_store %arg6[%c0_14, %c0_15], %16 {strides = array<i32>} : memref<16x32xf32, #tpu.memory_space<vmem>>, vector<16x32xf32>,
    } else {
    }
    return
  }
  func.func @transform_0(%arg0: i32, %arg1: i32, %arg2: i32) -> (i32, i32) {
    %c0_i32 = arith.constant 0 : i32
    return %arg0, %arg2 : i32, i32
  }
  func.func @transform_1(%arg0: i32, %arg1: i32, %arg2: i32) -> (i32, i32) {
    %c0_i32 = arith.constant 0 : i32
    return %arg2, %arg1 : i32, i32
  }
  func.func @transform_2(%arg0: i32, %arg1: i32, %arg2: i32) -> (i32, i32) {
    %c0_i32 = arith.constant 0 : i32
    %c0_i32_0 = arith.constant 0 : i32
    return %c0_i32, %arg1 : i32, i32
  }
  func.func @transform_3(%arg0: i32, %arg1: i32, %arg2: i32) -> (i32, i32) {
    %c0_i32 = arith.constant 0 : i32
    return %arg0, %arg1 : i32, i32
  }
}

module attributes {stable_mosaic.version = 11 : i64} {
  func.func @_scan_kernel(%arg0: i32, %arg1: i32, %arg2: memref<1x8x64xf32, #tpu.memory_space<vmem>>, %arg3: memref<1x8x64xf32, #tpu.memory_space<vmem>>, %arg4: memref<1x8x16xf32, #tpu.memory_space<vmem>>, %arg5: memref<1x8x16xf32, #tpu.memory_space<vmem>>, %arg6: memref<1x8x64xf32, #tpu.memory_space<vmem>>, %arg7: memref<16x64xf32, #tpu.memory_space<vmem>>, %arg8: memref<1x64xf32, #tpu.memory_space<vmem>>, %arg9: memref<1x8x64xf32, #tpu.memory_space<vmem>>, %arg10: memref<8x16x64xf32, #tpu.memory_space<vmem>>, %arg11: memref<8x16x64xf32, #tpu.memory_space<vmem>>, %arg12: memref<16x64xf32, #tpu.memory_space<vmem>>) attributes {dimension_semantics = [#tpu.dimension_semantics<parallel>, #tpu.dimension_semantics<arbitrary>], iteration_bounds = array<i64: 2, 1>, scalar_prefetch = 0 : i64, scratch_operands = 3 : i64, tpu.core_type = #tpu.core_type<tc>, window_params = [{transform_indices = @transform_0, window_bounds = array<i64: 1, 8, 64>}, {transform_indices = @transform_1, window_bounds = array<i64: 1, 8, 64>}, {transform_indices = @transform_2, window_bounds = array<i64: 1, 8, 16>}, {transform_indices = @transform_3, window_bounds = array<i64: 1, 8, 16>}, {transform_indices = @transform_4, window_bounds = array<i64: 1, 8, 64>}, {pipeline_mode = #tpu.pipeline_mode<synchronous>, transform_indices = @transform_5, window_bounds = array<i64: 16, 64>}, {pipeline_mode = #tpu.pipeline_mode<synchronous>, transform_indices = @transform_6, window_bounds = array<i64: 1, 64>}, {transform_indices = @transform_7, window_bounds = array<i64: 1, 8, 64>}]} {
    %c0_i32 = arith.constant 0 : i32
    %0 = arith.cmpi eq, %arg1, %c0_i32 : i32
    %1 = arith.extui %0 : i1 to i32
    %c0_i32_0 = arith.constant 0 : i32
    %2 = arith.cmpi ne, %1, %c0_i32_0 : i32
    scf.if %2 {
      %cst_88 = arith.constant 0.000000e+00 : f32
      %155 = vector.broadcast %cst_88 : f32 to vector<16x64xf32>
      %c0_89 = arith.constant 0 : index
      %c0_90 = arith.constant 0 : index
      %156 = vector.load %arg12[%c0_89, %c0_90] : memref<16x64xf32, #tpu.memory_space<vmem>>, vector<16x64xf32>
      tpu.vector_store %arg12[%c0_89, %c0_90], %155 {strides = array<i32>} : memref<16x64xf32, #tpu.memory_space<vmem>>, vector<16x64xf32>,
    } else {
    }
    %c0 = arith.constant 0 : index
    %c0_1 = arith.constant 0 : index
    %c0_2 = arith.constant 0 : index
    %3 = vector.load %arg2[%c0, %c0_1, %c0_2] : memref<1x8x64xf32, #tpu.memory_space<vmem>>, vector<1x8x64xf32>
    %4 = vector.shape_cast %3 : vector<1x8x64xf32> to vector<8x64xf32>
    %c0_3 = arith.constant 0 : index
    %c0_4 = arith.constant 0 : index
    %c0_5 = arith.constant 0 : index
    %5 = vector.load %arg6[%c0_3, %c0_4, %c0_5] : memref<1x8x64xf32, #tpu.memory_space<vmem>>, vector<1x8x64xf32>
    %6 = vector.shape_cast %5 : vector<1x8x64xf32> to vector<8x64xf32>
    %c0_6 = arith.constant 0 : index
    %c0_7 = arith.constant 0 : index
    %c0_8 = arith.constant 0 : index
    %7 = vector.load %arg3[%c0_6, %c0_7, %c0_8] : memref<1x8x64xf32, #tpu.memory_space<vmem>>, vector<1x8x64xf32>
    %8 = vector.shape_cast %7 : vector<1x8x64xf32> to vector<8x64xf32>
    %c0_9 = arith.constant 0 : index
    %c0_10 = arith.constant 0 : index
    %c0_11 = arith.constant 0 : index
    %9 = vector.load %arg4[%c0_9, %c0_10, %c0_11] : memref<1x8x16xf32, #tpu.memory_space<vmem>>, vector<1x8x16xf32>
    %10 = vector.shape_cast %9 : vector<1x8x16xf32> to vector<8x16xf32>
    %c0_12 = arith.constant 0 : index
    %c0_13 = arith.constant 0 : index
    %c0_14 = arith.constant 0 : index
    %11 = vector.load %arg5[%c0_12, %c0_13, %c0_14] : memref<1x8x16xf32, #tpu.memory_space<vmem>>, vector<1x8x16xf32>
    %12 = vector.shape_cast %11 : vector<1x8x16xf32> to vector<8x16xf32>
    %c0_15 = arith.constant 0 : index
    %c0_16 = arith.constant 0 : index
    %13 = vector.load %arg7[%c0_15, %c0_16] : memref<16x64xf32, #tpu.memory_space<vmem>>, vector<16x64xf32>
    %cst = arith.constant 0.000000e+00 : f32
    %14 = vector.broadcast %cst : f32 to vector<8x64xf32>
    %15 = arith.maximumf %8, %14 : vector<8x64xf32>
    %16 = math.absf %8 : vector<8x64xf32>
    %cst_17 = arith.constant 0.000000e+00 : f32
    %17 = vector.broadcast %cst_17 : f32 to vector<8x64xf32>
    %18 = arith.subf %17, %16 : vector<8x64xf32>
    %19 = math.exp %18 : vector<8x64xf32>
    %cst_18 = arith.constant 1.000000e+00 : f32
    %20 = vector.broadcast %cst_18 : f32 to vector<8x64xf32>
    %21 = arith.addf %20, %19 : vector<8x64xf32>
    %22 = math.log %21 : vector<8x64xf32>
    %23 = arith.addf %15, %22 : vector<8x64xf32>
    %24 = arith.mulf %23, %4 : vector<8x64xf32>
    %25 = vector.shape_cast %23 : vector<8x64xf32> to vector<8x1x64xf32>
    %26 = vector.shape_cast %13 : vector<16x64xf32> to vector<1x16x64xf32>
    %27 = vector.broadcast %25 : vector<8x1x64xf32> to vector<8x16x64xf32>
    %28 = vector.broadcast %26 : vector<1x16x64xf32> to vector<8x16x64xf32>
    %29 = arith.mulf %27, %28 : vector<8x16x64xf32>
    %30 = math.exp %29 : vector<8x16x64xf32>
    %c0_19 = arith.constant 0 : index
    %c0_20 = arith.constant 0 : index
    %c0_21 = arith.constant 0 : index
    %31 = vector.load %arg10[%c0_19, %c0_20, %c0_21] : memref<8x16x64xf32, #tpu.memory_space<vmem>>, vector<8x16x64xf32>
    tpu.vector_store %arg10[%c0_19, %c0_20, %c0_21], %30 {strides = array<i32>} : memref<8x16x64xf32, #tpu.memory_space<vmem>>, vector<8x16x64xf32>,
    %32 = vector.shape_cast %10 : vector<8x16xf32> to vector<8x16x1xf32>
    %33 = vector.shape_cast %24 : vector<8x64xf32> to vector<8x1x64xf32>
    %34 = vector.broadcast %32 : vector<8x16x1xf32> to vector<8x16x64xf32>
    %35 = vector.broadcast %33 : vector<8x1x64xf32> to vector<8x16x64xf32>
    %36 = arith.mulf %34, %35 : vector<8x16x64xf32>
    %c0_22 = arith.constant 0 : index
    %c0_23 = arith.constant 0 : index
    %c0_24 = arith.constant 0 : index
    %37 = vector.load %arg11[%c0_22, %c0_23, %c0_24] : memref<8x16x64xf32, #tpu.memory_space<vmem>>, vector<8x16x64xf32>
    tpu.vector_store %arg11[%c0_22, %c0_23, %c0_24], %36 {strides = array<i32>} : memref<8x16x64xf32, #tpu.memory_space<vmem>>, vector<8x16x64xf32>,
    %c0_25 = arith.constant 0 : index
    %c0_26 = arith.constant 0 : index
    %38 = vector.load %arg12[%c0_25, %c0_26] : memref<16x64xf32, #tpu.memory_space<vmem>>, vector<16x64xf32>
    %c0_i32_27 = arith.constant 0 : i32
    %39 = arith.index_cast %c0_i32_27 : i32 to index
    %c0_28 = arith.constant 0 : index
    %c0_29 = arith.constant 0 : index
    %40 = vector.load %arg10[%39, %c0_28, %c0_29] : memref<8x16x64xf32, #tpu.memory_space<vmem>>, vector<1x16x64xf32>
    %41 = vector.shape_cast %40 : vector<1x16x64xf32> to vector<16x64xf32>
    %42 = arith.mulf %41, %38 : vector<16x64xf32>
    %43 = arith.index_cast %c0_i32_27 : i32 to index
    %c0_30 = arith.constant 0 : index
    %c0_31 = arith.constant 0 : index
    %44 = vector.load %arg11[%43, %c0_30, %c0_31] : memref<8x16x64xf32, #tpu.memory_space<vmem>>, vector<1x16x64xf32>
    %45 = vector.shape_cast %44 : vector<1x16x64xf32> to vector<16x64xf32>
    %46 = arith.addf %42, %45 : vector<16x64xf32>
    %47 = arith.index_cast %c0_i32_27 : i32 to index
    %c0_32 = arith.constant 0 : index
    %c0_33 = arith.constant 0 : index
    %48 = vector.load %arg11[%47, %c0_32, %c0_33] : memref<8x16x64xf32, #tpu.memory_space<vmem>>, vector<1x16x64xf32>
    %49 = vector.shape_cast %48 : vector<1x16x64xf32> to vector<16x64xf32>
    %50 = vector.shape_cast %46 : vector<16x64xf32> to vector<1x16x64xf32>
    tpu.vector_store %arg11[%47, %c0_32, %c0_33], %50 {strides = array<i32>} : memref<8x16x64xf32, #tpu.memory_space<vmem>>, vector<1x16x64xf32>,
    %c1_i32 = arith.constant 1 : i32
    %51 = arith.index_cast %c1_i32 : i32 to index
    %c0_34 = arith.constant 0 : index
    %c0_35 = arith.constant 0 : index
    %52 = vector.load %arg10[%51, %c0_34, %c0_35] : memref<8x16x64xf32, #tpu.memory_space<vmem>>, vector<1x16x64xf32>
    %53 = vector.shape_cast %52 : vector<1x16x64xf32> to vector<16x64xf32>
    %54 = arith.mulf %53, %46 : vector<16x64xf32>
    %55 = arith.index_cast %c1_i32 : i32 to index
    %c0_36 = arith.constant 0 : index
    %c0_37 = arith.constant 0 : index
    %56 = vector.load %arg11[%55, %c0_36, %c0_37] : memref<8x16x64xf32, #tpu.memory_space<vmem>>, vector<1x16x64xf32>
    %57 = vector.shape_cast %56 : vector<1x16x64xf32> to vector<16x64xf32>
    %58 = arith.addf %54, %57 : vector<16x64xf32>
    %59 = arith.index_cast %c1_i32 : i32 to index
    %c0_38 = arith.constant 0 : index
    %c0_39 = arith.constant 0 : index
    %60 = vector.load %arg11[%59, %c0_38, %c0_39] : memref<8x16x64xf32, #tpu.memory_space<vmem>>, vector<1x16x64xf32>
    %61 = vector.shape_cast %60 : vector<1x16x64xf32> to vector<16x64xf32>
    %62 = vector.shape_cast %58 : vector<16x64xf32> to vector<1x16x64xf32>
    tpu.vector_store %arg11[%59, %c0_38, %c0_39], %62 {strides = array<i32>} : memref<8x16x64xf32, #tpu.memory_space<vmem>>, vector<1x16x64xf32>,
    %c2_i32 = arith.constant 2 : i32
    %63 = arith.index_cast %c2_i32 : i32 to index
    %c0_40 = arith.constant 0 : index
    %c0_41 = arith.constant 0 : index
    %64 = vector.load %arg10[%63, %c0_40, %c0_41] : memref<8x16x64xf32, #tpu.memory_space<vmem>>, vector<1x16x64xf32>
    %65 = vector.shape_cast %64 : vector<1x16x64xf32> to vector<16x64xf32>
    %66 = arith.mulf %65, %58 : vector<16x64xf32>
    %67 = arith.index_cast %c2_i32 : i32 to index
    %c0_42 = arith.constant 0 : index
    %c0_43 = arith.constant 0 : index
    %68 = vector.load %arg11[%67, %c0_42, %c0_43] : memref<8x16x64xf32, #tpu.memory_space<vmem>>, vector<1x16x64xf32>
    %69 = vector.shape_cast %68 : vector<1x16x64xf32> to vector<16x64xf32>
    %70 = arith.addf %66, %69 : vector<16x64xf32>
    %71 = arith.index_cast %c2_i32 : i32 to index
    %c0_44 = arith.constant 0 : index
    %c0_45 = arith.constant 0 : index
    %72 = vector.load %arg11[%71, %c0_44, %c0_45] : memref<8x16x64xf32, #tpu.memory_space<vmem>>, vector<1x16x64xf32>
    %73 = vector.shape_cast %72 : vector<1x16x64xf32> to vector<16x64xf32>
    %74 = vector.shape_cast %70 : vector<16x64xf32> to vector<1x16x64xf32>
    tpu.vector_store %arg11[%71, %c0_44, %c0_45], %74 {strides = array<i32>} : memref<8x16x64xf32, #tpu.memory_space<vmem>>, vector<1x16x64xf32>,
    %c3_i32 = arith.constant 3 : i32
    %75 = arith.index_cast %c3_i32 : i32 to index
    %c0_46 = arith.constant 0 : index
    %c0_47 = arith.constant 0 : index
    %76 = vector.load %arg10[%75, %c0_46, %c0_47] : memref<8x16x64xf32, #tpu.memory_space<vmem>>, vector<1x16x64xf32>
    %77 = vector.shape_cast %76 : vector<1x16x64xf32> to vector<16x64xf32>
    %78 = arith.mulf %77, %70 : vector<16x64xf32>
    %79 = arith.index_cast %c3_i32 : i32 to index
    %c0_48 = arith.constant 0 : index
    %c0_49 = arith.constant 0 : index
    %80 = vector.load %arg11[%79, %c0_48, %c0_49] : memref<8x16x64xf32, #tpu.memory_space<vmem>>, vector<1x16x64xf32>
    %81 = vector.shape_cast %80 : vector<1x16x64xf32> to vector<16x64xf32>
    %82 = arith.addf %78, %81 : vector<16x64xf32>
    %83 = arith.index_cast %c3_i32 : i32 to index
    %c0_50 = arith.constant 0 : index
    %c0_51 = arith.constant 0 : index
    %84 = vector.load %arg11[%83, %c0_50, %c0_51] : memref<8x16x64xf32, #tpu.memory_space<vmem>>, vector<1x16x64xf32>
    %85 = vector.shape_cast %84 : vector<1x16x64xf32> to vector<16x64xf32>
    %86 = vector.shape_cast %82 : vector<16x64xf32> to vector<1x16x64xf32>
    tpu.vector_store %arg11[%83, %c0_50, %c0_51], %86 {strides = array<i32>} : memref<8x16x64xf32, #tpu.memory_space<vmem>>, vector<1x16x64xf32>,
    %c4_i32 = arith.constant 4 : i32
    %87 = arith.index_cast %c4_i32 : i32 to index
    %c0_52 = arith.constant 0 : index
    %c0_53 = arith.constant 0 : index
    %88 = vector.load %arg10[%87, %c0_52, %c0_53] : memref<8x16x64xf32, #tpu.memory_space<vmem>>, vector<1x16x64xf32>
    %89 = vector.shape_cast %88 : vector<1x16x64xf32> to vector<16x64xf32>
    %90 = arith.mulf %89, %82 : vector<16x64xf32>
    %91 = arith.index_cast %c4_i32 : i32 to index
    %c0_54 = arith.constant 0 : index
    %c0_55 = arith.constant 0 : index
    %92 = vector.load %arg11[%91, %c0_54, %c0_55] : memref<8x16x64xf32, #tpu.memory_space<vmem>>, vector<1x16x64xf32>
    %93 = vector.shape_cast %92 : vector<1x16x64xf32> to vector<16x64xf32>
    %94 = arith.addf %90, %93 : vector<16x64xf32>
    %95 = arith.index_cast %c4_i32 : i32 to index
    %c0_56 = arith.constant 0 : index
    %c0_57 = arith.constant 0 : index
    %96 = vector.load %arg11[%95, %c0_56, %c0_57] : memref<8x16x64xf32, #tpu.memory_space<vmem>>, vector<1x16x64xf32>
    %97 = vector.shape_cast %96 : vector<1x16x64xf32> to vector<16x64xf32>
    %98 = vector.shape_cast %94 : vector<16x64xf32> to vector<1x16x64xf32>
    tpu.vector_store %arg11[%95, %c0_56, %c0_57], %98 {strides = array<i32>} : memref<8x16x64xf32, #tpu.memory_space<vmem>>, vector<1x16x64xf32>,
    %c5_i32 = arith.constant 5 : i32
    %99 = arith.index_cast %c5_i32 : i32 to index
    %c0_58 = arith.constant 0 : index
    %c0_59 = arith.constant 0 : index
    %100 = vector.load %arg10[%99, %c0_58, %c0_59] : memref<8x16x64xf32, #tpu.memory_space<vmem>>, vector<1x16x64xf32>
    %101 = vector.shape_cast %100 : vector<1x16x64xf32> to vector<16x64xf32>
    %102 = arith.mulf %101, %94 : vector<16x64xf32>
    %103 = arith.index_cast %c5_i32 : i32 to index
    %c0_60 = arith.constant 0 : index
    %c0_61 = arith.constant 0 : index
    %104 = vector.load %arg11[%103, %c0_60, %c0_61] : memref<8x16x64xf32, #tpu.memory_space<vmem>>, vector<1x16x64xf32>
    %105 = vector.shape_cast %104 : vector<1x16x64xf32> to vector<16x64xf32>
    %106 = arith.addf %102, %105 : vector<16x64xf32>
    %107 = arith.index_cast %c5_i32 : i32 to index
    %c0_62 = arith.constant 0 : index
    %c0_63 = arith.constant 0 : index
    %108 = vector.load %arg11[%107, %c0_62, %c0_63] : memref<8x16x64xf32, #tpu.memory_space<vmem>>, vector<1x16x64xf32>
    %109 = vector.shape_cast %108 : vector<1x16x64xf32> to vector<16x64xf32>
    %110 = vector.shape_cast %106 : vector<16x64xf32> to vector<1x16x64xf32>
    tpu.vector_store %arg11[%107, %c0_62, %c0_63], %110 {strides = array<i32>} : memref<8x16x64xf32, #tpu.memory_space<vmem>>, vector<1x16x64xf32>,
    %c6_i32 = arith.constant 6 : i32
    %111 = arith.index_cast %c6_i32 : i32 to index
    %c0_64 = arith.constant 0 : index
    %c0_65 = arith.constant 0 : index
    %112 = vector.load %arg10[%111, %c0_64, %c0_65] : memref<8x16x64xf32, #tpu.memory_space<vmem>>, vector<1x16x64xf32>
    %113 = vector.shape_cast %112 : vector<1x16x64xf32> to vector<16x64xf32>
    %114 = arith.mulf %113, %106 : vector<16x64xf32>
    %115 = arith.index_cast %c6_i32 : i32 to index
    %c0_66 = arith.constant 0 : index
    %c0_67 = arith.constant 0 : index
    %116 = vector.load %arg11[%115, %c0_66, %c0_67] : memref<8x16x64xf32, #tpu.memory_space<vmem>>, vector<1x16x64xf32>
    %117 = vector.shape_cast %116 : vector<1x16x64xf32> to vector<16x64xf32>
    %118 = arith.addf %114, %117 : vector<16x64xf32>
    %119 = arith.index_cast %c6_i32 : i32 to index
    %c0_68 = arith.constant 0 : index
    %c0_69 = arith.constant 0 : index
    %120 = vector.load %arg11[%119, %c0_68, %c0_69] : memref<8x16x64xf32, #tpu.memory_space<vmem>>, vector<1x16x64xf32>
    %121 = vector.shape_cast %120 : vector<1x16x64xf32> to vector<16x64xf32>
    %122 = vector.shape_cast %118 : vector<16x64xf32> to vector<1x16x64xf32>
    tpu.vector_store %arg11[%119, %c0_68, %c0_69], %122 {strides = array<i32>} : memref<8x16x64xf32, #tpu.memory_space<vmem>>, vector<1x16x64xf32>,
    %c7_i32 = arith.constant 7 : i32
    %123 = arith.index_cast %c7_i32 : i32 to index
    %c0_70 = arith.constant 0 : index
    %c0_71 = arith.constant 0 : index
    %124 = vector.load %arg10[%123, %c0_70, %c0_71] : memref<8x16x64xf32, #tpu.memory_space<vmem>>, vector<1x16x64xf32>
    %125 = vector.shape_cast %124 : vector<1x16x64xf32> to vector<16x64xf32>
    %126 = arith.mulf %125, %118 : vector<16x64xf32>
    %127 = arith.index_cast %c7_i32 : i32 to index
    %c0_72 = arith.constant 0 : index
    %c0_73 = arith.constant 0 : index
    %128 = vector.load %arg11[%127, %c0_72, %c0_73] : memref<8x16x64xf32, #tpu.memory_space<vmem>>, vector<1x16x64xf32>
    %129 = vector.shape_cast %128 : vector<1x16x64xf32> to vector<16x64xf32>
    %130 = arith.addf %126, %129 : vector<16x64xf32>
    %131 = arith.index_cast %c7_i32 : i32 to index
    %c0_74 = arith.constant 0 : index
    %c0_75 = arith.constant 0 : index
    %132 = vector.load %arg11[%131, %c0_74, %c0_75] : memref<8x16x64xf32, #tpu.memory_space<vmem>>, vector<1x16x64xf32>
    %133 = vector.shape_cast %132 : vector<1x16x64xf32> to vector<16x64xf32>
    %134 = vector.shape_cast %130 : vector<16x64xf32> to vector<1x16x64xf32>
    tpu.vector_store %arg11[%131, %c0_74, %c0_75], %134 {strides = array<i32>} : memref<8x16x64xf32, #tpu.memory_space<vmem>>, vector<1x16x64xf32>,
    %c8_i32 = arith.constant 8 : i32
    %c0_76 = arith.constant 0 : index
    %c0_77 = arith.constant 0 : index
    %135 = vector.load %arg12[%c0_76, %c0_77] : memref<16x64xf32, #tpu.memory_space<vmem>>, vector<16x64xf32>
    tpu.vector_store %arg12[%c0_76, %c0_77], %130 {strides = array<i32>} : memref<16x64xf32, #tpu.memory_space<vmem>>, vector<16x64xf32>,
    %c0_78 = arith.constant 0 : index
    %c0_79 = arith.constant 0 : index
    %c0_80 = arith.constant 0 : index
    %136 = vector.load %arg11[%c0_78, %c0_79, %c0_80] : memref<8x16x64xf32, #tpu.memory_space<vmem>>, vector<8x16x64xf32>
    %137 = vector.shape_cast %12 : vector<8x16xf32> to vector<8x16x1xf32>
    %138 = vector.broadcast %137 : vector<8x16x1xf32> to vector<8x16x64xf32>
    %139 = arith.mulf %136, %138 : vector<8x16x64xf32>
    %cst_81 = arith.constant dense<0.000000e+00> : vector<8x64xf32>
    %140 = vector.multi_reduction <add>, %139, %cst_81 [1] : vector<8x16x64xf32> to vector<8x64xf32>
    %c0_82 = arith.constant 0 : index
    %c0_83 = arith.constant 0 : index
    %141 = vector.load %arg8[%c0_82, %c0_83] : memref<1x64xf32, #tpu.memory_space<vmem>>, vector<1x64xf32>
    %142 = vector.broadcast %141 : vector<1x64xf32> to vector<8x64xf32>
    %143 = arith.mulf %142, %4 : vector<8x64xf32>
    %144 = arith.addf %140, %143 : vector<8x64xf32>
    %145 = arith.negf %6 : vector<8x64xf32>
    %146 = math.exp %145 : vector<8x64xf32>
    %cst_84 = arith.constant 1.000000e+00 : f32
    %147 = vector.broadcast %cst_84 : f32 to vector<8x64xf32>
    %148 = arith.addf %147, %146 : vector<8x64xf32>
    %149 = arith.divf %147, %148 : vector<8x64xf32>
    %150 = arith.mulf %6, %149 : vector<8x64xf32>
    %151 = arith.mulf %144, %150 : vector<8x64xf32>
    %c0_85 = arith.constant 0 : index
    %c0_86 = arith.constant 0 : index
    %c0_87 = arith.constant 0 : index
    %152 = vector.load %arg9[%c0_85, %c0_86, %c0_87] : memref<1x8x64xf32, #tpu.memory_space<vmem>>, vector<1x8x64xf32>
    %153 = vector.shape_cast %152 : vector<1x8x64xf32> to vector<8x64xf32>
    %154 = vector.shape_cast %151 : vector<8x64xf32> to vector<1x8x64xf32>
    tpu.vector_store %arg9[%c0_85, %c0_86, %c0_87], %154 {strides = array<i32>} : memref<1x8x64xf32, #tpu.memory_space<vmem>>, vector<1x8x64xf32>,
    return
  }
  func.func @transform_0(%arg0: i32, %arg1: i32) -> (i32, i32, i32) {
    %c0_i32 = arith.constant 0 : i32
    %c0_i32_0 = arith.constant 0 : i32
    return %arg0, %arg1, %c0_i32 : i32, i32, i32
  }
  func.func @transform_1(%arg0: i32, %arg1: i32) -> (i32, i32, i32) {
    %c0_i32 = arith.constant 0 : i32
    %c0_i32_0 = arith.constant 0 : i32
    return %arg0, %arg1, %c0_i32 : i32, i32, i32
  }
  func.func @transform_2(%arg0: i32, %arg1: i32) -> (i32, i32, i32) {
    %c0_i32 = arith.constant 0 : i32
    %c0_i32_0 = arith.constant 0 : i32
    return %arg0, %arg1, %c0_i32 : i32, i32, i32
  }
  func.func @transform_3(%arg0: i32, %arg1: i32) -> (i32, i32, i32) {
    %c0_i32 = arith.constant 0 : i32
    %c0_i32_0 = arith.constant 0 : i32
    return %arg0, %arg1, %c0_i32 : i32, i32, i32
  }
  func.func @transform_4(%arg0: i32, %arg1: i32) -> (i32, i32, i32) {
    %c0_i32 = arith.constant 0 : i32
    %c0_i32_0 = arith.constant 0 : i32
    return %arg0, %arg1, %c0_i32 : i32, i32, i32
  }
  func.func @transform_5(%arg0: i32, %arg1: i32) -> (i32, i32) {
    %c0_i32 = arith.constant 0 : i32
    %c0_i32_0 = arith.constant 0 : i32
    %c0_i32_1 = arith.constant 0 : i32
    return %c0_i32, %c0_i32_0 : i32, i32
  }
  func.func @transform_6(%arg0: i32, %arg1: i32) -> (i32, i32) {
    %c0_i32 = arith.constant 0 : i32
    %c0_i32_0 = arith.constant 0 : i32
    %c0_i32_1 = arith.constant 0 : i32
    return %c0_i32, %c0_i32_0 : i32, i32
  }
  func.func @transform_7(%arg0: i32, %arg1: i32) -> (i32, i32, i32) {
    %c0_i32 = arith.constant 0 : i32
    %c0_i32_0 = arith.constant 0 : i32
    return %arg0, %arg1, %c0_i32 : i32, i32, i32
  }
}

module attributes {stable_mosaic.version = 11 : i64} {
  func.func @_outproj_addln_kernel(%arg0: i32, %arg1: memref<16x64xf32, #tpu.memory_space<vmem>>, %arg2: memref<16x32xf32, #tpu.memory_space<vmem>>, %arg3: memref<64x32xbf16, #tpu.memory_space<vmem>>, %arg4: memref<1x32xf32, #tpu.memory_space<vmem>>, %arg5: memref<1x32xf32, #tpu.memory_space<vmem>>, %arg6: memref<16x32xf32, #tpu.memory_space<vmem>>, %arg7: memref<16x32xf32, #tpu.memory_space<vmem>>) attributes {dimension_semantics = [#tpu.dimension_semantics<parallel>], iteration_bounds = array<i64: 1>, scalar_prefetch = 0 : i64, scratch_operands = 0 : i64, tpu.core_type = #tpu.core_type<tc>, window_params = [{transform_indices = @transform_0, window_bounds = array<i64: 16, 64>}, {transform_indices = @transform_1, window_bounds = array<i64: 16, 32>}, {pipeline_mode = #tpu.pipeline_mode<synchronous>, transform_indices = @transform_2, window_bounds = array<i64: 64, 32>}, {pipeline_mode = #tpu.pipeline_mode<synchronous>, transform_indices = @transform_3, window_bounds = array<i64: 1, 32>}, {pipeline_mode = #tpu.pipeline_mode<synchronous>, transform_indices = @transform_4, window_bounds = array<i64: 1, 32>}, {transform_indices = @transform_5, window_bounds = array<i64: 16, 32>}, {transform_indices = @transform_6, window_bounds = array<i64: 16, 32>}]} {
    %c0 = arith.constant 0 : index
    %c0_0 = arith.constant 0 : index
    %0 = vector.load %arg1[%c0, %c0_0] : memref<16x64xf32, #tpu.memory_space<vmem>>, vector<16x64xf32>
    %1 = arith.truncf %0 : vector<16x64xf32> to vector<16x64xbf16>
    %c0_1 = arith.constant 0 : index
    %c0_2 = arith.constant 0 : index
    %2 = vector.load %arg3[%c0_1, %c0_2] : memref<64x32xbf16, #tpu.memory_space<vmem>>, vector<64x32xbf16>
    %cst = arith.constant dense<0.000000e+00> : vector<16x32xf32>
    %3 = tpu.matmul %1, %2, %cst {dimension_numbers = #tpu.dot_dimension_numbers<[1], [0], [0], [1], [0, 0, 1, 1], [], []>} : vector<16x64xbf16>, vector<64x32xbf16>, vector<16x32xf32> -> vector<16x32xf32>
    %c0_3 = arith.constant 0 : index
    %c0_4 = arith.constant 0 : index
    %4 = vector.load %arg2[%c0_3, %c0_4] : memref<16x32xf32, #tpu.memory_space<vmem>>, vector<16x32xf32>
    %5 = arith.addf %3, %4 : vector<16x32xf32>
    %c0_5 = arith.constant 0 : index
    %c0_6 = arith.constant 0 : index
    %6 = vector.load %arg4[%c0_5, %c0_6] : memref<1x32xf32, #tpu.memory_space<vmem>>, vector<1x32xf32>
    %c0_7 = arith.constant 0 : index
    %c0_8 = arith.constant 0 : index
    %7 = vector.load %arg5[%c0_7, %c0_8] : memref<1x32xf32, #tpu.memory_space<vmem>>, vector<1x32xf32>
    %cst_9 = arith.constant dense<0.000000e+00> : vector<16xf32>
    %8 = vector.multi_reduction <add>, %5, %cst_9 [1] : vector<16x32xf32> to vector<16xf32>
    %9 = vector.shape_cast %8 : vector<16xf32> to vector<16x1xf32>
    %cst_10 = arith.constant 3.200000e+01 : f32
    %10 = vector.broadcast %cst_10 : f32 to vector<16x1xf32>
    %11 = arith.divf %9, %10 : vector<16x1xf32>
    %12 = vector.broadcast %11 : vector<16x1xf32> to vector<16x32xf32>
    %13 = arith.subf %5, %12 : vector<16x32xf32>
    %14 = arith.mulf %13, %13 : vector<16x32xf32>
    %cst_11 = arith.constant dense<0.000000e+00> : vector<16xf32>
    %15 = vector.multi_reduction <add>, %14, %cst_11 [1] : vector<16x32xf32> to vector<16xf32>
    %16 = vector.shape_cast %15 : vector<16xf32> to vector<16x1xf32>
    %cst_12 = arith.constant 3.200000e+01 : f32
    %17 = vector.broadcast %cst_12 : f32 to vector<16x1xf32>
    %18 = arith.divf %16, %17 : vector<16x1xf32>
    %cst_13 = arith.constant 9.99999974E-6 : f32
    %19 = vector.broadcast %cst_13 : f32 to vector<16x1xf32>
    %20 = arith.addf %18, %19 : vector<16x1xf32>
    %21 = math.rsqrt %20 : vector<16x1xf32>
    %22 = vector.broadcast %21 : vector<16x1xf32> to vector<16x32xf32>
    %23 = arith.mulf %13, %22 : vector<16x32xf32>
    %24 = vector.broadcast %6 : vector<1x32xf32> to vector<16x32xf32>
    %25 = arith.mulf %23, %24 : vector<16x32xf32>
    %26 = vector.broadcast %7 : vector<1x32xf32> to vector<16x32xf32>
    %27 = arith.addf %25, %26 : vector<16x32xf32>
    %c0_14 = arith.constant 0 : index
    %c0_15 = arith.constant 0 : index
    %28 = vector.load %arg6[%c0_14, %c0_15] : memref<16x32xf32, #tpu.memory_space<vmem>>, vector<16x32xf32>
    tpu.vector_store %arg6[%c0_14, %c0_15], %27 {strides = array<i32>} : memref<16x32xf32, #tpu.memory_space<vmem>>, vector<16x32xf32>,
    %c0_16 = arith.constant 0 : index
    %c0_17 = arith.constant 0 : index
    %29 = vector.load %arg7[%c0_16, %c0_17] : memref<16x32xf32, #tpu.memory_space<vmem>>, vector<16x32xf32>
    tpu.vector_store %arg7[%c0_16, %c0_17], %5 {strides = array<i32>} : memref<16x32xf32, #tpu.memory_space<vmem>>, vector<16x32xf32>,
    return
  }
  func.func @transform_0(%arg0: i32) -> (i32, i32) {
    %c0_i32 = arith.constant 0 : i32
    %c0_i32_0 = arith.constant 0 : i32
    return %arg0, %c0_i32 : i32, i32
  }
  func.func @transform_1(%arg0: i32) -> (i32, i32) {
    %c0_i32 = arith.constant 0 : i32
    %c0_i32_0 = arith.constant 0 : i32
    return %arg0, %c0_i32 : i32, i32
  }
  func.func @transform_2(%arg0: i32) -> (i32, i32) {
    %c0_i32 = arith.constant 0 : i32
    %c0_i32_0 = arith.constant 0 : i32
    %c0_i32_1 = arith.constant 0 : i32
    return %c0_i32, %c0_i32_0 : i32, i32
  }
  func.func @transform_3(%arg0: i32) -> (i32, i32) {
    %c0_i32 = arith.constant 0 : i32
    %c0_i32_0 = arith.constant 0 : i32
    %c0_i32_1 = arith.constant 0 : i32
    return %c0_i32, %c0_i32_0 : i32, i32
  }
  func.func @transform_4(%arg0: i32) -> (i32, i32) {
    %c0_i32 = arith.constant 0 : i32
    %c0_i32_0 = arith.constant 0 : i32
    %c0_i32_1 = arith.constant 0 : i32
    return %c0_i32, %c0_i32_0 : i32, i32
  }
  func.func @transform_5(%arg0: i32) -> (i32, i32) {
    %c0_i32 = arith.constant 0 : i32
    %c0_i32_0 = arith.constant 0 : i32
    return %arg0, %c0_i32 : i32, i32
  }
  func.func @transform_6(%arg0: i32) -> (i32, i32) {
    %c0_i32 = arith.constant 0 : i32
    %c0_i32_0 = arith.constant 0 : i32
    return %arg0, %c0_i32 : i32, i32
  }
}

module attributes {stable_mosaic.version = 11 : i64} {
  func.func @_xproj_dt_kernel(%arg0: i32, %arg1: memref<16x64xf32, #tpu.memory_space<vmem>>, %arg2: memref<64x2xbf16, #tpu.memory_space<vmem>>, %arg3: memref<64x16xbf16, #tpu.memory_space<vmem>>, %arg4: memref<64x16xbf16, #tpu.memory_space<vmem>>, %arg5: memref<2x64xf32, #tpu.memory_space<vmem>>, %arg6: memref<1x64xf32, #tpu.memory_space<vmem>>, %arg7: memref<16x64xf32, #tpu.memory_space<vmem>>, %arg8: memref<16x16xf32, #tpu.memory_space<vmem>>, %arg9: memref<16x16xf32, #tpu.memory_space<vmem>>) attributes {dimension_semantics = [#tpu.dimension_semantics<parallel>], iteration_bounds = array<i64: 1>, scalar_prefetch = 0 : i64, scratch_operands = 0 : i64, tpu.core_type = #tpu.core_type<tc>, window_params = [{transform_indices = @transform_0, window_bounds = array<i64: 16, 64>}, {pipeline_mode = #tpu.pipeline_mode<synchronous>, transform_indices = @transform_1, window_bounds = array<i64: 64, 2>}, {pipeline_mode = #tpu.pipeline_mode<synchronous>, transform_indices = @transform_2, window_bounds = array<i64: 64, 16>}, {pipeline_mode = #tpu.pipeline_mode<synchronous>, transform_indices = @transform_3, window_bounds = array<i64: 64, 16>}, {pipeline_mode = #tpu.pipeline_mode<synchronous>, transform_indices = @transform_4, window_bounds = array<i64: 2, 64>}, {pipeline_mode = #tpu.pipeline_mode<synchronous>, transform_indices = @transform_5, window_bounds = array<i64: 1, 64>}, {transform_indices = @transform_6, window_bounds = array<i64: 16, 64>}, {transform_indices = @transform_7, window_bounds = array<i64: 16, 16>}, {transform_indices = @transform_8, window_bounds = array<i64: 16, 16>}]} {
    %c0 = arith.constant 0 : index
    %c0_0 = arith.constant 0 : index
    %0 = vector.load %arg1[%c0, %c0_0] : memref<16x64xf32, #tpu.memory_space<vmem>>, vector<16x64xf32>
    %1 = arith.truncf %0 : vector<16x64xf32> to vector<16x64xbf16>
    %c0_1 = arith.constant 0 : index
    %c0_2 = arith.constant 0 : index
    %2 = vector.load %arg2[%c0_1, %c0_2] : memref<64x2xbf16, #tpu.memory_space<vmem>>, vector<64x2xbf16>
    %cst = arith.constant dense<0.000000e+00> : vector<16x2xf32>
    %3 = tpu.matmul %1, %2, %cst {dimension_numbers = #tpu.dot_dimension_numbers<[1], [0], [0], [1], [0, 0, 1, 1], [], []>} : vector<16x64xbf16>, vector<64x2xbf16>, vector<16x2xf32> -> vector<16x2xf32>
    %c0_3 = arith.constant 0 : index
    %c0_4 = arith.constant 0 : index
    %4 = vector.load %arg5[%c0_3, %c0_4] : memref<2x64xf32, #tpu.memory_space<vmem>>, vector<2x64xf32>
    %cst_5 = arith.constant dense<0.000000e+00> : vector<16x64xf32>
    %5 = tpu.matmul %3, %4, %cst_5 {dimension_numbers = #tpu.dot_dimension_numbers<[1], [0], [0], [1], [0, 0, 1, 1], [], []>} : vector<16x2xf32>, vector<2x64xf32>, vector<16x64xf32> -> vector<16x64xf32>
    %c0_6 = arith.constant 0 : index
    %c0_7 = arith.constant 0 : index
    %6 = vector.load %arg6[%c0_6, %c0_7] : memref<1x64xf32, #tpu.memory_space<vmem>>, vector<1x64xf32>
    %7 = vector.broadcast %6 : vector<1x64xf32> to vector<16x64xf32>
    %8 = arith.addf %5, %7 : vector<16x64xf32>
    %c0_8 = arith.constant 0 : index
    %c0_9 = arith.constant 0 : index
    %9 = vector.load %arg7[%c0_8, %c0_9] : memref<16x64xf32, #tpu.memory_space<vmem>>, vector<16x64xf32>
    tpu.vector_store %arg7[%c0_8, %c0_9], %8 {strides = array<i32>} : memref<16x64xf32, #tpu.memory_space<vmem>>, vector<16x64xf32>,
    %c0_10 = arith.constant 0 : index
    %c0_11 = arith.constant 0 : index
    %10 = vector.load %arg3[%c0_10, %c0_11] : memref<64x16xbf16, #tpu.memory_space<vmem>>, vector<64x16xbf16>
    %cst_12 = arith.constant dense<0.000000e+00> : vector<16x16xf32>
    %11 = tpu.matmul %1, %10, %cst_12 {dimension_numbers = #tpu.dot_dimension_numbers<[1], [0], [0], [1], [0, 0, 1, 1], [], []>} : vector<16x64xbf16>, vector<64x16xbf16>, vector<16x16xf32> -> vector<16x16xf32>
    %c0_13 = arith.constant 0 : index
    %c0_14 = arith.constant 0 : index
    %12 = vector.load %arg8[%c0_13, %c0_14] : memref<16x16xf32, #tpu.memory_space<vmem>>, vector<16x16xf32>
    tpu.vector_store %arg8[%c0_13, %c0_14], %11 {strides = array<i32>} : memref<16x16xf32, #tpu.memory_space<vmem>>, vector<16x16xf32>,
    %c0_15 = arith.constant 0 : index
    %c0_16 = arith.constant 0 : index
    %13 = vector.load %arg4[%c0_15, %c0_16] : memref<64x16xbf16, #tpu.memory_space<vmem>>, vector<64x16xbf16>
    %cst_17 = arith.constant dense<0.000000e+00> : vector<16x16xf32>
    %14 = tpu.matmul %1, %13, %cst_17 {dimension_numbers = #tpu.dot_dimension_numbers<[1], [0], [0], [1], [0, 0, 1, 1], [], []>} : vector<16x64xbf16>, vector<64x16xbf16>, vector<16x16xf32> -> vector<16x16xf32>
    %c0_18 = arith.constant 0 : index
    %c0_19 = arith.constant 0 : index
    %15 = vector.load %arg9[%c0_18, %c0_19] : memref<16x16xf32, #tpu.memory_space<vmem>>, vector<16x16xf32>
    tpu.vector_store %arg9[%c0_18, %c0_19], %14 {strides = array<i32>} : memref<16x16xf32, #tpu.memory_space<vmem>>, vector<16x16xf32>,
    return
  }
  func.func @transform_0(%arg0: i32) -> (i32, i32) {
    %c0_i32 = arith.constant 0 : i32
    %c0_i32_0 = arith.constant 0 : i32
    return %arg0, %c0_i32 : i32, i32
  }
  func.func @transform_1(%arg0: i32) -> (i32, i32) {
    %c0_i32 = arith.constant 0 : i32
    %c0_i32_0 = arith.constant 0 : i32
    %c0_i32_1 = arith.constant 0 : i32
    return %c0_i32, %c0_i32_0 : i32, i32
  }
  func.func @transform_2(%arg0: i32) -> (i32, i32) {
    %c0_i32 = arith.constant 0 : i32
    %c0_i32_0 = arith.constant 0 : i32
    %c0_i32_1 = arith.constant 0 : i32
    return %c0_i32, %c0_i32_0 : i32, i32
  }
  func.func @transform_3(%arg0: i32) -> (i32, i32) {
    %c0_i32 = arith.constant 0 : i32
    %c0_i32_0 = arith.constant 0 : i32
    %c0_i32_1 = arith.constant 0 : i32
    return %c0_i32, %c0_i32_0 : i32, i32
  }
  func.func @transform_4(%arg0: i32) -> (i32, i32) {
    %c0_i32 = arith.constant 0 : i32
    %c0_i32_0 = arith.constant 0 : i32
    %c0_i32_1 = arith.constant 0 : i32
    return %c0_i32, %c0_i32_0 : i32, i32
  }
  func.func @transform_5(%arg0: i32) -> (i32, i32) {
    %c0_i32 = arith.constant 0 : i32
    %c0_i32_0 = arith.constant 0 : i32
    %c0_i32_1 = arith.constant 0 : i32
    return %c0_i32, %c0_i32_0 : i32, i32
  }
  func.func @transform_6(%arg0: i32) -> (i32, i32) {
    %c0_i32 = arith.constant 0 : i32
    %c0_i32_0 = arith.constant 0 : i32
    return %arg0, %c0_i32 : i32, i32
  }
  func.func @transform_7(%arg0: i32) -> (i32, i32) {
    %c0_i32 = arith.constant 0 : i32
    %c0_i32_0 = arith.constant 0 : i32
    return %arg0, %c0_i32 : i32, i32
  }
  func.func @transform_8(%arg0: i32) -> (i32, i32) {
    %c0_i32 = arith.constant 0 : i32
    %c0_i32_0 = arith.constant 0 : i32
    return %arg0, %c0_i32 : i32, i32
  }
}

module attributes {stable_mosaic.version = 11 : i64} {
  func.func @_gated_mlp_kernel(%arg0: i32, %arg1: memref<16x32xf32, #tpu.memory_space<vmem>>, %arg2: memref<32x128xbf16, #tpu.memory_space<vmem>>, %arg3: memref<32x128xbf16, #tpu.memory_space<vmem>>, %arg4: memref<128x32xbf16, #tpu.memory_space<vmem>>, %arg5: memref<16x32xf32, #tpu.memory_space<vmem>>) attributes {dimension_semantics = [#tpu.dimension_semantics<parallel>], iteration_bounds = array<i64: 1>, scalar_prefetch = 0 : i64, scratch_operands = 0 : i64, tpu.core_type = #tpu.core_type<tc>, window_params = [{transform_indices = @transform_0, window_bounds = array<i64: 16, 32>}, {pipeline_mode = #tpu.pipeline_mode<synchronous>, transform_indices = @transform_1, window_bounds = array<i64: 32, 128>}, {pipeline_mode = #tpu.pipeline_mode<synchronous>, transform_indices = @transform_2, window_bounds = array<i64: 32, 128>}, {pipeline_mode = #tpu.pipeline_mode<synchronous>, transform_indices = @transform_3, window_bounds = array<i64: 128, 32>}, {transform_indices = @transform_4, window_bounds = array<i64: 16, 32>}]} {
    %c0 = arith.constant 0 : index
    %c0_0 = arith.constant 0 : index
    %0 = vector.load %arg1[%c0, %c0_0] : memref<16x32xf32, #tpu.memory_space<vmem>>, vector<16x32xf32>
    %1 = arith.truncf %0 : vector<16x32xf32> to vector<16x32xbf16>
    %c0_1 = arith.constant 0 : index
    %c0_2 = arith.constant 0 : index
    %2 = vector.load %arg2[%c0_1, %c0_2] : memref<32x128xbf16, #tpu.memory_space<vmem>>, vector<32x128xbf16>
    %cst = arith.constant dense<0.000000e+00> : vector<16x128xf32>
    %3 = tpu.matmul %1, %2, %cst {dimension_numbers = #tpu.dot_dimension_numbers<[1], [0], [0], [1], [0, 0, 1, 1], [], []>} : vector<16x32xbf16>, vector<32x128xbf16>, vector<16x128xf32> -> vector<16x128xf32>
    %c0_3 = arith.constant 0 : index
    %c0_4 = arith.constant 0 : index
    %4 = vector.load %arg3[%c0_3, %c0_4] : memref<32x128xbf16, #tpu.memory_space<vmem>>, vector<32x128xbf16>
    %cst_5 = arith.constant dense<0.000000e+00> : vector<16x128xf32>
    %5 = tpu.matmul %1, %4, %cst_5 {dimension_numbers = #tpu.dot_dimension_numbers<[1], [0], [0], [1], [0, 0, 1, 1], [], []>} : vector<16x32xbf16>, vector<32x128xbf16>, vector<16x128xf32> -> vector<16x128xf32>
    %6 = arith.negf %5 : vector<16x128xf32>
    %7 = math.exp %6 : vector<16x128xf32>
    %cst_6 = arith.constant 1.000000e+00 : f32
    %8 = vector.broadcast %cst_6 : f32 to vector<16x128xf32>
    %9 = arith.addf %8, %7 : vector<16x128xf32>
    %10 = arith.divf %8, %9 : vector<16x128xf32>
    %11 = arith.mulf %5, %10 : vector<16x128xf32>
    %12 = arith.mulf %3, %11 : vector<16x128xf32>
    %13 = arith.truncf %12 : vector<16x128xf32> to vector<16x128xbf16>
    %c0_7 = arith.constant 0 : index
    %c0_8 = arith.constant 0 : index
    %14 = vector.load %arg4[%c0_7, %c0_8] : memref<128x32xbf16, #tpu.memory_space<vmem>>, vector<128x32xbf16>
    %cst_9 = arith.constant dense<0.000000e+00> : vector<16x32xf32>
    %15 = tpu.matmul %13, %14, %cst_9 {dimension_numbers = #tpu.dot_dimension_numbers<[1], [0], [0], [1], [0, 0, 1, 1], [], []>} : vector<16x128xbf16>, vector<128x32xbf16>, vector<16x32xf32> -> vector<16x32xf32>
    %c0_10 = arith.constant 0 : index
    %c0_11 = arith.constant 0 : index
    %16 = vector.load %arg5[%c0_10, %c0_11] : memref<16x32xf32, #tpu.memory_space<vmem>>, vector<16x32xf32>
    tpu.vector_store %arg5[%c0_10, %c0_11], %15 {strides = array<i32>} : memref<16x32xf32, #tpu.memory_space<vmem>>, vector<16x32xf32>,
    return
  }
  func.func @transform_0(%arg0: i32) -> (i32, i32) {
    %c0_i32 = arith.constant 0 : i32
    %c0_i32_0 = arith.constant 0 : i32
    return %arg0, %c0_i32 : i32, i32
  }
  func.func @transform_1(%arg0: i32) -> (i32, i32) {
    %c0_i32 = arith.constant 0 : i32
    %c0_i32_0 = arith.constant 0 : i32
    %c0_i32_1 = arith.constant 0 : i32
    return %c0_i32, %c0_i32_0 : i32, i32
  }
  func.func @transform_2(%arg0: i32) -> (i32, i32) {
    %c0_i32 = arith.constant 0 : i32
    %c0_i32_0 = arith.constant 0 : i32
    %c0_i32_1 = arith.constant 0 : i32
    return %c0_i32, %c0_i32_0 : i32, i32
  }
  func.func @transform_3(%arg0: i32) -> (i32, i32) {
    %c0_i32 = arith.constant 0 : i32
    %c0_i32_0 = arith.constant 0 : i32
    %c0_i32_1 = arith.constant 0 : i32
    return %c0_i32, %c0_i32_0 : i32, i32
  }
  func.func @transform_4(%arg0: i32) -> (i32, i32) {
    %c0_i32 = arith.constant 0 : i32
    %c0_i32_0 = arith.constant 0 : i32
    return %arg0, %c0_i32 : i32, i32
  }
}

module attributes {stable_mosaic.version = 11 : i64} {
  func.func @_ln_inproj_kernel(%arg0: i32, %arg1: memref<16x32xf32, #tpu.memory_space<vmem>>, %arg2: memref<16x32xf32, #tpu.memory_space<vmem>>, %arg3: memref<1x32xf32, #tpu.memory_space<vmem>>, %arg4: memref<1x32xf32, #tpu.memory_space<vmem>>, %arg5: memref<32x64xbf16, #tpu.memory_space<vmem>>, %arg6: memref<32x64xbf16, #tpu.memory_space<vmem>>, %arg7: memref<16x64xf32, #tpu.memory_space<vmem>>, %arg8: memref<16x64xf32, #tpu.memory_space<vmem>>, %arg9: memref<16x32xf32, #tpu.memory_space<vmem>>) attributes {dimension_semantics = [#tpu.dimension_semantics<parallel>], iteration_bounds = array<i64: 1>, scalar_prefetch = 0 : i64, scratch_operands = 0 : i64, tpu.core_type = #tpu.core_type<tc>, window_params = [{transform_indices = @transform_0, window_bounds = array<i64: 16, 32>}, {transform_indices = @transform_1, window_bounds = array<i64: 16, 32>}, {pipeline_mode = #tpu.pipeline_mode<synchronous>, transform_indices = @transform_2, window_bounds = array<i64: 1, 32>}, {pipeline_mode = #tpu.pipeline_mode<synchronous>, transform_indices = @transform_3, window_bounds = array<i64: 1, 32>}, {pipeline_mode = #tpu.pipeline_mode<synchronous>, transform_indices = @transform_4, window_bounds = array<i64: 32, 64>}, {pipeline_mode = #tpu.pipeline_mode<synchronous>, transform_indices = @transform_5, window_bounds = array<i64: 32, 64>}, {transform_indices = @transform_6, window_bounds = array<i64: 16, 64>}, {transform_indices = @transform_7, window_bounds = array<i64: 16, 64>}, {transform_indices = @transform_8, window_bounds = array<i64: 16, 32>}]} {
    %c0 = arith.constant 0 : index
    %c0_0 = arith.constant 0 : index
    %0 = vector.load %arg1[%c0, %c0_0] : memref<16x32xf32, #tpu.memory_space<vmem>>, vector<16x32xf32>
    %c0_1 = arith.constant 0 : index
    %c0_2 = arith.constant 0 : index
    %1 = vector.load %arg2[%c0_1, %c0_2] : memref<16x32xf32, #tpu.memory_space<vmem>>, vector<16x32xf32>
    %2 = arith.addf %0, %1 : vector<16x32xf32>
    %c0_3 = arith.constant 0 : index
    %c0_4 = arith.constant 0 : index
    %3 = vector.load %arg3[%c0_3, %c0_4] : memref<1x32xf32, #tpu.memory_space<vmem>>, vector<1x32xf32>
    %c0_5 = arith.constant 0 : index
    %c0_6 = arith.constant 0 : index
    %4 = vector.load %arg4[%c0_5, %c0_6] : memref<1x32xf32, #tpu.memory_space<vmem>>, vector<1x32xf32>
    %cst = arith.constant dense<0.000000e+00> : vector<16xf32>
    %5 = vector.multi_reduction <add>, %2, %cst [1] : vector<16x32xf32> to vector<16xf32>
    %6 = vector.shape_cast %5 : vector<16xf32> to vector<16x1xf32>
    %cst_7 = arith.constant 3.200000e+01 : f32
    %7 = vector.broadcast %cst_7 : f32 to vector<16x1xf32>
    %8 = arith.divf %6, %7 : vector<16x1xf32>
    %9 = vector.broadcast %8 : vector<16x1xf32> to vector<16x32xf32>
    %10 = arith.subf %2, %9 : vector<16x32xf32>
    %11 = arith.mulf %10, %10 : vector<16x32xf32>
    %cst_8 = arith.constant dense<0.000000e+00> : vector<16xf32>
    %12 = vector.multi_reduction <add>, %11, %cst_8 [1] : vector<16x32xf32> to vector<16xf32>
    %13 = vector.shape_cast %12 : vector<16xf32> to vector<16x1xf32>
    %cst_9 = arith.constant 3.200000e+01 : f32
    %14 = vector.broadcast %cst_9 : f32 to vector<16x1xf32>
    %15 = arith.divf %13, %14 : vector<16x1xf32>
    %cst_10 = arith.constant 9.99999974E-6 : f32
    %16 = vector.broadcast %cst_10 : f32 to vector<16x1xf32>
    %17 = arith.addf %15, %16 : vector<16x1xf32>
    %18 = math.rsqrt %17 : vector<16x1xf32>
    %19 = vector.broadcast %18 : vector<16x1xf32> to vector<16x32xf32>
    %20 = arith.mulf %10, %19 : vector<16x32xf32>
    %21 = vector.broadcast %3 : vector<1x32xf32> to vector<16x32xf32>
    %22 = arith.mulf %20, %21 : vector<16x32xf32>
    %23 = vector.broadcast %4 : vector<1x32xf32> to vector<16x32xf32>
    %24 = arith.addf %22, %23 : vector<16x32xf32>
    %25 = arith.truncf %24 : vector<16x32xf32> to vector<16x32xbf16>
    %c0_11 = arith.constant 0 : index
    %c0_12 = arith.constant 0 : index
    %26 = vector.load %arg5[%c0_11, %c0_12] : memref<32x64xbf16, #tpu.memory_space<vmem>>, vector<32x64xbf16>
    %cst_13 = arith.constant dense<0.000000e+00> : vector<16x64xf32>
    %27 = tpu.matmul %25, %26, %cst_13 {dimension_numbers = #tpu.dot_dimension_numbers<[1], [0], [0], [1], [0, 0, 1, 1], [], []>} : vector<16x32xbf16>, vector<32x64xbf16>, vector<16x64xf32> -> vector<16x64xf32>
    %c0_14 = arith.constant 0 : index
    %c0_15 = arith.constant 0 : index
    %28 = vector.load %arg7[%c0_14, %c0_15] : memref<16x64xf32, #tpu.memory_space<vmem>>, vector<16x64xf32>
    tpu.vector_store %arg7[%c0_14, %c0_15], %27 {strides = array<i32>} : memref<16x64xf32, #tpu.memory_space<vmem>>, vector<16x64xf32>,
    %c0_16 = arith.constant 0 : index
    %c0_17 = arith.constant 0 : index
    %29 = vector.load %arg6[%c0_16, %c0_17] : memref<32x64xbf16, #tpu.memory_space<vmem>>, vector<32x64xbf16>
    %cst_18 = arith.constant dense<0.000000e+00> : vector<16x64xf32>
    %30 = tpu.matmul %25, %29, %cst_18 {dimension_numbers = #tpu.dot_dimension_numbers<[1], [0], [0], [1], [0, 0, 1, 1], [], []>} : vector<16x32xbf16>, vector<32x64xbf16>, vector<16x64xf32> -> vector<16x64xf32>
    %c0_19 = arith.constant 0 : index
    %c0_20 = arith.constant 0 : index
    %31 = vector.load %arg8[%c0_19, %c0_20] : memref<16x64xf32, #tpu.memory_space<vmem>>, vector<16x64xf32>
    tpu.vector_store %arg8[%c0_19, %c0_20], %30 {strides = array<i32>} : memref<16x64xf32, #tpu.memory_space<vmem>>, vector<16x64xf32>,
    %c0_21 = arith.constant 0 : index
    %c0_22 = arith.constant 0 : index
    %32 = vector.load %arg9[%c0_21, %c0_22] : memref<16x32xf32, #tpu.memory_space<vmem>>, vector<16x32xf32>
    tpu.vector_store %arg9[%c0_21, %c0_22], %2 {strides = array<i32>} : memref<16x32xf32, #tpu.memory_space<vmem>>, vector<16x32xf32>,
    return
  }
  func.func @transform_0(%arg0: i32) -> (i32, i32) {
    %c0_i32 = arith.constant 0 : i32
    %c0_i32_0 = arith.constant 0 : i32
    return %arg0, %c0_i32 : i32, i32
  }
  func.func @transform_1(%arg0: i32) -> (i32, i32) {
    %c0_i32 = arith.constant 0 : i32
    %c0_i32_0 = arith.constant 0 : i32
    return %arg0, %c0_i32 : i32, i32
  }
  func.func @transform_2(%arg0: i32) -> (i32, i32) {
    %c0_i32 = arith.constant 0 : i32
    %c0_i32_0 = arith.constant 0 : i32
    %c0_i32_1 = arith.constant 0 : i32
    return %c0_i32, %c0_i32_0 : i32, i32
  }
  func.func @transform_3(%arg0: i32) -> (i32, i32) {
    %c0_i32 = arith.constant 0 : i32
    %c0_i32_0 = arith.constant 0 : i32
    %c0_i32_1 = arith.constant 0 : i32
    return %c0_i32, %c0_i32_0 : i32, i32
  }
  func.func @transform_4(%arg0: i32) -> (i32, i32) {
    %c0_i32 = arith.constant 0 : i32
    %c0_i32_0 = arith.constant 0 : i32
    %c0_i32_1 = arith.constant 0 : i32
    return %c0_i32, %c0_i32_0 : i32, i32
  }
  func.func @transform_5(%arg0: i32) -> (i32, i32) {
    %c0_i32 = arith.constant 0 : i32
    %c0_i32_0 = arith.constant 0 : i32
    %c0_i32_1 = arith.constant 0 : i32
    return %c0_i32, %c0_i32_0 : i32, i32
  }
  func.func @transform_6(%arg0: i32) -> (i32, i32) {
    %c0_i32 = arith.constant 0 : i32
    %c0_i32_0 = arith.constant 0 : i32
    return %arg0, %c0_i32 : i32, i32
  }
  func.func @transform_7(%arg0: i32) -> (i32, i32) {
    %c0_i32 = arith.constant 0 : i32
    %c0_i32_0 = arith.constant 0 : i32
    return %arg0, %c0_i32 : i32, i32
  }
  func.func @transform_8(%arg0: i32) -> (i32, i32) {
    %c0_i32 = arith.constant 0 : i32
    %c0_i32_0 = arith.constant 0 : i32
    return %arg0, %c0_i32 : i32, i32
  }
}

module attributes {stable_mosaic.version = 11 : i64} {
  func.func @_gated_mlp_kernel(%arg0: i32, %arg1: memref<2x32xf32, #tpu.memory_space<vmem>>, %arg2: memref<32x128xbf16, #tpu.memory_space<vmem>>, %arg3: memref<32x128xbf16, #tpu.memory_space<vmem>>, %arg4: memref<128x32xbf16, #tpu.memory_space<vmem>>, %arg5: memref<2x32xf32, #tpu.memory_space<vmem>>) attributes {dimension_semantics = [#tpu.dimension_semantics<parallel>], iteration_bounds = array<i64: 1>, scalar_prefetch = 0 : i64, scratch_operands = 0 : i64, tpu.core_type = #tpu.core_type<tc>, window_params = [{transform_indices = @transform_0, window_bounds = array<i64: 2, 32>}, {pipeline_mode = #tpu.pipeline_mode<synchronous>, transform_indices = @transform_1, window_bounds = array<i64: 32, 128>}, {pipeline_mode = #tpu.pipeline_mode<synchronous>, transform_indices = @transform_2, window_bounds = array<i64: 32, 128>}, {pipeline_mode = #tpu.pipeline_mode<synchronous>, transform_indices = @transform_3, window_bounds = array<i64: 128, 32>}, {transform_indices = @transform_4, window_bounds = array<i64: 2, 32>}]} {
    %c0 = arith.constant 0 : index
    %c0_0 = arith.constant 0 : index
    %0 = vector.load %arg1[%c0, %c0_0] : memref<2x32xf32, #tpu.memory_space<vmem>>, vector<2x32xf32>
    %1 = arith.truncf %0 : vector<2x32xf32> to vector<2x32xbf16>
    %c0_1 = arith.constant 0 : index
    %c0_2 = arith.constant 0 : index
    %2 = vector.load %arg2[%c0_1, %c0_2] : memref<32x128xbf16, #tpu.memory_space<vmem>>, vector<32x128xbf16>
    %cst = arith.constant dense<0.000000e+00> : vector<2x128xf32>
    %3 = tpu.matmul %1, %2, %cst {dimension_numbers = #tpu.dot_dimension_numbers<[1], [0], [0], [1], [0, 0, 1, 1], [], []>} : vector<2x32xbf16>, vector<32x128xbf16>, vector<2x128xf32> -> vector<2x128xf32>
    %c0_3 = arith.constant 0 : index
    %c0_4 = arith.constant 0 : index
    %4 = vector.load %arg3[%c0_3, %c0_4] : memref<32x128xbf16, #tpu.memory_space<vmem>>, vector<32x128xbf16>
    %cst_5 = arith.constant dense<0.000000e+00> : vector<2x128xf32>
    %5 = tpu.matmul %1, %4, %cst_5 {dimension_numbers = #tpu.dot_dimension_numbers<[1], [0], [0], [1], [0, 0, 1, 1], [], []>} : vector<2x32xbf16>, vector<32x128xbf16>, vector<2x128xf32> -> vector<2x128xf32>
    %6 = arith.negf %5 : vector<2x128xf32>
    %7 = math.exp %6 : vector<2x128xf32>
    %cst_6 = arith.constant 1.000000e+00 : f32
    %8 = vector.broadcast %cst_6 : f32 to vector<2x128xf32>
    %9 = arith.addf %8, %7 : vector<2x128xf32>
    %10 = arith.divf %8, %9 : vector<2x128xf32>
    %11 = arith.mulf %5, %10 : vector<2x128xf32>
    %12 = arith.mulf %3, %11 : vector<2x128xf32>
    %13 = arith.truncf %12 : vector<2x128xf32> to vector<2x128xbf16>
    %c0_7 = arith.constant 0 : index
    %c0_8 = arith.constant 0 : index
    %14 = vector.load %arg4[%c0_7, %c0_8] : memref<128x32xbf16, #tpu.memory_space<vmem>>, vector<128x32xbf16>
    %cst_9 = arith.constant dense<0.000000e+00> : vector<2x32xf32>
    %15 = tpu.matmul %13, %14, %cst_9 {dimension_numbers = #tpu.dot_dimension_numbers<[1], [0], [0], [1], [0, 0, 1, 1], [], []>} : vector<2x128xbf16>, vector<128x32xbf16>, vector<2x32xf32> -> vector<2x32xf32>
    %c0_10 = arith.constant 0 : index
    %c0_11 = arith.constant 0 : index
    %16 = vector.load %arg5[%c0_10, %c0_11] : memref<2x32xf32, #tpu.memory_space<vmem>>, vector<2x32xf32>
    tpu.vector_store %arg5[%c0_10, %c0_11], %15 {strides = array<i32>} : memref<2x32xf32, #tpu.memory_space<vmem>>, vector<2x32xf32>,
    return
  }
  func.func @transform_0(%arg0: i32) -> (i32, i32) {
    %c0_i32 = arith.constant 0 : i32
    %c0_i32_0 = arith.constant 0 : i32
    return %arg0, %c0_i32 : i32, i32
  }
  func.func @transform_1(%arg0: i32) -> (i32, i32) {
    %c0_i32 = arith.constant 0 : i32
    %c0_i32_0 = arith.constant 0 : i32
    %c0_i32_1 = arith.constant 0 : i32
    return %c0_i32, %c0_i32_0 : i32, i32
  }
  func.func @transform_2(%arg0: i32) -> (i32, i32) {
    %c0_i32 = arith.constant 0 : i32
    %c0_i32_0 = arith.constant 0 : i32
    %c0_i32_1 = arith.constant 0 : i32
    return %c0_i32, %c0_i32_0 : i32, i32
  }
  func.func @transform_3(%arg0: i32) -> (i32, i32) {
    %c0_i32 = arith.constant 0 : i32
    %c0_i32_0 = arith.constant 0 : i32
    %c0_i32_1 = arith.constant 0 : i32
    return %c0_i32, %c0_i32_0 : i32, i32
  }
  func.func @transform_4(%arg0: i32) -> (i32, i32) {
    %c0_i32 = arith.constant 0 : i32
    %c0_i32_0 = arith.constant 0 : i32
    return %arg0, %c0_i32 : i32, i32
  }
}

module attributes {stable_mosaic.version = 11 : i64} {
  func.func @_outproj_addln_kernel(%arg0: i32, %arg1: memref<2x64xf32, #tpu.memory_space<vmem>>, %arg2: memref<2x32xf32, #tpu.memory_space<vmem>>, %arg3: memref<64x32xbf16, #tpu.memory_space<vmem>>, %arg4: memref<1x32xf32, #tpu.memory_space<vmem>>, %arg5: memref<1x32xf32, #tpu.memory_space<vmem>>, %arg6: memref<2x32xf32, #tpu.memory_space<vmem>>, %arg7: memref<2x32xf32, #tpu.memory_space<vmem>>) attributes {dimension_semantics = [#tpu.dimension_semantics<parallel>], iteration_bounds = array<i64: 1>, scalar_prefetch = 0 : i64, scratch_operands = 0 : i64, tpu.core_type = #tpu.core_type<tc>, window_params = [{transform_indices = @transform_0, window_bounds = array<i64: 2, 64>}, {transform_indices = @transform_1, window_bounds = array<i64: 2, 32>}, {pipeline_mode = #tpu.pipeline_mode<synchronous>, transform_indices = @transform_2, window_bounds = array<i64: 64, 32>}, {pipeline_mode = #tpu.pipeline_mode<synchronous>, transform_indices = @transform_3, window_bounds = array<i64: 1, 32>}, {pipeline_mode = #tpu.pipeline_mode<synchronous>, transform_indices = @transform_4, window_bounds = array<i64: 1, 32>}, {transform_indices = @transform_5, window_bounds = array<i64: 2, 32>}, {transform_indices = @transform_6, window_bounds = array<i64: 2, 32>}]} {
    %c0 = arith.constant 0 : index
    %c0_0 = arith.constant 0 : index
    %0 = vector.load %arg1[%c0, %c0_0] : memref<2x64xf32, #tpu.memory_space<vmem>>, vector<2x64xf32>
    %1 = arith.truncf %0 : vector<2x64xf32> to vector<2x64xbf16>
    %c0_1 = arith.constant 0 : index
    %c0_2 = arith.constant 0 : index
    %2 = vector.load %arg3[%c0_1, %c0_2] : memref<64x32xbf16, #tpu.memory_space<vmem>>, vector<64x32xbf16>
    %cst = arith.constant dense<0.000000e+00> : vector<2x32xf32>
    %3 = tpu.matmul %1, %2, %cst {dimension_numbers = #tpu.dot_dimension_numbers<[1], [0], [0], [1], [0, 0, 1, 1], [], []>} : vector<2x64xbf16>, vector<64x32xbf16>, vector<2x32xf32> -> vector<2x32xf32>
    %c0_3 = arith.constant 0 : index
    %c0_4 = arith.constant 0 : index
    %4 = vector.load %arg2[%c0_3, %c0_4] : memref<2x32xf32, #tpu.memory_space<vmem>>, vector<2x32xf32>
    %5 = arith.addf %3, %4 : vector<2x32xf32>
    %c0_5 = arith.constant 0 : index
    %c0_6 = arith.constant 0 : index
    %6 = vector.load %arg4[%c0_5, %c0_6] : memref<1x32xf32, #tpu.memory_space<vmem>>, vector<1x32xf32>
    %c0_7 = arith.constant 0 : index
    %c0_8 = arith.constant 0 : index
    %7 = vector.load %arg5[%c0_7, %c0_8] : memref<1x32xf32, #tpu.memory_space<vmem>>, vector<1x32xf32>
    %cst_9 = arith.constant dense<0.000000e+00> : vector<2xf32>
    %8 = vector.multi_reduction <add>, %5, %cst_9 [1] : vector<2x32xf32> to vector<2xf32>
    %9 = vector.shape_cast %8 : vector<2xf32> to vector<2x1xf32>
    %cst_10 = arith.constant 3.200000e+01 : f32
    %10 = vector.broadcast %cst_10 : f32 to vector<2x1xf32>
    %11 = arith.divf %9, %10 : vector<2x1xf32>
    %12 = vector.broadcast %11 : vector<2x1xf32> to vector<2x32xf32>
    %13 = arith.subf %5, %12 : vector<2x32xf32>
    %14 = arith.mulf %13, %13 : vector<2x32xf32>
    %cst_11 = arith.constant dense<0.000000e+00> : vector<2xf32>
    %15 = vector.multi_reduction <add>, %14, %cst_11 [1] : vector<2x32xf32> to vector<2xf32>
    %16 = vector.shape_cast %15 : vector<2xf32> to vector<2x1xf32>
    %cst_12 = arith.constant 3.200000e+01 : f32
    %17 = vector.broadcast %cst_12 : f32 to vector<2x1xf32>
    %18 = arith.divf %16, %17 : vector<2x1xf32>
    %cst_13 = arith.constant 9.99999974E-6 : f32
    %19 = vector.broadcast %cst_13 : f32 to vector<2x1xf32>
    %20 = arith.addf %18, %19 : vector<2x1xf32>
    %21 = math.rsqrt %20 : vector<2x1xf32>
    %22 = vector.broadcast %21 : vector<2x1xf32> to vector<2x32xf32>
    %23 = arith.mulf %13, %22 : vector<2x32xf32>
    %24 = vector.broadcast %6 : vector<1x32xf32> to vector<2x32xf32>
    %25 = arith.mulf %23, %24 : vector<2x32xf32>
    %26 = vector.broadcast %7 : vector<1x32xf32> to vector<2x32xf32>
    %27 = arith.addf %25, %26 : vector<2x32xf32>
    %c0_14 = arith.constant 0 : index
    %c0_15 = arith.constant 0 : index
    %28 = vector.load %arg6[%c0_14, %c0_15] : memref<2x32xf32, #tpu.memory_space<vmem>>, vector<2x32xf32>
    tpu.vector_store %arg6[%c0_14, %c0_15], %27 {strides = array<i32>} : memref<2x32xf32, #tpu.memory_space<vmem>>, vector<2x32xf32>,
    %c0_16 = arith.constant 0 : index
    %c0_17 = arith.constant 0 : index
    %29 = vector.load %arg7[%c0_16, %c0_17] : memref<2x32xf32, #tpu.memory_space<vmem>>, vector<2x32xf32>
    tpu.vector_store %arg7[%c0_16, %c0_17], %5 {strides = array<i32>} : memref<2x32xf32, #tpu.memory_space<vmem>>, vector<2x32xf32>,
    return
  }
  func.func @transform_0(%arg0: i32) -> (i32, i32) {
    %c0_i32 = arith.constant 0 : i32
    %c0_i32_0 = arith.constant 0 : i32
    return %arg0, %c0_i32 : i32, i32
  }
  func.func @transform_1(%arg0: i32) -> (i32, i32) {
    %c0_i32 = arith.constant 0 : i32
    %c0_i32_0 = arith.constant 0 : i32
    return %arg0, %c0_i32 : i32, i32
  }
  func.func @transform_2(%arg0: i32) -> (i32, i32) {
    %c0_i32 = arith.constant 0 : i32
    %c0_i32_0 = arith.constant 0 : i32
    %c0_i32_1 = arith.constant 0 : i32
    return %c0_i32, %c0_i32_0 : i32, i32
  }
  func.func @transform_3(%arg0: i32) -> (i32, i32) {
    %c0_i32 = arith.constant 0 : i32
    %c0_i32_0 = arith.constant 0 : i32
    %c0_i32_1 = arith.constant 0 : i32
    return %c0_i32, %c0_i32_0 : i32, i32
  }
  func.func @transform_4(%arg0: i32) -> (i32, i32) {
    %c0_i32 = arith.constant 0 : i32
    %c0_i32_0 = arith.constant 0 : i32
    %c0_i32_1 = arith.constant 0 : i32
    return %c0_i32, %c0_i32_0 : i32, i32
  }
  func.func @transform_5(%arg0: i32) -> (i32, i32) {
    %c0_i32 = arith.constant 0 : i32
    %c0_i32_0 = arith.constant 0 : i32
    return %arg0, %c0_i32 : i32, i32
  }
  func.func @transform_6(%arg0: i32) -> (i32, i32) {
    %c0_i32 = arith.constant 0 : i32
    %c0_i32_0 = arith.constant 0 : i32
    return %arg0, %c0_i32 : i32, i32
  }
}

module attributes {stable_mosaic.version = 11 : i64} {
  func.func @_matmul_bias_kernel(%arg0: i32, %arg1: i32, %arg2: i32, %arg3: memref<2x32xf32, #tpu.memory_space<vmem>>, %arg4: memref<32x1xbf16, #tpu.memory_space<vmem>>, %arg5: memref<1x1xf32, #tpu.memory_space<vmem>>, %arg6: memref<2x1xf32, #tpu.memory_space<vmem>>, %arg7: memref<2x1xf32, #tpu.memory_space<vmem>>) attributes {dimension_semantics = [#tpu.dimension_semantics<parallel>, #tpu.dimension_semantics<parallel>, #tpu.dimension_semantics<arbitrary>], iteration_bounds = array<i64: 1, 1, 1>, scalar_prefetch = 0 : i64, scratch_operands = 1 : i64, tpu.core_type = #tpu.core_type<tc>, window_params = [{transform_indices = @transform_0, window_bounds = array<i64: 2, 32>}, {transform_indices = @transform_1, window_bounds = array<i64: 32, 1>}, {transform_indices = @transform_2, window_bounds = array<i64: 1, 1>}, {transform_indices = @transform_3, window_bounds = array<i64: 2, 1>}]} {
    %c0_i32 = arith.constant 0 : i32
    %0 = arith.cmpi eq, %arg2, %c0_i32 : i32
    %1 = arith.extui %0 : i1 to i32
    %c0_i32_0 = arith.constant 0 : i32
    %2 = arith.cmpi ne, %1, %c0_i32_0 : i32
    scf.if %2 {
      %cst_10 = arith.constant 0.000000e+00 : f32
      %13 = vector.broadcast %cst_10 : f32 to vector<2x1xf32>
      %c0_11 = arith.constant 0 : index
      %c0_12 = arith.constant 0 : index
      %14 = vector.load %arg7[%c0_11, %c0_12] : memref<2x1xf32, #tpu.memory_space<vmem>>, vector<2x1xf32>
      tpu.vector_store %arg7[%c0_11, %c0_12], %13 {strides = array<i32>} : memref<2x1xf32, #tpu.memory_space<vmem>>, vector<2x1xf32>,
    } else {
    }
    %c0 = arith.constant 0 : index
    %c0_1 = arith.constant 0 : index
    %3 = vector.load %arg7[%c0, %c0_1] : memref<2x1xf32, #tpu.memory_space<vmem>>, vector<2x1xf32>
    %c0_2 = arith.constant 0 : index
    %c0_3 = arith.constant 0 : index
    %4 = vector.load %arg3[%c0_2, %c0_3] : memref<2x32xf32, #tpu.memory_space<vmem>>, vector<2x32xf32>
    %5 = arith.truncf %4 : vector<2x32xf32> to vector<2x32xbf16>
    %c0_4 = arith.constant 0 : index
    %c0_5 = arith.constant 0 : index
    %6 = vector.load %arg4[%c0_4, %c0_5] : memref<32x1xbf16, #tpu.memory_space<vmem>>, vector<32x1xbf16>
    %cst = arith.constant dense<0.000000e+00> : vector<2x1xf32>
    %7 = tpu.matmul %5, %6, %cst {dimension_numbers = #tpu.dot_dimension_numbers<[1], [0], [0], [1], [0, 0, 1, 1], [], []>} : vector<2x32xbf16>, vector<32x1xbf16>, vector<2x1xf32> -> vector<2x1xf32>
    %8 = arith.addf %3, %7 : vector<2x1xf32>
    %c0_6 = arith.constant 0 : index
    %c0_7 = arith.constant 0 : index
    %9 = vector.load %arg7[%c0_6, %c0_7] : memref<2x1xf32, #tpu.memory_space<vmem>>, vector<2x1xf32>
    tpu.vector_store %arg7[%c0_6, %c0_7], %8 {strides = array<i32>} : memref<2x1xf32, #tpu.memory_space<vmem>>, vector<2x1xf32>,
    %c0_i32_8 = arith.constant 0 : i32
    %10 = arith.cmpi eq, %arg2, %c0_i32_8 : i32
    %11 = arith.extui %10 : i1 to i32
    %c0_i32_9 = arith.constant 0 : i32
    %12 = arith.cmpi ne, %11, %c0_i32_9 : i32
    scf.if %12 {
      %c0_10 = arith.constant 0 : index
      %c0_11 = arith.constant 0 : index
      %13 = vector.load %arg7[%c0_10, %c0_11] : memref<2x1xf32, #tpu.memory_space<vmem>>, vector<2x1xf32>
      %c0_12 = arith.constant 0 : index
      %c0_13 = arith.constant 0 : index
      %14 = vector.load %arg5[%c0_12, %c0_13] : memref<1x1xf32, #tpu.memory_space<vmem>>, vector<1x1xf32>
      %15 = vector.broadcast %14 : vector<1x1xf32> to vector<2x1xf32>
      %16 = arith.addf %13, %15 : vector<2x1xf32>
      %c0_14 = arith.constant 0 : index
      %c0_15 = arith.constant 0 : index
      %17 = vector.load %arg6[%c0_14, %c0_15] : memref<2x1xf32, #tpu.memory_space<vmem>>, vector<2x1xf32>
      tpu.vector_store %arg6[%c0_14, %c0_15], %16 {strides = array<i32>} : memref<2x1xf32, #tpu.memory_space<vmem>>, vector<2x1xf32>,
    } else {
    }
    return
  }
  func.func @transform_0(%arg0: i32, %arg1: i32, %arg2: i32) -> (i32, i32) {
    %c0_i32 = arith.constant 0 : i32
    return %arg0, %arg2 : i32, i32
  }
  func.func @transform_1(%arg0: i32, %arg1: i32, %arg2: i32) -> (i32, i32) {
    %c0_i32 = arith.constant 0 : i32
    return %arg2, %arg1 : i32, i32
  }
  func.func @transform_2(%arg0: i32, %arg1: i32, %arg2: i32) -> (i32, i32) {
    %c0_i32 = arith.constant 0 : i32
    %c0_i32_0 = arith.constant 0 : i32
    return %c0_i32, %arg1 : i32, i32
  }
  func.func @transform_3(%arg0: i32, %arg1: i32, %arg2: i32) -> (i32, i32) {
    %c0_i32 = arith.constant 0 : i32
    return %arg0, %arg1 : i32, i32
  }
}

</mosaic_0001>

<llo_original>
// kernel: forward.15
$region0: #{forward.15}
  #allocation0 [shape = 'u32[]', space=smem, size = 0x4, offset = 0x4, fixed_abs, tag = 'smem constant byte address 0x4 - core index']
  #allocation1 [shape = 'u32[144,128]{1,0:T(1,128)}', space=vmem, size = 0x12000, scoped, tag = 'internal scratch']
  %s0 = inlined_call_operand.vmem [shape: f32[16,32], index: 0, kind: input, shape index: {}]
  %s1 = inlined_call_operand.vmem [shape: f32[1,32], index: 1, kind: input, shape index: {}]
  %s2 = inlined_call_operand.vmem [shape: f32[1,32], index: 2, kind: input, shape index: {}]
  %s3 = inlined_call_operand.vmem [shape: bf16[32,64], index: 3, kind: input, shape index: {}]
  %s4 = inlined_call_operand.vmem [shape: bf16[32,64], index: 4, kind: input, shape index: {}]
  %s5 = inlined_call_operand.vmem [shape: f32[16,64], index: 5, kind: output, shape index: {0}]
  %s6 = inlined_call_operand.vmem [shape: f32[16,64], index: 6, kind: output, shape index: {1}]
  %s7 = inlined_call_operand.vmem [shape: f32[16,32], index: 7, kind: output, shape index: {2}]
  %8 = xla_tuple %s5, %s6, %s7
  %s9 = sld [smem:[#allocation0]]
  $region46: #{forward.15} parent=0
    _
  %s11 = ssub.s32 1, %s9
  %s12 = scalar_select 0, %s11, %s9
  // Predicated region
  $region2: #{forward.15} parent=0 // pred_check
    _
  $region3: #{forward.15} parent=0 // pred_check_branch
    %14 = sbr.rel (0) target = $region5
  $region4: #{forward.15} parent=0 // pred_region
    _
  $region5: #{forward.15} parent=0 // pred_fallthru
    _
  // Predicated region
  $region6: #{forward.15} parent=0 // pred_check
    _
  $region7: #{forward.15} parent=0 // pred_check_branch
    %16 = sbr.rel (0) target = $region9
  $region8: #{forward.15} parent=0 // pred_region
    _
  $region9: #{forward.15} parent=0 // pred_fallthru
    _
  // Predicated region
  $region10: #{forward.15} parent=0 // pred_check
    _
  $region11: #{forward.15} parent=0 // pred_check_branch
    %18 = sbr.rel (0) target = $region13
  $region12: #{forward.15} parent=0 // pred_region
    _
  $region13: #{forward.15} parent=0 // pred_fallthru
    _
  // Predicated region
  $region14: #{forward.15} parent=0 // pred_check
    _
  $region15: #{forward.15} parent=0 // pred_check_branch
    %20 = sbr.rel (0) target = $region17
  $region16: #{forward.15} parent=0 // pred_region
    _
  $region17: #{forward.15} parent=0 // pred_fallthru
    _
  // Predicated region
  $region18: #{forward.15} parent=0 // pred_check
    _
  $region19: #{forward.15} parent=0 // pred_check_branch
    %22 = sbr.rel (0) target = $region21
  $region20: #{forward.15} parent=0 // pred_region
    _
  $region21: #{forward.15} parent=0 // pred_fallthru
    _
  %v24 = vld [vmem:[%s0] sm:$0xff]
  %v25 = vld [vmem:[%s0 + $0x8] sm:$0xff]
  %v26 = vld [vmem:[%s1] sm:$0x1]
  %v27 = vld [vmem:[%s2] sm:$0x1]
  %vm28 = vcmask 261120
  %v29 = vsel %vm28, %v24, 0.0
  %30 = vadd.xlane.f32.xlu0 %v29
  %v31 = vpop.xlane.xlu0 %30
  %v32 = vsel %vm28, %v25, 0.0
  %33 = vadd.xlane.f32.xlu0 %v32
  %v34 = vpop.xlane.xlu0 %33
  %v35 = vrcp.pop 32.0
  %v36 = vmul.f32 %v31, %v35
  %v37 = vmul.f32 %v34, %v35
  %v38 = vsub.f32 %v24, %v36
  %v39 = vsub.f32 %v25, %v37
  %v40 = vmul.f32 %v38, %v38
  %v41 = vmul.f32 %v39, %v39
  %v42 = vsel %vm28, %v40, 0.0
  %43 = vadd.xlane.f32.xlu0 %v42
  %v44 = vpop.xlane.xlu0 %43
  %v45 = vsel %vm28, %v41, 0.0
  %46 = vadd.xlane.f32.xlu0 %v45
  %v47 = vpop.xlane.xlu0 %46
  %v48 = vmul.f32 %v44, %v35
  %v49 = vmul.f32 %v47, %v35
  %v50 = vadd.f32 %v48, 1e-05
  %v51 = vadd.f32 %v49, 1e-05
  %v52 = vrsqrt.pop %v50
  %v53 = vrsqrt.pop %v51
  %v54 = vmul.f32 %v38, %v52
  %v55 = vmul.f32 %v39, %v53
  %v57 = vlaneseq
  %v58 = vshrl.u32 %v57, 7
  %v59 = vsub.s32 0, %v58
  %v60 = vrot.slane %v26, %v59
  %v62 = vmul.f32 %v54, %v60
  %v63 = vmul.f32 %v55, %v60
  %v65 = vlaneseq
  %v66 = vshrl.u32 %v65, 7
  %v67 = vsub.s32 0, %v66
  %v68 = vrot.slane %v27, %v67
  %v70 = vadd.f32 %v62, %v68
  %v71 = vadd.f32 %v63, %v68
  %v72 = vpack.c.bf16 %v71, %v70
  %v73 = vld [vmem:[%s3] sm:$0xf]
  %v74 = vld [vmem:[%s3 + $0x4] sm:$0xf]
  %v75 = vld [vmem:[%s3 + $0x8] sm:$0xf]
  %v76 = vld [vmem:[%s3 + $0xc] sm:$0xf]
  %v81 = vunpack.c.l.b16 %v73
  %v82 = vunpack.c.l.b16 %v74
  %v83 = vunpack.c.l.b16 %v75
  %v84 = vunpack.c.l.b16 %v76
  %v85 = vpack.c.b16 %v82, %v81
  %v86 = vpack.c.b16 %v84, %v83
  %v90 = vsel %vm28, %v72, 0
  %92 = vmatprep.subr.bf16.mxu0 0
  %93 = vmatpush1.bf16.msra.mxu0 %v85
  %94 = vmatprep.subr.bf16.mxu0 0
  %95 = vmatpush1.bf16.msra.mxu0 %v86
  %96 = vmatprep.subr.bf16.mxu0 0
  %97 = vmatpush1.bf16.msra.mxu0 0
  %98 = vmatprep.subr.bf16.mxu0 0
  %99 = vmatpush1.bf16.msra.mxu0 0
  %100 = vmatprep.subr.bf16.mxu0 0
  %101 = vmatpush1.bf16.msra.mxu0 0
  %102 = vmatprep.subr.bf16.mxu0 0
  %103 = vmatpush1.bf16.msra.mxu0 0
  %104 = vmatprep.subr.bf16.mxu0 0
  %105 = vmatpush1.bf16.msra.mxu0 0
  %106 = vmatprep.subr.bf16.mxu0 0
  %107 = vmatpush1.bf16.msra.mxu0 0
  %108 = vmatprep.subr.bf16.mxu0 0
  %109 = vmatpush1.bf16.msra.mxu0 0
  %110 = vmatprep.subr.bf16.mxu0 0
  %111 = vmatpush1.bf16.msra.mxu0 0
  %112 = vmatprep.subr.bf16.mxu0 0
  %113 = vmatpush1.bf16.msra.mxu0 0
  %114 = vmatprep.subr.bf16.mxu0 0
  %115 = vmatpush1.bf16.msra.mxu0 0
  %116 = vmatprep.subr.bf16.mxu0 0
  %117 = vmatpush1.bf16.msra.mxu0 0
  %118 = vmatprep.subr.bf16.mxu0 0
  %119 = vmatpush1.bf16.msra.mxu0 0
  %120 = vmatprep.subr.bf16.mxu0 0
  %121 = vmatpush1.bf16.msra.mxu0 0
  %122 = vmatprep.subr.bf16.mxu0 0
  %123 = vmatpush1.bf16.msra.mxu0 0
  %124 = vmatprep.mubr.bf16.mxu0 0
  %125 = vmatmul.mubr.bf16.gmra.mrb[0].mxu0 %v90
  %v126 = vpop.f32.mrb[0].mxu0
  %v127 = vadd.f32 0.0, %v126
  %v128 = vpop.f32.mrb[0].mxu0
  %v129 = vpop.f32.mrb[0].mxu0
  %v130 = vadd.f32 0.0, %v129
  %v131 = vpop.f32.mrb[0].mxu0
  %132 = vdwg.mxu0
  %vm133 = vcmask 523264
  %134 = vst.msk [vmem:[%s5] sm:$0xff] %vm133, %v127
  %135 = vst.msk [vmem:[%s5 + $0x8] sm:$0xff] %vm133, %v130
  %v136 = vld [vmem:[%s4] sm:$0xf]
  %v137 = vld [vmem:[%s4 + $0x4] sm:$0xf]
  %v138 = vld [vmem:[%s4 + $0x8] sm:$0xf]
  %v139 = vld [vmem:[%s4 + $0xc] sm:$0xf]
  %v144 = vunpack.c.l.b16 %v136
  %v145 = vunpack.c.l.b16 %v137
  %v146 = vunpack.c.l.b16 %v138
  %v147 = vunpack.c.l.b16 %v139
  %v148 = vpack.c.b16 %v145, %v144
  %v149 = vpack.c.b16 %v147, %v146
  %152 = vmatprep.subr.bf16.mxu0 0
  %153 = vmatpush1.bf16.msra.mxu0 %v148
  %154 = vmatprep.subr.bf16.mxu0 0
  %155 = vmatpush1.bf16.msra.mxu0 %v149
  %156 = vmatprep.subr.bf16.mxu0 0
  %157 = vmatpush1.bf16.msra.mxu0 0
  %158 = vmatprep.subr.bf16.mxu0 0
  %159 = vmatpush1.bf16.msra.mxu0 0
  %160 = vmatprep.subr.bf16.mxu0 0
  %161 = vmatpush1.bf16.msra.mxu0 0
  %162 = vmatprep.subr.bf16.mxu0 0
  %163 = vmatpush1.bf16.msra.mxu0 0
  %164 = vmatprep.subr.bf16.mxu0 0
  %165 = vmatpush1.bf16.msra.mxu0 0
  %166 = vmatprep.subr.bf16.mxu0 0
  %167 = vmatpush1.bf16.msra.mxu0 0
  %168 = vmatprep.subr.bf16.mxu0 0
  %169 = vmatpush1.bf16.msra.mxu0 0
  %170 = vmatprep.subr.bf16.mxu0 0
  %171 = vmatpush1.bf16.msra.mxu0 0
  %172 = vmatprep.subr.bf16.mxu0 0
  %173 = vmatpush1.bf16.msra.mxu0 0
  %174 = vmatprep.subr.bf16.mxu0 0
  %175 = vmatpush1.bf16.msra.mxu0 0
  %176 = vmatprep.subr.bf16.mxu0 0
  %177 = vmatpush1.bf16.msra.mxu0 0
  %178 = vmatprep.subr.bf16.mxu0 0
  %179 = vmatpush1.bf16.msra.mxu0 0
  %180 = vmatprep.subr.bf16.mxu0 0
  %181 = vmatpush1.bf16.msra.mxu0 0
  %182 = vmatprep.subr.bf16.mxu0 0
  %183 = vmatpush1.bf16.msra.mxu0 0
  %184 = vmatprep.mubr.bf16.mxu0 0
  %185 = vmatmul.mubr.bf16.gmra.mrb[0].mxu0 %v90
  %v186 = vpop.f32.mrb[0].mxu0
  %v187 = vadd.f32 0.0, %v186
  %v188 = vpop.f32.mrb[0].mxu0
  %v189 = vpop.f32.mrb[0].mxu0
  %v190 = vadd.f32 0.0, %v189
  %v191 = vpop.f32.mrb[0].mxu0
  %192 = vdwg.mxu0
  %193 = vst.msk [vmem:[%s6] sm:$0xff] %vm133, %v187
  %194 = vst.msk [vmem:[%s6 + $0x8] sm:$0xff] %vm133, %v190
  %195 = vst.msk [vmem:[%s7] sm:$0xff] %vm28, %v24
  %196 = vst.msk [vmem:[%s7 + $0x8] sm:$0xff] %vm28, %v25
  // Predicated region
  $region22: #{forward.15} parent=0 // pred_check
    _
  $region23: #{forward.15} parent=0 // pred_check_branch
    %198 = sbr.rel (0) target = $region25
  $region24: #{forward.15} parent=0 // pred_region
    _
  $region25: #{forward.15} parent=0 // pred_fallthru
    _
  // Predicated region
  $region26: #{forward.15} parent=0 // pred_check
    _
  $region27: #{forward.15} parent=0 // pred_check_branch
    %200 = sbr.rel (0) target = $region29
  $region28: #{forward.15} parent=0 // pred_region
    _
  $region29: #{forward.15} parent=0 // pred_fallthru
    _
  // Predicated region
  $region30: #{forward.15} parent=0 // pred_check
    _
  $region31: #{forward.15} parent=0 // pred_check_branch
    %202 = sbr.rel (0) target = $region33
  $region32: #{forward.15} parent=0 // pred_region
    _
  $region33: #{forward.15} parent=0 // pred_fallthru
    _
  // Predicated region
  $region34: #{forward.15} parent=0 // pred_check
    _
  $region35: #{forward.15} parent=0 // pred_check_branch
    %204 = sbr.rel (0) target = $region37
  $region36: #{forward.15} parent=0 // pred_region
    _
  $region37: #{forward.15} parent=0 // pred_fallthru
    _
  // Predicated region
  $region38: #{forward.15} parent=0 // pred_check
    _
  $region39: #{forward.15} parent=0 // pred_check_branch
    %206 = sbr.rel (0) target = $region41
  $region40: #{forward.15} parent=0 // pred_region
    _
  $region41: #{forward.15} parent=0 // pred_fallthru
    _
  // Predicated region
  $region42: #{forward.15} parent=0 // pred_check
    _
  $region43: #{forward.15} parent=0 // pred_check_branch
    %208 = sbr.rel (0) target = $region45
  $region44: #{forward.15} parent=0 // pred_region
    _
  $region45: #{forward.15} parent=0 // pred_fallthru
    _

// kernel: forward.14
$region0: #{forward.14}
  #allocation0 [shape = 'u32[]', space=smem, size = 0x4, offset = 0x4, fixed_abs, tag = 'smem constant byte address 0x4 - core index']
  #allocation1 [shape = 'u32[144,128]{1,0:T(1,128)}', space=vmem, size = 0x12000, scoped, tag = 'internal scratch']
  #allocation2 [shape = 'f32[16,32]{1,0:T(8,128)}', space=vmem, size = 0x2000, scoped, tag = 'scratch operand']
  %s0 = inlined_call_operand.vmem [shape: f32[16,4], index: 0, kind: input, shape index: {}]
  %s1 = inlined_call_operand.vmem [shape: bf16[4,32], index: 1, kind: input, shape index: {}]
  %s2 = inlined_call_operand.vmem [shape: f32[1,32], index: 2, kind: input, shape index: {}]
  %s3 = inlined_call_operand.vmem [shape: f32[16,32], index: 3, kind: output, shape index: {}]
  %s4 = sld [smem:[#allocation0]]
  $region30: #{forward.14} parent=0
    _
  %s6 = ssub.s32 1, %s4
  %s7 = scalar_select 0, %s6, %s4
  // Predicated region
  $region2: #{forward.14} parent=0 // pred_check
    _
  $region3: #{forward.14} parent=0 // pred_check_branch
    %9 = sbr.rel (0) target = $region5
  $region4: #{forward.14} parent=0 // pred_region
    _
  $region5: #{forward.14} parent=0 // pred_fallthru
    _
  // Predicated region
  $region6: #{forward.14} parent=0 // pred_check
    _
  $region7: #{forward.14} parent=0 // pred_check_branch
    %11 = sbr.rel (0) target = $region9
  $region8: #{forward.14} parent=0 // pred_region
    _
  $region9: #{forward.14} parent=0 // pred_fallthru
    _
  // Predicated region
  $region10: #{forward.14} parent=0 // pred_check
    _
  $region11: #{forward.14} parent=0 // pred_check_branch
    %13 = sbr.rel (0) target = $region13
  $region12: #{forward.14} parent=0 // pred_region
    _
  $region13: #{forward.14} parent=0 // pred_fallthru
    _
  %p15 = scmp.eq.s32.totalorder 0, 0
  // Predicated region
  $region14: #{forward.14} parent=0 // pred_check
    %p16 = pneg %p15
  $region15: #{forward.14} parent=0 // pred_check_branch
    %18 = sbr.rel (%p16) target = $region17
  $region16: #{forward.14} parent=0 // pred_region
    %vm19 = vcmask 261120
    %20 = vst.msk [vmem:[#allocation2] sm:$0xff] %vm19, 0.0
    %21 = vst.msk [vmem:[#allocation2 + $0x8] sm:$0xff] %vm19, 0.0
  $region17: #{forward.14} parent=0 // pred_fallthru
    _
  %v22 = vld [vmem:[#allocation2] sm:$0xff]
  %v23 = vld [vmem:[#allocation2 + $0x8] sm:$0xff]
  %v24 = vld [vmem:[%s0] sm:$0xff]
  %v25 = vld [vmem:[%s0 + $0x8] sm:$0xff]
  %v26 = vpack.c.bf16 %v25, %v24
  %v27 = vld [vmem:[%s1] sm:$0x3]
  %vm28 = vcmask 31744
  %v30 = vsel %vm28, %v26, 0
  %vm32 = vcmask 1041408
  %v34 = vsel %vm32, %v27, 0
  %36 = vmatprep.subr.bf16.mxu0 0
  %37 = vmatpush1.bf16.msra.mxu0 %v34
  %38 = vmatprep.subr.bf16.mxu0 0
  %39 = vmatpush1.bf16.msra.mxu0 0
  %40 = vmatprep.subr.bf16.mxu0 0
  %41 = vmatpush1.bf16.msra.mxu0 0
  %42 = vmatprep.subr.bf16.mxu0 0
  %43 = vmatpush1.bf16.msra.mxu0 0
  %44 = vmatprep.subr.bf16.mxu0 0
  %45 = vmatpush1.bf16.msra.mxu0 0
  %46 = vmatprep.subr.bf16.mxu0 0
  %47 = vmatpush1.bf16.msra.mxu0 0
  %48 = vmatprep.subr.bf16.mxu0 0
  %49 = vmatpush1.bf16.msra.mxu0 0
  %50 = vmatprep.subr.bf16.mxu0 0
  %51 = vmatpush1.bf16.msra.mxu0 0
  %52 = vmatprep.subr.bf16.mxu0 0
  %53 = vmatpush1.bf16.msra.mxu0 0
  %54 = vmatprep.subr.bf16.mxu0 0
  %55 = vmatpush1.bf16.msra.mxu0 0
  %56 = vmatprep.subr.bf16.mxu0 0
  %57 = vmatpush1.bf16.msra.mxu0 0
  %58 = vmatprep.subr.bf16.mxu0 0
  %59 = vmatpush1.bf16.msra.mxu0 0
  %60 = vmatprep.subr.bf16.mxu0 0
  %61 = vmatpush1.bf16.msra.mxu0 0
  %62 = vmatprep.subr.bf16.mxu0 0
  %63 = vmatpush1.bf16.msra.mxu0 0
  %64 = vmatprep.subr.bf16.mxu0 0
  %65 = vmatpush1.bf16.msra.mxu0 0
  %66 = vmatprep.subr.bf16.mxu0 0
  %67 = vmatpush1.bf16.msra.mxu0 0
  %68 = vmatprep.mubr.bf16.mxu0 0
  %69 = vmatmul.mubr.bf16.gmra.mrb[0].mxu0 %v30
  %v70 = vpop.f32.mrb[0].mxu0
  %v71 = vadd.f32 0.0, %v70
  %v72 = vpop.f32.mrb[0].mxu0
  %v73 = vpop.f32.mrb[0].mxu0
  %v74 = vadd.f32 0.0, %v73
  %v75 = vpop.f32.mrb[0].mxu0
  %76 = vdwg.mxu0
  %v77 = vadd.f32 %v22, %v71
  %v78 = vadd.f32 %v23, %v74
  %vm79 = vcmask 261120
  %80 = vst.msk [vmem:[#allocation2] sm:$0xff] %vm79, %v77
  %81 = vst.msk [vmem:[#allocation2 + $0x8] sm:$0xff] %vm79, %v78
  // Predicated region
  $region18: #{forward.14} parent=0 // pred_check
    %p82 = pneg %p15
  $region19: #{forward.14} parent=0 // pred_check_branch
    %84 = sbr.rel (%p82) target = $region21
  $region20: #{forward.14} parent=0 // pred_region
    %v85 = vld [vmem:[#allocation2] sm:$0xff]
    %v86 = vld [vmem:[#allocation2 + $0x8] sm:$0xff]
    %v87 = vld [vmem:[%s2] sm:$0x1]
    %v89 = vlaneseq
    %v90 = vshrl.u32 %v89, 7
    %v91 = vsub.s32 0, %v90
    %v92 = vrot.slane %v87, %v91
    %v94 = vadd.f32 %v85, %v92
    %v95 = vadd.f32 %v86, %v92
    %96 = vst.msk [vmem:[%s3] sm:$0xff] %vm79, %v94
    %97 = vst.msk [vmem:[%s3 + $0x8] sm:$0xff] %vm79, %v95
  $region21: #{forward.14} parent=0 // pred_fallthru
    _
  // Predicated region
  $region22: #{forward.14} parent=0 // pred_check
    _
  $region23: #{forward.14} parent=0 // pred_check_branch
    %99 = sbr.rel (0) target = $region25
  $region24: #{forward.14} parent=0 // pred_region
    _
  $region25: #{forward.14} parent=0 // pred_fallthru
    _
  // Predicated region
  $region26: #{forward.14} parent=0 // pred_check
    _
  $region27: #{forward.14} parent=0 // pred_check_branch
    %101 = sbr.rel (0) target = $region29
  $region28: #{forward.14} parent=0 // pred_region
    _
  $region29: #{forward.14} parent=0 // pred_fallthru
    _

// kernel: forward.16
$region0: #{forward.16}
  #allocation0 [shape = 'u32[]', space=smem, size = 0x4, offset = 0x4, fixed_abs, tag = 'smem constant byte address 0x4 - core index']
  #allocation1 [shape = 'u32[144,128]{1,0:T(1,128)}', space=vmem, size = 0x12000, scoped, tag = 'internal scratch']
  %s0 = inlined_call_operand.vmem [shape: f32[2,8,64], index: 0, kind: input, shape index: {}]
  %s1 = inlined_call_operand.vmem [shape: f32[4,64], index: 1, kind: input, shape index: {}]
  %s2 = inlined_call_operand.vmem [shape: f32[1,64], index: 2, kind: input, shape index: {}]
  %s3 = inlined_call_operand.vmem [shape: f32[2,8,64], index: 3, kind: output, shape index: {}]
  %s4 = sld [smem:[#allocation0]]
  $region45: #{forward.16} parent=0
    _
  %s6 = ssub.s32 1, %s4
  %s7 = scalar_select 0, %s6, %s4
  loop: start=0, step=1, limit=4
  $region2: #{forward.16} parent=0 // loop_pre_header
    _
  $region3: #{forward.16} parent=0 // loop_header
    %s9 = sphi 0, %s13
    %p10 = scmp.ge.s32.totalorder %s9, 4
    %s19 = sphi 0, %s21
    %s22 = sphi 0, %s19
    %s23 = sphi 0, %s22
    %s39 = sphi 0, %s23
    %s43 = sphi 0, %s43
    %s45 = sphi 0, %s43
    %s46 = sphi 0, %s45
    %s60 = sphi 0, %s46
    %s64 = sphi 0, %s64
    %s66 = sphi 0, %s64
    %s67 = sphi 0, %s66
    %s81 = sphi 0, %s67
    %s87 = sphi 0, %s89
    %s90 = sphi 0, %s87
    %s91 = sphi 0, %s90
    %s107 = sphi 0, %s91
  $region4: #{forward.16} parent=0 // loop_header_branch
    %12 = sbr.rel (%p10) target = $region8
  $region5: #{forward.16} parent=0 // loop_body
    %s14 = ssub.s32 %s9, 1
    %s15 = ssub.s32 %s9, 2
    %s16 = sadd.s32 %s9, 1
    %s17 = ssub.s32 %s9, %s16
    %p18 = scmp.eq.s32.totalorder %s17, 0
    %s20 = sadd.s32 %s19, 1
    %s21 = scalar_select %p18, %s19, %s20
    %p24 = pneg %p18
    %p25 = scmp.eq.s32.totalorder %s9, 1
    %p26 = por %p24, %p25
    %p27 = scmp.ne.s32.totalorder %s19, %s22
    %p28 = scmp.eq.s32.totalorder %s9, 0
    %p29 = por %p27, %p28
    %p30 = scmp.ne.s32.totalorder %s19, %s22
    %p31 = scmp.eq.s32.totalorder %s14, 1
    %p32 = por %p30, %p31
    %p33 = scmp.ne.s32.totalorder %s22, %s23
    %p34 = scmp.eq.s32.totalorder %s14, 0
    %p35 = por %p33, %p34
    %p36 = scmp.ne.s32.totalorder %s22, %s23
    %p37 = scmp.eq.s32.totalorder %s15, 1
    %p38 = por %p36, %p37
    %p40 = scmp.ne.s32.totalorder %s23, %s39
    %p41 = scmp.eq.s32.totalorder %s15, 0
    %p42 = por %p40, %p41
    %s44 = sadd.s32 %s43, 1
    %p47 = scmp.eq.s32.totalorder %s9, 1
    %p48 = scmp.ne.s32.totalorder %s43, %s45
    %p49 = scmp.eq.s32.totalorder %s9, 0
    %p50 = por %p48, %p49
    %p51 = scmp.ne.s32.totalorder %s43, %s45
    %p52 = scmp.eq.s32.totalorder %s14, 1
    %p53 = por %p51, %p52
    %p54 = scmp.ne.s32.totalorder %s45, %s46
    %p55 = scmp.eq.s32.totalorder %s14, 0
    %p56 = por %p54, %p55
    %p57 = scmp.ne.s32.totalorder %s45, %s46
    %p58 = scmp.eq.s32.totalorder %s15, 1
    %p59 = por %p57, %p58
    %p61 = scmp.ne.s32.totalorder %s46, %s60
    %p62 = scmp.eq.s32.totalorder %s15, 0
    %p63 = por %p61, %p62
    %s65 = sadd.s32 %s64, 1
    %p68 = scmp.eq.s32.totalorder %s9, 1
    %p69 = scmp.ne.s32.totalorder %s64, %s66
    %p70 = scmp.eq.s32.totalorder %s9, 0
    %p71 = por %p69, %p70
    %p72 = scmp.ne.s32.totalorder %s64, %s66
    %p73 = scmp.eq.s32.totalorder %s14, 1
    %p74 = por %p72, %p73
    %p75 = scmp.ne.s32.totalorder %s66, %s67
    %p76 = scmp.eq.s32.totalorder %s14, 0
    %p77 = por %p75, %p76
    %p78 = scmp.ne.s32.totalorder %s66, %s67
    %p79 = scmp.eq.s32.totalorder %s15, 1
    %p80 = por %p78, %p79
    %p82 = scmp.ne.s32.totalorder %s67, %s81
    %p83 = scmp.eq.s32.totalorder %s15, 0
    %p84 = por %p82, %p83
    %s85 = ssub.s32 %s9, %s16
    %p86 = scmp.eq.s32.totalorder %s85, 0
    %s88 = sadd.s32 %s87, 1
    %s89 = scalar_select %p86, %s87, %s88
    %p92 = pneg %p86
    %p93 = scmp.eq.s32.totalorder %s9, 1
    %p94 = por %p92, %p93
    %p95 = scmp.ne.s32.totalorder %s87, %s90
    %p96 = scmp.eq.s32.totalorder %s9, 0
    %p97 = por %p95, %p96
    %p98 = scmp.ne.s32.totalorder %s87, %s90
    %p99 = scmp.eq.s32.totalorder %s14, 1
    %p100 = por %p98, %p99
    %p101 = scmp.ne.s32.totalorder %s90, %s91
    %p102 = scmp.eq.s32.totalorder %s14, 0
    %p103 = por %p101, %p102
    %p104 = scmp.ne.s32.totalorder %s90, %s91
    %p105 = scmp.eq.s32.totalorder %s15, 1
    %p106 = por %p104, %p105
    %p108 = scmp.ne.s32.totalorder %s91, %s107
    %p109 = scmp.eq.s32.totalorder %s15, 0
    %p110 = por %p108, %p109
    %p111 = scmp.le.s32.totalorder 1, %s9
    %p112 = scmp.lt.s32.totalorder %s9, 3
    %p113 = pnand %p111, %p112
    %p114 = pneg %p113
    // Predicated region
    $region9: #{forward.16} parent=5 // pred_check
      _
    $region10: #{forward.16} parent=5 // pred_check_branch
      %116 = sbr.rel (%p113) target = $region12
    $region11: #{forward.16} parent=5 // pred_region
      %s117 = ssub.s32 %s9, 1
      // Predicated region
      $region13: #{forward.16} parent=11 // pred_check
        %p118 = pneg %p56
      $region14: #{forward.16} parent=11 // pred_check_branch
        %120 = sbr.rel (%p118) target = $region16
      $region15: #{forward.16} parent=11 // pred_region
        _
      $region16: #{forward.16} parent=11 // pred_fallthru
        _
      // Predicated region
      $region17: #{forward.16} parent=11 // pred_check
        %p121 = pneg %p77
      $region18: #{forward.16} parent=11 // pred_check_branch
        %123 = sbr.rel (%p121) target = $region20
      $region19: #{forward.16} parent=11 // pred_region
        _
      $region20: #{forward.16} parent=11 // pred_fallthru
        _
    $region12: #{forward.16} parent=5 // pred_fallthru
      _
    %p124 = scmp.lt.s32.totalorder %s9, 2
    // Predicated region
    $region21: #{forward.16} parent=5 // pred_check
      %p125 = pneg %p124
    $region22: #{forward.16} parent=5 // pred_check_branch
      %127 = sbr.rel (%p125) target = $region24
    $region23: #{forward.16} parent=5 // pred_region
      // Predicated region
      $region25: #{forward.16} parent=23 // pred_check
        %p128 = pneg %p29
      $region26: #{forward.16} parent=23 // pred_check_branch
        %130 = sbr.rel (%p128) target = $region28
      $region27: #{forward.16} parent=23 // pred_region
        %p131 = scmp.lt.s32.totalorder %s9, 1
        %s132 = scalar_select %p131, %s9, 1
        %s133 = smul.addr %s132, 8
        %s134 = scalar_lea.vmem %s0, %s133
      $region28: #{forward.16} parent=23 // pred_fallthru
        _
    $region24: #{forward.16} parent=5 // pred_fallthru
      _
    %p135 = scmp.le.s32.totalorder 1, %s9
    %p136 = scmp.lt.s32.totalorder %s9, 3
    %p137 = pnand %p135, %p136
    %p138 = pneg %p137
    // Predicated region
    $region29: #{forward.16} parent=5 // pred_check
      _
    $region30: #{forward.16} parent=5 // pred_check_branch
      %140 = sbr.rel (%p137) target = $region32
    $region31: #{forward.16} parent=5 // pred_region
      %s141 = ssub.s32 %s9, 1
      %p142 = scmp.lt.s32.totalorder %s14, 1
      %s143 = scalar_select %p142, %s14, 1
      %s144 = smul.addr %s143, 8
      %s145 = scalar_lea.vmem %s0, %s144
      %p146 = pneg %p35
      %p147 = pneg %p32
      %p148 = pneg %p56
      %p149 = pneg %p53
      %p150 = pneg %p77
      %p151 = pneg %p74
      %p152 = pneg %p103
      %p153 = pneg %p100
      %p154 = scmp.lt.s32.totalorder %s14, 1
      %s155 = scalar_select %p154, %s14, 1
      %s156 = smul.addr %s155, 8
      %s157 = scalar_lea.vmem %s3, %s156
      %p158 = scmp.lt.s32.totalorder %s14, 1
      %s159 = scalar_select %p158, %s14, 1
      %s160 = smul.addr %s159, 8
      %s161 = scalar_lea.vmem %s0, %s160
      %p162 = scmp.lt.s32.totalorder %s14, 1
      %s163 = scalar_select %p162, %s14, 1
      %s164 = smul.addr %s163, 8
      %s165 = scalar_lea.vmem %s3, %s164
      %v166 = vld [vmem:[%s161] sm:$0xff]
      %v167 = vld [vmem:[%s2] sm:$0x1]
      %v168 = vld [vmem:[%s1 + $0x3] sm:$0x1]
      %v169 = vlaneseq
      %v170 = vshrl.u32 %v169, 7
      %v171 = vsub.s32 0, %v170
      %v172 = vrot.slane %v168, %v171
      %v173 = vmul.f32 %v166, %v172
      %v175 = vlaneseq
      %v176 = vshrl.u32 %v175, 7
      %v177 = vsub.s32 0, %v176
      %v178 = vrot.slane %v167, %v177
      %v180 = vadd.f32 %v178, %v173
      %v182 = vrot.slane %v166, 5
      %vm184 = vcmask 1042432
      %v185 = vsel %vm184, 0.0, %v182
      %v186 = vld [vmem:[%s1] sm:$0x1]
      %v187 = vlaneseq
      %v188 = vshrl.u32 %v187, 7
      %v189 = vsub.s32 0, %v188
      %v190 = vrot.slane %v186, %v189
      %v191 = vmul.f32 %v185, %v190
      %v192 = vadd.f32 %v180, %v191
      %v193 = vrot.slane %v166, 6
      %vm195 = vcmask 1041408
      %v196 = vsel %vm195, 0.0, %v193
      %v197 = vld [vmem:[%s1 + $0x1] sm:$0x1]
      %v198 = vlaneseq
      %v199 = vshrl.u32 %v198, 7
      %v200 = vsub.s32 0, %v199
      %v201 = vrot.slane %v197, %v200
      %v202 = vmul.f32 %v196, %v201
      %v203 = vadd.f32 %v192, %v202
      %v204 = vrot.slane %v166, 7
      %vm206 = vcmask 1040384
      %v207 = vsel %vm206, 0.0, %v204
      %v208 = vld [vmem:[%s1 + $0x2] sm:$0x1]
      %v209 = vlaneseq
      %v210 = vshrl.u32 %v209, 7
      %v211 = vsub.s32 0, %v210
      %v212 = vrot.slane %v208, %v211
      %v213 = vmul.f32 %v207, %v212
      %v214 = vadd.f32 %v203, %v213
      %v215 = vxor.u32 %v214, 2147483648
      %v216 = vmul.f32 %v215, 1.442695
      %v217 = vpow.pop %v216
      %v218 = vadd.f32 %v217, 1.0
      %v219 = vrcp.pop %v218
      %v220 = vmul.f32 1.0, %v219
      %v221 = vmul.f32 %v214, %v220
      %vm222 = vcmask 523264
      %223 = vst.msk [vmem:[%s165] sm:$0xff] %vm222, %v221
      %p224 = scmp.lt.s32.totalorder %s14, 1
      %s225 = scalar_select %p224, %s14, 1
      %s226 = smul.addr %s225, 8
      %s227 = scalar_lea.vmem %s3, %s226
      // Predicated region
      $region33: #{forward.16} parent=31 // pred_check
        %p228 = pneg %p100
      $region34: #{forward.16} parent=31 // pred_check_branch
        %230 = sbr.rel (%p228) target = $region36
      $region35: #{forward.16} parent=31 // pred_region
        _
      $region36: #{forward.16} parent=31 // pred_fallthru
        _
    $region32: #{forward.16} parent=5 // pred_fallthru
      _
    %p231 = scmp.le.s32.totalorder 2, %s9
    // Predicated region
    $region37: #{forward.16} parent=5 // pred_check
      %p232 = pneg %p231
    $region38: #{forward.16} parent=5 // pred_check_branch
      %234 = sbr.rel (%p232) target = $region40
    $region39: #{forward.16} parent=5 // pred_region
      %s235 = ssub.s32 %s9, 2
      // Predicated region
      $region41: #{forward.16} parent=39 // pred_check
        %p236 = pneg %p106
      $region42: #{forward.16} parent=39 // pred_check_branch
        %238 = sbr.rel (%p236) target = $region44
      $region43: #{forward.16} parent=39 // pred_region
        %p239 = scmp.lt.s32.totalorder %s15, 1
        %s240 = scalar_select %p239, %s15, 1
        %s241 = smul.addr %s240, 8
        %s242 = scalar_lea.vmem %s3, %s241
      $region44: #{forward.16} parent=39 // pred_fallthru
        _
    $region40: #{forward.16} parent=5 // pred_fallthru
      _
  $region6: #{forward.16} parent=0 // loop_footer
    %s13 = sadd.s32 1, %s9
  $region7: #{forward.16} parent=0 // loop_footer_branch
    %8 = sbr.rel target = $region3
  $region8: #{forward.16} parent=0 // loop_exit
    _

// kernel: forward.19
$region0: #{forward.19}
  #allocation0 [shape = 'u32[]', space=smem, size = 0x4, offset = 0x4, fixed_abs, tag = 'smem constant byte address 0x4 - core index']
  #allocation1 [shape = 'u32[144,128]{1,0:T(1,128)}', space=vmem, size = 0x12000, scoped, tag = 'internal scratch']
  %s0 = inlined_call_operand.vmem [shape: f32[16,64], index: 0, kind: input, shape index: {}]
  %s1 = inlined_call_operand.vmem [shape: f32[16,32], index: 1, kind: input, shape index: {}]
  %s2 = inlined_call_operand.vmem [shape: bf16[64,32], index: 2, kind: input, shape index: {}]
  %s3 = inlined_call_operand.vmem [shape: f32[1,32], index: 3, kind: input, shape index: {}]
  %s4 = inlined_call_operand.vmem [shape: f32[1,32], index: 4, kind: input, shape index: {}]
  %s5 = inlined_call_operand.vmem [shape: f32[16,32], index: 5, kind: output, shape index: {0}]
  %s6 = inlined_call_operand.vmem [shape: f32[16,32], index: 6, kind: output, shape index: {1}]
  %7 = xla_tuple %s5, %s6
  %s8 = sld [smem:[#allocation0]]
  $region38: #{forward.19} parent=0
    _
  %s10 = ssub.s32 1, %s8
  %s11 = scalar_select 0, %s10, %s8
  // Predicated region
  $region2: #{forward.19} parent=0 // pred_check
    _
  $region3: #{forward.19} parent=0 // pred_check_branch
    %13 = sbr.rel (0) target = $region5
  $region4: #{forward.19} parent=0 // pred_region
    _
  $region5: #{forward.19} parent=0 // pred_fallthru
    _
  // Predicated region
  $region6: #{forward.19} parent=0 // pred_check
    _
  $region7: #{forward.19} parent=0 // pred_check_branch
    %15 = sbr.rel (0) target = $region9
  $region8: #{forward.19} parent=0 // pred_region
    _
  $region9: #{forward.19} parent=0 // pred_fallthru
    _
  // Predicated region
  $region10: #{forward.19} parent=0 // pred_check
    _
  $region11: #{forward.19} parent=0 // pred_check_branch
    %17 = sbr.rel (0) target = $region13
  $region12: #{forward.19} parent=0 // pred_region
    _
  $region13: #{forward.19} parent=0 // pred_fallthru
    _
  // Predicated region
  $region14: #{forward.19} parent=0 // pred_check
    _
  $region15: #{forward.19} parent=0 // pred_check_branch
    %19 = sbr.rel (0) target = $region17
  $region16: #{forward.19} parent=0 // pred_region
    _
  $region17: #{forward.19} parent=0 // pred_fallthru
    _
  // Predicated region
  $region18: #{forward.19} parent=0 // pred_check
    _
  $region19: #{forward.19} parent=0 // pred_check_branch
    %21 = sbr.rel (0) target = $region21
  $region20: #{forward.19} parent=0 // pred_region
    _
  $region21: #{forward.19} parent=0 // pred_fallthru
    _
  %v23 = vld [vmem:[%s0] sm:$0xff]
  %v24 = vld [vmem:[%s0 + $0x8] sm:$0xff]
  %v25 = vpack.c.bf16 %v24, %v23
  %v26 = vld [vmem:[%s2] sm:$0xf]
  %v27 = vld [vmem:[%s2 + $0x4] sm:$0xf]
  %v28 = vld [vmem:[%s2 + $0x8] sm:$0xf]
  %v29 = vld [vmem:[%s2 + $0xc] sm:$0xf]
  %v30 = vld [vmem:[%s2 + $0x10] sm:$0xf]
  %v31 = vld [vmem:[%s2 + $0x14] sm:$0xf]
  %v32 = vld [vmem:[%s2 + $0x18] sm:$0xf]
  %v33 = vld [vmem:[%s2 + $0x1c] sm:$0xf]
  %v34 = vld [vmem:[%s1] sm:$0xff]
  %v35 = vld [vmem:[%s1 + $0x8] sm:$0xff]
  %v44 = vunpack.c.l.b16 %v26
  %v45 = vunpack.c.l.b16 %v27
  %v46 = vunpack.c.l.b16 %v28
  %v47 = vunpack.c.l.b16 %v29
  %v48 = vunpack.c.l.b16 %v30
  %v49 = vunpack.c.l.b16 %v31
  %v50 = vunpack.c.l.b16 %v32
  %v51 = vunpack.c.l.b16 %v33
  %v52 = vpack.c.b16 %v45, %v44
  %v53 = vpack.c.b16 %v47, %v46
  %v54 = vpack.c.b16 %v49, %v48
  %v55 = vpack.c.b16 %v51, %v50
  %vm60 = vcmask 523264
  %v62 = vsel %vm60, %v25, 0
  %64 = vmatprep.subr.bf16.mxu0 0
  %65 = vmatpush1.bf16.msra.mxu0 %v52
  %66 = vmatprep.subr.bf16.mxu0 0
  %67 = vmatpush1.bf16.msra.mxu0 %v53
  %68 = vmatprep.subr.bf16.mxu0 0
  %69 = vmatpush1.bf16.msra.mxu0 %v54
  %70 = vmatprep.subr.bf16.mxu0 0
  %71 = vmatpush1.bf16.msra.mxu0 %v55
  %72 = vmatprep.subr.bf16.mxu0 0
  %73 = vmatpush1.bf16.msra.mxu0 0
  %74 = vmatprep.subr.bf16.mxu0 0
  %75 = vmatpush1.bf16.msra.mxu0 0
  %76 = vmatprep.subr.bf16.mxu0 0
  %77 = vmatpush1.bf16.msra.mxu0 0
  %78 = vmatprep.subr.bf16.mxu0 0
  %79 = vmatpush1.bf16.msra.mxu0 0
  %80 = vmatprep.subr.bf16.mxu0 0
  %81 = vmatpush1.bf16.msra.mxu0 0
  %82 = vmatprep.subr.bf16.mxu0 0
  %83 = vmatpush1.bf16.msra.mxu0 0
  %84 = vmatprep.subr.bf16.mxu0 0
  %85 = vmatpush1.bf16.msra.mxu0 0
  %86 = vmatprep.subr.bf16.mxu0 0
  %87 = vmatpush1.bf16.msra.mxu0 0
  %88 = vmatprep.subr.bf16.mxu0 0
  %89 = vmatpush1.bf16.msra.mxu0 0
  %90 = vmatprep.subr.bf16.mxu0 0
  %91 = vmatpush1.bf16.msra.mxu0 0
  %92 = vmatprep.subr.bf16.mxu0 0
  %93 = vmatpush1.bf16.msra.mxu0 0
  %94 = vmatprep.subr.bf16.mxu0 0
  %95 = vmatpush1.bf16.msra.mxu0 0
  %96 = vmatprep.mubr.bf16.mxu0 0
  %97 = vmatmul.mubr.bf16.gmra.mrb[0].mxu0 %v62
  %v98 = vpop.f32.mrb[0].mxu0
  %v99 = vadd.f32 %v34, %v98
  %v100 = vpop.f32.mrb[0].mxu0
  %v101 = vpop.f32.mrb[0].mxu0
  %v102 = vadd.f32 %v35, %v101
  %v103 = vpop.f32.mrb[0].mxu0
  %104 = vdwg.mxu0
  %v105 = vld [vmem:[%s3] sm:$0x1]
  %v106 = vld [vmem:[%s4] sm:$0x1]
  %vm107 = vcmask 261120
  %v108 = vsel %vm107, %v99, 0.0
  %109 = vadd.xlane.f32.xlu0 %v108
  %v110 = vpop.xlane.xlu0 %109
  %v111 = vsel %vm107, %v102, 0.0
  %112 = vadd.xlane.f32.xlu0 %v111
  %v113 = vpop.xlane.xlu0 %112
  %v114 = vrcp.pop 32.0
  %v115 = vmul.f32 %v110, %v114
  %v116 = vmul.f32 %v113, %v114
  %v117 = vsub.f32 %v99, %v115
  %v118 = vsub.f32 %v102, %v116
  %v119 = vmul.f32 %v117, %v117
  %v120 = vmul.f32 %v118, %v118
  %v121 = vsel %vm107, %v119, 0.0
  %122 = vadd.xlane.f32.xlu0 %v121
  %v123 = vpop.xlane.xlu0 %122
  %v124 = vsel %vm107, %v120, 0.0
  %125 = vadd.xlane.f32.xlu0 %v124
  %v126 = vpop.xlane.xlu0 %125
  %v127 = vmul.f32 %v123, %v114
  %v128 = vmul.f32 %v126, %v114
  %v129 = vadd.f32 %v127, 1e-05
  %v130 = vadd.f32 %v128, 1e-05
  %v131 = vrsqrt.pop %v129
  %v132 = vrsqrt.pop %v130
  %v133 = vmul.f32 %v117, %v131
  %v134 = vmul.f32 %v118, %v132
  %v136 = vlaneseq
  %v137 = vshrl.u32 %v136, 7
  %v138 = vsub.s32 0, %v137
  %v139 = vrot.slane %v105, %v138
  %v141 = vmul.f32 %v133, %v139
  %v142 = vmul.f32 %v134, %v139
  %v144 = vlaneseq
  %v145 = vshrl.u32 %v144, 7
  %v146 = vsub.s32 0, %v145
  %v147 = vrot.slane %v106, %v146
  %v149 = vadd.f32 %v141, %v147
  %v150 = vadd.f32 %v142, %v147
  %151 = vst.msk [vmem:[%s5] sm:$0xff] %vm107, %v149
  %152 = vst.msk [vmem:[%s5 + $0x8] sm:$0xff] %vm107, %v150
  %153 = vst.msk [vmem:[%s6] sm:$0xff] %vm107, %v99
  %154 = vst.msk [vmem:[%s6 + $0x8] sm:$0xff] %vm107, %v102
  // Predicated region
  $region22: #{forward.19} parent=0 // pred_check
    _
  $region23: #{forward.19} parent=0 // pred_check_branch
    %156 = sbr.rel (0) target = $region25
  $region24: #{forward.19} parent=0 // pred_region
    _
  $region25: #{forward.19} parent=0 // pred_fallthru
    _
  // Predicated region
  $region26: #{forward.19} parent=0 // pred_check
    _
  $region27: #{forward.19} parent=0 // pred_check_branch
    %158 = sbr.rel (0) target = $region29
  $region28: #{forward.19} parent=0 // pred_region
    _
  $region29: #{forward.19} parent=0 // pred_fallthru
    _
  // Predicated region
  $region30: #{forward.19} parent=0 // pred_check
    _
  $region31: #{forward.19} parent=0 // pred_check_branch
    %160 = sbr.rel (0) target = $region33
  $region32: #{forward.19} parent=0 // pred_region
    _
  $region33: #{forward.19} parent=0 // pred_fallthru
    _
  // Predicated region
  $region34: #{forward.19} parent=0 // pred_check
    _
  $region35: #{forward.19} parent=0 // pred_check_branch
    %162 = sbr.rel (0) target = $region37
  $region36: #{forward.19} parent=0 // pred_region
    _
  $region37: #{forward.19} parent=0 // pred_fallthru
    _

// kernel: forward.20
$region0: #{forward.20}
  #allocation0 [shape = 'u32[]', space=smem, size = 0x4, offset = 0x4, fixed_abs, tag = 'smem constant byte address 0x4 - core index']
  #allocation1 [shape = 'u32[144,128]{1,0:T(1,128)}', space=vmem, size = 0x12000, scoped, tag = 'internal scratch']
  %s0 = inlined_call_operand.vmem [shape: f32[16,32], index: 0, kind: input, shape index: {}]
  %s1 = inlined_call_operand.vmem [shape: bf16[32,128], index: 1, kind: input, shape index: {}]
  %s2 = inlined_call_operand.vmem [shape: bf16[32,128], index: 2, kind: input, shape index: {}]
  %s3 = inlined_call_operand.vmem [shape: bf16[128,32], index: 3, kind: input, shape index: {}]
  %s4 = inlined_call_operand.vmem [shape: f32[16,32], index: 4, kind: output, shape index: {}]
  %s5 = sld [smem:[#allocation0]]
  $region26: #{forward.20} parent=0
    _
  %s7 = ssub.s32 1, %s5
  %s8 = scalar_select 0, %s7, %s5
  // Predicated region
  $region2: #{forward.20} parent=0 // pred_check
    _
  $region3: #{forward.20} parent=0 // pred_check_branch
    %10 = sbr.rel (0) target = $region5
  $region4: #{forward.20} parent=0 // pred_region
    _
  $region5: #{forward.20} parent=0 // pred_fallthru
    _
  // Predicated region
  $region6: #{forward.20} parent=0 // pred_check
    _
  $region7: #{forward.20} parent=0 // pred_check_branch
    %12 = sbr.rel (0) target = $region9
  $region8: #{forward.20} parent=0 // pred_region
    _
  $region9: #{forward.20} parent=0 // pred_fallthru
    _
  // Predicated region
  $region10: #{forward.20} parent=0 // pred_check
    _
  $region11: #{forward.20} parent=0 // pred_check_branch
    %14 = sbr.rel (0) target = $region13
  $region12: #{forward.20} parent=0 // pred_region
    _
  $region13: #{forward.20} parent=0 // pred_fallthru
    _
  // Predicated region
  $region14: #{forward.20} parent=0 // pred_check
    _
  $region15: #{forward.20} parent=0 // pred_check_branch
    %16 = sbr.rel (0) target = $region17
  $region16: #{forward.20} parent=0 // pred_region
    _
  $region17: #{forward.20} parent=0 // pred_fallthru
    _
  %v18 = vld [vmem:[%s0] sm:$0xff]
  %v19 = vld [vmem:[%s0 + $0x8] sm:$0xff]
  %v20 = vpack.c.bf16 %v19, %v18
  %v21 = vld [vmem:[%s1] sm:$0xf]
  %v22 = vld [vmem:[%s1 + $0x4] sm:$0xf]
  %v23 = vld [vmem:[%s1 + $0x8] sm:$0xf]
  %v24 = vld [vmem:[%s1 + $0xc] sm:$0xf]
  %v29 = vunpack.c.l.b16 %v21
  %v30 = vunpack.c.l.b16 %v22
  %v31 = vunpack.c.l.b16 %v23
  %v32 = vunpack.c.l.b16 %v24
  %v33 = vpack.c.b16 %v30, %v29
  %v34 = vpack.c.b16 %v32, %v31
  %vm37 = vcmask 261120
  %v39 = vsel %vm37, %v20, 0
  %41 = vmatprep.subr.bf16.mxu0 0
  %42 = vmatpush1.bf16.msra.mxu0 %v33
  %43 = vmatprep.subr.bf16.mxu0 0
  %44 = vmatpush1.bf16.msra.mxu0 %v34
  %45 = vmatprep.subr.bf16.mxu0 0
  %46 = vmatpush1.bf16.msra.mxu0 0
  %47 = vmatprep.subr.bf16.mxu0 0
  %48 = vmatpush1.bf16.msra.mxu0 0
  %49 = vmatprep.subr.bf16.mxu0 0
  %50 = vmatpush1.bf16.msra.mxu0 0
  %51 = vmatprep.subr.bf16.mxu0 0
  %52 = vmatpush1.bf16.msra.mxu0 0
  %53 = vmatprep.subr.bf16.mxu0 0
  %54 = vmatpush1.bf16.msra.mxu0 0
  %55 = vmatprep.subr.bf16.mxu0 0
  %56 = vmatpush1.bf16.msra.mxu0 0
  %57 = vmatprep.subr.bf16.mxu0 0
  %58 = vmatpush1.bf16.msra.mxu0 0
  %59 = vmatprep.subr.bf16.mxu0 0
  %60 = vmatpush1.bf16.msra.mxu0 0
  %61 = vmatprep.subr.bf16.mxu0 0
  %62 = vmatpush1.bf16.msra.mxu0 0
  %63 = vmatprep.subr.bf16.mxu0 0
  %64 = vmatpush1.bf16.msra.mxu0 0
  %65 = vmatprep.subr.bf16.mxu0 0
  %66 = vmatpush1.bf16.msra.mxu0 0
  %67 = vmatprep.subr.bf16.mxu0 0
  %68 = vmatpush1.bf16.msra.mxu0 0
  %69 = vmatprep.subr.bf16.mxu0 0
  %70 = vmatpush1.bf16.msra.mxu0 0
  %71 = vmatprep.subr.bf16.mxu0 0
  %72 = vmatpush1.bf16.msra.mxu0 0
  %73 = vmatprep.mubr.bf16.mxu0 0
  %74 = vmatmul.mubr.bf16.gmra.mrb[0].mxu0 %v39
  %v75 = vpop.f32.mrb[0].mxu0
  %v76 = vadd.f32 0.0, %v75
  %v77 = vpop.f32.mrb[0].mxu0
  %v78 = vpop.f32.mrb[0].mxu0
  %v79 = vadd.f32 0.0, %v78
  %v80 = vpop.f32.mrb[0].mxu0
  %81 = vdwg.mxu0
  %v82 = vld [vmem:[%s2] sm:$0xf]
  %v83 = vld [vmem:[%s2 + $0x4] sm:$0xf]
  %v84 = vld [vmem:[%s2 + $0x8] sm:$0xf]
  %v85 = vld [vmem:[%s2 + $0xc] sm:$0xf]
  %v90 = vunpack.c.l.b16 %v82
  %v91 = vunpack.c.l.b16 %v83
  %v92 = vunpack.c.l.b16 %v84
  %v93 = vunpack.c.l.b16 %v85
  %v94 = vpack.c.b16 %v91, %v90
  %v95 = vpack.c.b16 %v93, %v92
  %98 = vmatprep.subr.bf16.mxu0 0
  %99 = vmatpush1.bf16.msra.mxu0 %v94
  %100 = vmatprep.subr.bf16.mxu0 0
  %101 = vmatpush1.bf16.msra.mxu0 %v95
  %102 = vmatprep.subr.bf16.mxu0 0
  %103 = vmatpush1.bf16.msra.mxu0 0
  %104 = vmatprep.subr.bf16.mxu0 0
  %105 = vmatpush1.bf16.msra.mxu0 0
  %106 = vmatprep.subr.bf16.mxu0 0
  %107 = vmatpush1.bf16.msra.mxu0 0
  %108 = vmatprep.subr.bf16.mxu0 0
  %109 = vmatpush1.bf16.msra.mxu0 0
  %110 = vmatprep.subr.bf16.mxu0 0
  %111 = vmatpush1.bf16.msra.mxu0 0
  %112 = vmatprep.subr.bf16.mxu0 0
  %113 = vmatpush1.bf16.msra.mxu0 0
  %114 = vmatprep.subr.bf16.mxu0 0
  %115 = vmatpush1.bf16.msra.mxu0 0
  %116 = vmatprep.subr.bf16.mxu0 0
  %117 = vmatpush1.bf16.msra.mxu0 0
  %118 = vmatprep.subr.bf16.mxu0 0
  %119 = vmatpush1.bf16.msra.mxu0 0
  %120 = vmatprep.subr.bf16.mxu0 0
  %121 = vmatpush1.bf16.msra.mxu0 0
  %122 = vmatprep.subr.bf16.mxu0 0
  %123 = vmatpush1.bf16.msra.mxu0 0
  %124 = vmatprep.subr.bf16.mxu0 0
  %125 = vmatpush1.bf16.msra.mxu0 0
  %126 = vmatprep.subr.bf16.mxu0 0
  %127 = vmatpush1.bf16.msra.mxu0 0
  %128 = vmatprep.subr.bf16.mxu0 0
  %129 = vmatpush1.bf16.msra.mxu0 0
  %130 = vmatprep.mubr.bf16.mxu0 0
  %131 = vmatmul.mubr.bf16.gmra.mrb[0].mxu0 %v39
  %v132 = vpop.f32.mrb[0].mxu0
  %v133 = vadd.f32 0.0, %v132
  %v134 = vpop.f32.mrb[0].mxu0
  %v135 = vpop.f32.mrb[0].mxu0
  %v136 = vadd.f32 0.0, %v135
  %v137 = vpop.f32.mrb[0].mxu0
  %138 = vdwg.mxu0
  %v139 = vxor.u32 %v133, 2147483648
  %v140 = vxor.u32 %v136, 2147483648
  %v141 = vmul.f32 %v139, 1.442695
  %v142 = vpow.pop %v141
  %v143 = vmul.f32 %v140, 1.442695
  %v144 = vpow.pop %v143
  %v145 = vadd.f32 %v142, 1.0
  %v146 = vadd.f32 %v144, 1.0
  %v147 = vrcp.pop %v145
  %v148 = vmul.f32 1.0, %v147
  %v149 = vrcp.pop %v146
  %v150 = vmul.f32 1.0, %v149
  %v151 = vmul.f32 %v133, %v148
  %v152 = vmul.f32 %v136, %v150
  %v153 = vmul.f32 %v76, %v151
  %v154 = vmul.f32 %v79, %v152
  %v155 = vpack.c.bf16 %v154, %v153
  %v156 = vld [vmem:[%s3] sm:$0xf]
  %v157 = vld [vmem:[%s3 + $0x4] sm:$0xf]
  %v158 = vld [vmem:[%s3 + $0x8] sm:$0xf]
  %v159 = vld [vmem:[%s3 + $0xc] sm:$0xf]
  %v160 = vld [vmem:[%s3 + $0x10] sm:$0xf]
  %v161 = vld [vmem:[%s3 + $0x14] sm:$0xf]
  %v162 = vld [vmem:[%s3 + $0x18] sm:$0xf]
  %v163 = vld [vmem:[%s3 + $0x1c] sm:$0xf]
  %v164 = vld [vmem:[%s3 + $0x20] sm:$0xf]
  %v165 = vld [vmem:[%s3 + $0x24] sm:$0xf]
  %v166 = vld [vmem:[%s3 + $0x28] sm:$0xf]
  %v167 = vld [vmem:[%s3 + $0x2c] sm:$0xf]
  %v168 = vld [vmem:[%s3 + $0x30] sm:$0xf]
  %v169 = vld [vmem:[%s3 + $0x34] sm:$0xf]
  %v170 = vld [vmem:[%s3 + $0x38] sm:$0xf]
  %v171 = vld [vmem:[%s3 + $0x3c] sm:$0xf]
  %v188 = vunpack.c.l.b16 %v156
  %v189 = vunpack.c.l.b16 %v157
  %v190 = vunpack.c.l.b16 %v158
  %v191 = vunpack.c.l.b16 %v159
  %v192 = vunpack.c.l.b16 %v160
  %v193 = vunpack.c.l.b16 %v161
  %v194 = vunpack.c.l.b16 %v162
  %v195 = vunpack.c.l.b16 %v163
  %v196 = vunpack.c.l.b16 %v164
  %v197 = vunpack.c.l.b16 %v165
  %v198 = vunpack.c.l.b16 %v166
  %v199 = vunpack.c.l.b16 %v167
  %v200 = vunpack.c.l.b16 %v168
  %v201 = vunpack.c.l.b16 %v169
  %v202 = vunpack.c.l.b16 %v170
  %v203 = vunpack.c.l.b16 %v171
  %v204 = vpack.c.b16 %v189, %v188
  %v205 = vpack.c.b16 %v191, %v190
  %v206 = vpack.c.b16 %v193, %v192
  %v207 = vpack.c.b16 %v195, %v194
  %v208 = vpack.c.b16 %v197, %v196
  %v209 = vpack.c.b16 %v199, %v198
  %v210 = vpack.c.b16 %v201, %v200
  %v211 = vpack.c.b16 %v203, %v202
  %220 = vmatprep.subr.bf16.mxu0 0
  %221 = vmatpush1.bf16.msra.mxu0 %v204
  %222 = vmatprep.subr.bf16.mxu0 0
  %223 = vmatpush1.bf16.msra.mxu0 %v205
  %224 = vmatprep.subr.bf16.mxu0 0
  %225 = vmatpush1.bf16.msra.mxu0 %v206
  %226 = vmatprep.subr.bf16.mxu0 0
  %227 = vmatpush1.bf16.msra.mxu0 %v207
  %228 = vmatprep.subr.bf16.mxu0 0
  %229 = vmatpush1.bf16.msra.mxu0 %v208
  %230 = vmatprep.subr.bf16.mxu0 0
  %231 = vmatpush1.bf16.msra.mxu0 %v209
  %232 = vmatprep.subr.bf16.mxu0 0
  %233 = vmatpush1.bf16.msra.mxu0 %v210
  %234 = vmatprep.subr.bf16.mxu0 0
  %235 = vmatpush1.bf16.msra.mxu0 %v211
  %236 = vmatprep.subr.bf16.mxu0 0
  %237 = vmatpush1.bf16.msra.mxu0 0
  %238 = vmatprep.subr.bf16.mxu0 0
  %239 = vmatpush1.bf16.msra.mxu0 0
  %240 = vmatprep.subr.bf16.mxu0 0
  %241 = vmatpush1.bf16.msra.mxu0 0
  %242 = vmatprep.subr.bf16.mxu0 0
  %243 = vmatpush1.bf16.msra.mxu0 0
  %244 = vmatprep.subr.bf16.mxu0 0
  %245 = vmatpush1.bf16.msra.mxu0 0
  %246 = vmatprep.subr.bf16.mxu0 0
  %247 = vmatpush1.bf16.msra.mxu0 0
  %248 = vmatprep.subr.bf16.mxu0 0
  %249 = vmatpush1.bf16.msra.mxu0 0
  %250 = vmatprep.subr.bf16.mxu0 0
  %251 = vmatpush1.bf16.msra.mxu0 0
  %252 = vmatprep.mubr.bf16.mxu0 0
  %253 = vmatmul.mubr.bf16.gmra.mrb[0].mxu0 %v155
  %v254 = vpop.f32.mrb[0].mxu0
  %v255 = vadd.f32 0.0, %v254
  %v256 = vpop.f32.mrb[0].mxu0
  %v257 = vpop.f32.mrb[0].mxu0
  %v258 = vadd.f32 0.0, %v257
  %v259 = vpop.f32.mrb[0].mxu0
  %260 = vdwg.mxu0
  %261 = vst.msk [vmem:[%s4] sm:$0xff] %vm37, %v255
  %262 = vst.msk [vmem:[%s4 + $0x8] sm:$0xff] %vm37, %v258
  // Predicated region
  $region18: #{forward.20} parent=0 // pred_check
    _
  $region19: #{forward.20} parent=0 // pred_check_branch
    %264 = sbr.rel (0) target = $region21
  $region20: #{forward.20} parent=0 // pred_region
    _
  $region21: #{forward.20} parent=0 // pred_fallthru
    _
  // Predicated region
  $region22: #{forward.20} parent=0 // pred_check
    _
  $region23: #{forward.20} parent=0 // pred_check_branch
    %266 = sbr.rel (0) target = $region25
  $region24: #{forward.20} parent=0 // pred_region
    _
  $region25: #{forward.20} parent=0 // pred_fallthru
    _

// kernel: forward.17
$region0: #{forward.17}
  #allocation0 [shape = 'u32[]', space=smem, size = 0x4, offset = 0x4, fixed_abs, tag = 'smem constant byte address 0x4 - core index']
  #allocation1 [shape = 'u32[144,128]{1,0:T(1,128)}', space=vmem, size = 0x12000, scoped, tag = 'internal scratch']
  %s0 = inlined_call_operand.vmem [shape: f32[16,64], index: 0, kind: input, shape index: {}]
  %s1 = inlined_call_operand.vmem [shape: bf16[64,2], index: 1, kind: input, shape index: {}]
  %s2 = inlined_call_operand.vmem [shape: bf16[64,16], index: 2, kind: input, shape index: {}]
  %s3 = inlined_call_operand.vmem [shape: bf16[64,16], index: 3, kind: input, shape index: {}]
  %s4 = inlined_call_operand.vmem [shape: f32[2,64], index: 4, kind: input, shape index: {}]
  %s5 = inlined_call_operand.vmem [shape: f32[1,64], index: 5, kind: input, shape index: {}]
  %s6 = inlined_call_operand.vmem [shape: f32[16,64], index: 6, kind: output, shape index: {0}]
  %s7 = inlined_call_operand.vmem [shape: f32[16,16], index: 7, kind: output, shape index: {1}]
  %s8 = inlined_call_operand.vmem [shape: f32[16,16], index: 8, kind: output, shape index: {2}]
  %9 = xla_tuple %s6, %s7, %s8
  %s10 = sld [smem:[#allocation0]]
  $region50: #{forward.17} parent=0
    _
  %s12 = ssub.s32 1, %s10
  %s13 = scalar_select 0, %s12, %s10
  // Predicated region
  $region2: #{forward.17} parent=0 // pred_check
    _
  $region3: #{forward.17} parent=0 // pred_check_branch
    %15 = sbr.rel (0) target = $region5
  $region4: #{forward.17} parent=0 // pred_region
    _
  $region5: #{forward.17} parent=0 // pred_fallthru
    _
  // Predicated region
  $region6: #{forward.17} parent=0 // pred_check
    _
  $region7: #{forward.17} parent=0 // pred_check_branch
    %17 = sbr.rel (0) target = $region9
  $region8: #{forward.17} parent=0 // pred_region
    _
  $region9: #{forward.17} parent=0 // pred_fallthru
    _
  // Predicated region
  $region10: #{forward.17} parent=0 // pred_check
    _
  $region11: #{forward.17} parent=0 // pred_check_branch
    %19 = sbr.rel (0) target = $region13
  $region12: #{forward.17} parent=0 // pred_region
    _
  $region13: #{forward.17} parent=0 // pred_fallthru
    _
  // Predicated region
  $region14: #{forward.17} parent=0 // pred_check
    _
  $region15: #{forward.17} parent=0 // pred_check_branch
    %21 = sbr.rel (0) target = $region17
  $region16: #{forward.17} parent=0 // pred_region
    _
  $region17: #{forward.17} parent=0 // pred_fallthru
    _
  // Predicated region
  $region18: #{forward.17} parent=0 // pred_check
    _
  $region19: #{forward.17} parent=0 // pred_check_branch
    %23 = sbr.rel (0) target = $region21
  $region20: #{forward.17} parent=0 // pred_region
    _
  $region21: #{forward.17} parent=0 // pred_fallthru
    _
  // Predicated region
  $region22: #{forward.17} parent=0 // pred_check
    _
  $region23: #{forward.17} parent=0 // pred_check_branch
    %25 = sbr.rel (0) target = $region25
  $region24: #{forward.17} parent=0 // pred_region
    _
  $region25: #{forward.17} parent=0 // pred_fallthru
    _
  %v27 = vld [vmem:[%s0] sm:$0xff]
  %v28 = vld [vmem:[%s0 + $0x8] sm:$0xff]
  %v29 = vpack.c.bf16 %v28, %v27
  %v30 = vld [vmem:[%s1] sm:$0xf]
  %v31 = vld [vmem:[%s1 + $0x4] sm:$0xf]
  %v32 = vld [vmem:[%s1 + $0x8] sm:$0xf]
  %v33 = vld [vmem:[%s1 + $0xc] sm:$0xf]
  %v34 = vld [vmem:[%s1 + $0x10] sm:$0xf]
  %v35 = vld [vmem:[%s1 + $0x14] sm:$0xf]
  %v36 = vld [vmem:[%s1 + $0x18] sm:$0xf]
  %v37 = vld [vmem:[%s1 + $0x1c] sm:$0xf]
  %v46 = vunpack.c.l.b16 %v30
  %v47 = vunpack.c.l.b16 %v31
  %v48 = vunpack.c.l.b16 %v32
  %v49 = vunpack.c.l.b16 %v33
  %v50 = vunpack.c.l.b16 %v34
  %v51 = vunpack.c.l.b16 %v35
  %v52 = vunpack.c.l.b16 %v36
  %v53 = vunpack.c.l.b16 %v37
  %v54 = vpack.c.b16 %v47, %v46
  %v55 = vpack.c.b16 %v49, %v48
  %v56 = vpack.c.b16 %v51, %v50
  %v57 = vpack.c.b16 %v53, %v52
  %vm62 = vcmask 523264
  %v64 = vsel %vm62, %v29, 0
  %66 = vmatprep.subr.bf16.mxu0 0
  %67 = vmatpush1.bf16.msra.mxu0 %v54
  %68 = vmatprep.subr.bf16.mxu0 0
  %69 = vmatpush1.bf16.msra.mxu0 %v55
  %70 = vmatprep.subr.bf16.mxu0 0
  %71 = vmatpush1.bf16.msra.mxu0 %v56
  %72 = vmatprep.subr.bf16.mxu0 0
  %73 = vmatpush1.bf16.msra.mxu0 %v57
  %74 = vmatprep.subr.bf16.mxu0 0
  %75 = vmatpush1.bf16.msra.mxu0 0
  %76 = vmatprep.subr.bf16.mxu0 0
  %77 = vmatpush1.bf16.msra.mxu0 0
  %78 = vmatprep.subr.bf16.mxu0 0
  %79 = vmatpush1.bf16.msra.mxu0 0
  %80 = vmatprep.subr.bf16.mxu0 0
  %81 = vmatpush1.bf16.msra.mxu0 0
  %82 = vmatprep.subr.bf16.mxu0 0
  %83 = vmatpush1.bf16.msra.mxu0 0
  %84 = vmatprep.subr.bf16.mxu0 0
  %85 = vmatpush1.bf16.msra.mxu0 0
  %86 = vmatprep.subr.bf16.mxu0 0
  %87 = vmatpush1.bf16.msra.mxu0 0
  %88 = vmatprep.subr.bf16.mxu0 0
  %89 = vmatpush1.bf16.msra.mxu0 0
  %90 = vmatprep.subr.bf16.mxu0 0
  %91 = vmatpush1.bf16.msra.mxu0 0
  %92 = vmatprep.subr.bf16.mxu0 0
  %93 = vmatpush1.bf16.msra.mxu0 0
  %94 = vmatprep.subr.bf16.mxu0 0
  %95 = vmatpush1.bf16.msra.mxu0 0
  %96 = vmatprep.subr.bf16.mxu0 0
  %97 = vmatpush1.bf16.msra.mxu0 0
  %98 = vmatprep.mubr.bf16.mxu0 0
  %99 = vmatmul.mubr.bf16.gmra.mrb[0].mxu0 %v64
  %v100 = vpop.f32.mrb[0].mxu0
  %v101 = vadd.f32 0.0, %v100
  %v102 = vpop.f32.mrb[0].mxu0
  %v103 = vpop.f32.mrb[0].mxu0
  %v104 = vadd.f32 0.0, %v103
  %v105 = vpop.f32.mrb[0].mxu0
  %106 = vdwg.mxu0
  %v107 = vld [vmem:[%s4] sm:$0x3]
  %v108 = vld [vmem:[%s5] sm:$0x1]
  %v110 = vlaneseq
  %v111 = vshrl.u32 %v110, 7
  %v112 = vsub.s32 0, %v111
  %v113 = vrot.slane %v108, %v112
  %vm115 = vcmask 15360
  %v117 = vsel %vm115, %v101, 0
  %v120 = vsel %vm115, %v104, 0
  %vm122 = vcmask 1041408
  %v124 = vsel %vm122, %v107, 0
  %126 = vmatprep.subr.mxu0 0.0
  %127 = vmatpush1.msra.mxu0 %v124
  %128 = vmatprep.subr.mxu0 0.0
  %129 = vmatpush1.msra.mxu0 0.0
  %130 = vmatprep.subr.mxu0 0.0
  %131 = vmatpush1.msra.mxu0 0.0
  %132 = vmatprep.subr.mxu0 0.0
  %133 = vmatpush1.msra.mxu0 0.0
  %134 = vmatprep.subr.mxu0 0.0
  %135 = vmatpush1.msra.mxu0 0.0
  %136 = vmatprep.subr.mxu0 0.0
  %137 = vmatpush1.msra.mxu0 0.0
  %138 = vmatprep.subr.mxu0 0.0
  %139 = vmatpush1.msra.mxu0 0.0
  %140 = vmatprep.subr.mxu0 0.0
  %141 = vmatpush1.msra.mxu0 0.0
  %142 = vmatprep.subr.mxu0 0.0
  %143 = vmatpush1.msra.mxu0 0.0
  %144 = vmatprep.subr.mxu0 0.0
  %145 = vmatpush1.msra.mxu0 0.0
  %146 = vmatprep.subr.mxu0 0.0
  %147 = vmatpush1.msra.mxu0 0.0
  %148 = vmatprep.subr.mxu0 0.0
  %149 = vmatpush1.msra.mxu0 0.0
  %150 = vmatprep.subr.mxu0 0.0
  %151 = vmatpush1.msra.mxu0 0.0
  %152 = vmatprep.subr.mxu0 0.0
  %153 = vmatpush1.msra.mxu0 0.0
  %154 = vmatprep.subr.mxu0 0.0
  %155 = vmatpush1.msra.mxu0 0.0
  %156 = vmatprep.subr.mxu0 0.0
  %157 = vmatpush1.msra.mxu0 0.0
  %158 = vmatprep.subr.mxu0 0.0
  %159 = vmatpush1.msra.mxu0 0.0
  %160 = vmatprep.subr.mxu0 0.0
  %161 = vmatpush1.msra.mxu0 0.0
  %162 = vmatprep.subr.mxu0 0.0
  %163 = vmatpush1.msra.mxu0 0.0
  %164 = vmatprep.subr.mxu0 0.0
  %165 = vmatpush1.msra.mxu0 0.0
  %166 = vmatprep.subr.mxu0 0.0
  %167 = vmatpush1.msra.mxu0 0.0
  %168 = vmatprep.subr.mxu0 0.0
  %169 = vmatpush1.msra.mxu0 0.0
  %170 = vmatprep.subr.mxu0 0.0
  %171 = vmatpush1.msra.mxu0 0.0
  %172 = vmatprep.subr.mxu0 0.0
  %173 = vmatpush1.msra.mxu0 0.0
  %174 = vmatprep.subr.mxu0 0.0
  %175 = vmatpush1.msra.mxu0 0.0
  %176 = vmatprep.subr.mxu0 0.0
  %177 = vmatpush1.msra.mxu0 0.0
  %178 = vmatprep.subr.mxu0 0.0
  %179 = vmatpush1.msra.mxu0 0.0
  %180 = vmatprep.subr.mxu0 0.0
  %181 = vmatpush1.msra.mxu0 0.0
  %182 = vmatprep.subr.mxu0 0.0
  %183 = vmatpush1.msra.mxu0 0.0
  %184 = vmatprep.subr.mxu0 0.0
  %185 = vmatpush1.msra.mxu0 0.0
  %186 = vmatprep.subr.mxu0 0.0
  %187 = vmatpush1.msra.mxu0 0.0
  %188 = vmatprep.subr.mxu0 0.0
  %189 = vmatpush1.msra.mxu0 0.0
  %190 = vmatprep.mubr.f32.mxu0 0.0
  %191 = vmatmul.mubr.f32.gmra.mrb[0].mxu0 %v117
  %v192 = vpop.f32.mrb[0].mxu0
  %v193 = vadd.f32 %v113, %v192
  %v194 = vpop.f32.mrb[0].mxu0
  %195 = vmatprep.mubr.f32.mxu0 0.0
  %196 = vmatmul.mubr.f32.gmra.mrb[0].mxu0 %v120
  %v197 = vpop.f32.mrb[0].mxu0
  %v198 = vadd.f32 %v113, %v197
  %v199 = vpop.f32.mrb[0].mxu0
  %200 = vdwg.mxu0
  %201 = vst.msk [vmem:[%s6] sm:$0xff] %vm62, %v193
  %202 = vst.msk [vmem:[%s6 + $0x8] sm:$0xff] %vm62, %v198
  %v203 = vld [vmem:[%s2] sm:$0xf]
  %v204 = vld [vmem:[%s2 + $0x4] sm:$0xf]
  %v205 = vld [vmem:[%s2 + $0x8] sm:$0xf]
  %v206 = vld [vmem:[%s2 + $0xc] sm:$0xf]
  %v207 = vld [vmem:[%s2 + $0x10] sm:$0xf]
  %v208 = vld [vmem:[%s2 + $0x14] sm:$0xf]
  %v209 = vld [vmem:[%s2 + $0x18] sm:$0xf]
  %v210 = vld [vmem:[%s2 + $0x1c] sm:$0xf]
  %v219 = vunpack.c.l.b16 %v203
  %v220 = vunpack.c.l.b16 %v204
  %v221 = vunpack.c.l.b16 %v205
  %v222 = vunpack.c.l.b16 %v206
  %v223 = vunpack.c.l.b16 %v207
  %v224 = vunpack.c.l.b16 %v208
  %v225 = vunpack.c.l.b16 %v209
  %v226 = vunpack.c.l.b16 %v210
  %v227 = vpack.c.b16 %v220, %v219
  %v228 = vpack.c.b16 %v222, %v221
  %v229 = vpack.c.b16 %v224, %v223
  %v230 = vpack.c.b16 %v226, %v225
  %235 = vmatprep.subr.bf16.mxu0 0
  %236 = vmatpush1.bf16.msra.mxu0 %v227
  %237 = vmatprep.subr.bf16.mxu0 0
  %238 = vmatpush1.bf16.msra.mxu0 %v228
  %239 = vmatprep.subr.bf16.mxu0 0
  %240 = vmatpush1.bf16.msra.mxu0 %v229
  %241 = vmatprep.subr.bf16.mxu0 0
  %242 = vmatpush1.bf16.msra.mxu0 %v230
  %243 = vmatprep.subr.bf16.mxu0 0
  %244 = vmatpush1.bf16.msra.mxu0 0
  %245 = vmatprep.subr.bf16.mxu0 0
  %246 = vmatpush1.bf16.msra.mxu0 0
  %247 = vmatprep.subr.bf16.mxu0 0
  %248 = vmatpush1.bf16.msra.mxu0 0
  %249 = vmatprep.subr.bf16.mxu0 0
  %250 = vmatpush1.bf16.msra.mxu0 0
  %251 = vmatprep.subr.bf16.mxu0 0
  %252 = vmatpush1.bf16.msra.mxu0 0
  %253 = vmatprep.subr.bf16.mxu0 0
  %254 = vmatpush1.bf16.msra.mxu0 0
  %255 = vmatprep.subr.bf16.mxu0 0
  %256 = vmatpush1.bf16.msra.mxu0 0
  %257 = vmatprep.subr.bf16.mxu0 0
  %258 = vmatpush1.bf16.msra.mxu0 0
  %259 = vmatprep.subr.bf16.mxu0 0
  %260 = vmatpush1.bf16.msra.mxu0 0
  %261 = vmatprep.subr.bf16.mxu0 0
  %262 = vmatpush1.bf16.msra.mxu0 0
  %263 = vmatprep.subr.bf16.mxu0 0
  %264 = vmatpush1.bf16.msra.mxu0 0
  %265 = vmatprep.subr.bf16.mxu0 0
  %266 = vmatpush1.bf16.msra.mxu0 0
  %267 = vmatprep.mubr.bf16.mxu0 0
  %268 = vmatmul.mubr.bf16.gmra.mrb[0].mxu0 %v64
  %v269 = vpop.f32.mrb[0].mxu0
  %v270 = vadd.f32 0.0, %v269
  %v271 = vpop.f32.mrb[0].mxu0
  %v272 = vpop.f32.mrb[0].mxu0
  %v273 = vadd.f32 0.0, %v272
  %v274 = vpop.f32.mrb[0].mxu0
  %275 = vdwg.mxu0
  %vm276 = vcmask 130048
  %277 = vst.msk [vmem:[%s7] sm:$0xff] %vm276, %v270
  %278 = vst.msk [vmem:[%s7 + $0x8] sm:$0xff] %vm276, %v273
  %v279 = vld [vmem:[%s3] sm:$0xf]
  %v280 = vld [vmem:[%s3 + $0x4] sm:$0xf]
  %v281 = vld [vmem:[%s3 + $0x8] sm:$0xf]
  %v282 = vld [vmem:[%s3 + $0xc] sm:$0xf]
  %v283 = vld [vmem:[%s3 + $0x10] sm:$0xf]
  %v284 = vld [vmem:[%s3 + $0x14] sm:$0xf]
  %v285 = vld [vmem:[%s3 + $0x18] sm:$0xf]
  %v286 = vld [vmem:[%s3 + $0x1c] sm:$0xf]
  %v295 = vunpack.c.l.b16 %v279
  %v296 = vunpack.c.l.b16 %v280
  %v297 = vunpack.c.l.b16 %v281
  %v298 = vunpack.c.l.b16 %v282
  %v299 = vunpack.c.l.b16 %v283
  %v300 = vunpack.c.l.b16 %v284
  %v301 = vunpack.c.l.b16 %v285
  %v302 = vunpack.c.l.b16 %v286
  %v303 = vpack.c.b16 %v296, %v295
  %v304 = vpack.c.b16 %v298, %v297
  %v305 = vpack.c.b16 %v300, %v299
  %v306 = vpack.c.b16 %v302, %v301
  %311 = vmatprep.subr.bf16.mxu0 0
  %312 = vmatpush1.bf16.msra.mxu0 %v303
  %313 = vmatprep.subr.bf16.mxu0 0
  %314 = vmatpush1.bf16.msra.mxu0 %v304
  %315 = vmatprep.subr.bf16.mxu0 0
  %316 = vmatpush1.bf16.msra.mxu0 %v305
  %317 = vmatprep.subr.bf16.mxu0 0
  %318 = vmatpush1.bf16.msra.mxu0 %v306
  %319 = vmatprep.subr.bf16.mxu0 0
  %320 = vmatpush1.bf16.msra.mxu0 0
  %321 = vmatprep.subr.bf16.mxu0 0
  %322 = vmatpush1.bf16.msra.mxu0 0
  %323 = vmatprep.subr.bf16.mxu0 0
  %324 = vmatpush1.bf16.msra.mxu0 0
  %325 = vmatprep.subr.bf16.mxu0 0
  %326 = vmatpush1.bf16.msra.mxu0 0
  %327 = vmatprep.subr.bf16.mxu0 0
  %328 = vmatpush1.bf16.msra.mxu0 0
  %329 = vmatprep.subr.bf16.mxu0 0
  %330 = vmatpush1.bf16.msra.mxu0 0
  %331 = vmatprep.subr.bf16.mxu0 0
  %332 = vmatpush1.bf16.msra.mxu0 0
  %333 = vmatprep.subr.bf16.mxu0 0
  %334 = vmatpush1.bf16.msra.mxu0 0
  %335 = vmatprep.subr.bf16.mxu0 0
  %336 = vmatpush1.bf16.msra.mxu0 0
  %337 = vmatprep.subr.bf16.mxu0 0
  %338 = vmatpush1.bf16.msra.mxu0 0
  %339 = vmatprep.subr.bf16.mxu0 0
  %340 = vmatpush1.bf16.msra.mxu0 0
  %341 = vmatprep.subr.bf16.mxu0 0
  %342 = vmatpush1.bf16.msra.mxu0 0
  %343 = vmatprep.mubr.bf16.mxu0 0
  %344 = vmatmul.mubr.bf16.gmra.mrb[0].mxu0 %v64
  %v345 = vpop.f32.mrb[0].mxu0
  %v346 = vadd.f32 0.0, %v345
  %v347 = vpop.f32.mrb[0].mxu0
  %v348 = vpop.f32.mrb[0].mxu0
  %v349 = vadd.f32 0.0, %v348
  %v350 = vpop.f32.mrb[0].mxu0
  %351 = vdwg.mxu0
  %352 = vst.msk [vmem:[%s8] sm:$0xff] %vm276, %v346
  %353 = vst.msk [vmem:[%s8 + $0x8] sm:$0xff] %vm276, %v349
  // Predicated region
  $region26: #{forward.17} parent=0 // pred_check
    _
  $region27: #{forward.17} parent=0 // pred_check_branch
    %355 = sbr.rel (0) target = $region29
  $region28: #{forward.17} parent=0 // pred_region
    _
  $region29: #{forward.17} parent=0 // pred_fallthru
    _
  // Predicated region
  $region30: #{forward.17} parent=0 // pred_check
    _
  $region31: #{forward.17} parent=0 // pred_check_branch
    %357 = sbr.rel (0) target = $region33
  $region32: #{forward.17} parent=0 // pred_region
    _
  $region33: #{forward.17} parent=0 // pred_fallthru
    _
  // Predicated region
  $region34: #{forward.17} parent=0 // pred_check
    _
  $region35: #{forward.17} parent=0 // pred_check_branch
    %359 = sbr.rel (0) target = $region37
  $region36: #{forward.17} parent=0 // pred_region
    _
  $region37: #{forward.17} parent=0 // pred_fallthru
    _
  // Predicated region
  $region38: #{forward.17} parent=0 // pred_check
    _
  $region39: #{forward.17} parent=0 // pred_check_branch
    %361 = sbr.rel (0) target = $region41
  $region40: #{forward.17} parent=0 // pred_region
    _
  $region41: #{forward.17} parent=0 // pred_fallthru
    _
  // Predicated region
  $region42: #{forward.17} parent=0 // pred_check
    _
  $region43: #{forward.17} parent=0 // pred_check_branch
    %363 = sbr.rel (0) target = $region45
  $region44: #{forward.17} parent=0 // pred_region
    _
  $region45: #{forward.17} parent=0 // pred_fallthru
    _
  // Predicated region
  $region46: #{forward.17} parent=0 // pred_check
    _
  $region47: #{forward.17} parent=0 // pred_check_branch
    %365 = sbr.rel (0) target = $region49
  $region48: #{forward.17} parent=0 // pred_region
    _
  $region49: #{forward.17} parent=0 // pred_fallthru
    _

// kernel: forward.18
$region0: #{forward.18}
  #allocation0 [shape = 'u32[]', space=smem, size = 0x4, offset = 0x4, fixed_abs, tag = 'smem constant byte address 0x4 - core index']
  #allocation1 [shape = 'u32[144,128]{1,0:T(1,128)}', space=vmem, size = 0x12000, scoped, tag = 'internal scratch']
  #allocation2 [shape = 'f32[8,16,64]{2,1,0:T(8,128)}', space=vmem, size = 0x10000, scoped, tag = 'scratch operand']
  #allocation3 [shape = 'f32[8,16,64]{2,1,0:T(8,128)}', space=vmem, size = 0x10000, scoped, tag = 'scratch operand']
  #allocation4 [shape = 'f32[16,64]{1,0:T(8,128)}', space=vmem, size = 0x2000, scoped, tag = 'scratch operand']
  %s0 = inlined_call_operand.vmem [shape: f32[2,8,64], index: 0, kind: input, shape index: {}]
  %s1 = inlined_call_operand.vmem [shape: f32[2,8,64], index: 1, kind: input, shape index: {}]
  %s2 = inlined_call_operand.vmem [shape: f32[2,8,16], index: 2, kind: input, shape index: {}]
  %s3 = inlined_call_operand.vmem [shape: f32[2,8,16], index: 3, kind: input, shape index: {}]
  %s4 = inlined_call_operand.vmem [shape: f32[2,8,64], index: 4, kind: input, shape index: {}]
  %s5 = inlined_call_operand.vmem [shape: f32[16,64], index: 5, kind: input, shape index: {}]
  %s6 = inlined_call_operand.vmem [shape: f32[1,64], index: 6, kind: input, shape index: {}]
  %s7 = inlined_call_operand.vmem [shape: f32[2,8,64], index: 7, kind: output, shape index: {}]
  %s8 = sld [smem:[#allocation0]]
  $region65: #{forward.18} parent=0
    _
  %s10 = ssub.s32 1, %s8
  %s11 = scalar_select 0, %s10, %s8
  loop: start=0, step=1, limit=4
  $region2: #{forward.18} parent=0 // loop_pre_header
    _
  $region3: #{forward.18} parent=0 // loop_header
    %s13 = sphi 0, %s17
    %p14 = scmp.ge.s32.totalorder %s13, 4
    %s20 = sphi 0, %s32
    %s21 = sphi 0, %s28
    %s22 = sphi 0, %s20
    %s23 = sphi 0, %s21
    %s24 = sphi 0, %s22
    %s25 = sphi 0, %s23
    %s37 = sphi 0, %s39
    %s40 = sphi 0, %s37
    %s41 = sphi 0, %s40
    %s57 = sphi 0, %s41
    %s65 = sphi 0, %s67
    %s68 = sphi 0, %s65
    %s69 = sphi 0, %s68
    %s85 = sphi 0, %s69
    %s93 = sphi 0, %s95
    %s96 = sphi 0, %s93
    %s97 = sphi 0, %s96
    %s113 = sphi 0, %s97
    %s121 = sphi 0, %s123
    %s124 = sphi 0, %s121
    %s125 = sphi 0, %s124
    %s141 = sphi 0, %s125
    %s149 = sphi 0, %s151
    %s152 = sphi 0, %s149
    %s153 = sphi 0, %s152
    %s169 = sphi 0, %s153
    %s173 = sphi 0, %s173
    %s175 = sphi 0, %s173
    %s176 = sphi 0, %s175
    %s190 = sphi 0, %s176
    %s194 = sphi 0, %s194
    %s196 = sphi 0, %s194
    %s197 = sphi 0, %s196
    %s211 = sphi 0, %s197
    %s219 = sphi 0, %s221
    %s222 = sphi 0, %s219
    %s223 = sphi 0, %s222
    %s239 = sphi 0, %s223
  $region4: #{forward.18} parent=0 // loop_header_branch
    %16 = sbr.rel (%p14) target = $region8
  $region5: #{forward.18} parent=0 // loop_body
    %s18 = ssub.s32 %s13, 1
    %s19 = ssub.s32 %s13, 2
    %s26 = sadd.s32 1, %s21
    %p27 = scmp.ge.s32.totalorder %s26, 1
    %s28 = scalar_select %p27, 0, %s26
    %s29 = sadd.s32 1, %s20
    %s30 = scalar_select %p27, %s29, %s20
    %p31 = scmp.ge.s32.totalorder %s30, 2
    %s32 = scalar_select %p31, 0, %s30
    %s33 = ssub.s32 %s20, %s32
    %s34 = ssub.s32 %s21, %s28
    %s35 = sor.u32 %s33, %s34
    %p36 = scmp.eq.s32.totalorder %s35, 0
    %s38 = sadd.s32 %s37, 1
    %s39 = scalar_select %p36, %s37, %s38
    %p42 = pneg %p36
    %p43 = scmp.eq.s32.totalorder %s13, 1
    %p44 = por %p42, %p43
    %p45 = scmp.ne.s32.totalorder %s37, %s40
    %p46 = scmp.eq.s32.totalorder %s13, 0
    %p47 = por %p45, %p46
    %p48 = scmp.ne.s32.totalorder %s37, %s40
    %p49 = scmp.eq.s32.totalorder %s18, 1
    %p50 = por %p48, %p49
    %p51 = scmp.ne.s32.totalorder %s40, %s41
    %p52 = scmp.eq.s32.totalorder %s18, 0
    %p53 = por %p51, %p52
    %p54 = scmp.ne.s32.totalorder %s40, %s41
    %p55 = scmp.eq.s32.totalorder %s19, 1
    %p56 = por %p54, %p55
    %p58 = scmp.ne.s32.totalorder %s41, %s57
    %p59 = scmp.eq.s32.totalorder %s19, 0
    %p60 = por %p58, %p59
    %s61 = ssub.s32 %s20, %s32
    %s62 = ssub.s32 %s21, %s28
    %s63 = sor.u32 %s61, %s62
    %p64 = scmp.eq.s32.totalorder %s63, 0
    %s66 = sadd.s32 %s65, 1
    %s67 = scalar_select %p64, %s65, %s66
    %p70 = pneg %p64
    %p71 = scmp.eq.s32.totalorder %s13, 1
    %p72 = por %p70, %p71
    %p73 = scmp.ne.s32.totalorder %s65, %s68
    %p74 = scmp.eq.s32.totalorder %s13, 0
    %p75 = por %p73, %p74
    %p76 = scmp.ne.s32.totalorder %s65, %s68
    %p77 = scmp.eq.s32.totalorder %s18, 1
    %p78 = por %p76, %p77
    %p79 = scmp.ne.s32.totalorder %s68, %s69
    %p80 = scmp.eq.s32.totalorder %s18, 0
    %p81 = por %p79, %p80
    %p82 = scmp.ne.s32.totalorder %s68, %s69
    %p83 = scmp.eq.s32.totalorder %s19, 1
    %p84 = por %p82, %p83
    %p86 = scmp.ne.s32.totalorder %s69, %s85
    %p87 = scmp.eq.s32.totalorder %s19, 0
    %p88 = por %p86, %p87
    %s89 = ssub.s32 %s20, %s32
    %s90 = ssub.s32 %s21, %s28
    %s91 = sor.u32 %s89, %s90
    %p92 = scmp.eq.s32.totalorder %s91, 0
    %s94 = sadd.s32 %s93, 1
    %s95 = scalar_select %p92, %s93, %s94
    %p98 = pneg %p92
    %p99 = scmp.eq.s32.totalorder %s13, 1
    %p100 = por %p98, %p99
    %p101 = scmp.ne.s32.totalorder %s93, %s96
    %p102 = scmp.eq.s32.totalorder %s13, 0
    %p103 = por %p101, %p102
    %p104 = scmp.ne.s32.totalorder %s93, %s96
    %p105 = scmp.eq.s32.totalorder %s18, 1
    %p106 = por %p104, %p105
    %p107 = scmp.ne.s32.totalorder %s96, %s97
    %p108 = scmp.eq.s32.totalorder %s18, 0
    %p109 = por %p107, %p108
    %p110 = scmp.ne.s32.totalorder %s96, %s97
    %p111 = scmp.eq.s32.totalorder %s19, 1
    %p112 = por %p110, %p111
    %p114 = scmp.ne.s32.totalorder %s97, %s113
    %p115 = scmp.eq.s32.totalorder %s19, 0
    %p116 = por %p114, %p115
    %s117 = ssub.s32 %s20, %s32
    %s118 = ssub.s32 %s21, %s28
    %s119 = sor.u32 %s117, %s118
    %p120 = scmp.eq.s32.totalorder %s119, 0
    %s122 = sadd.s32 %s121, 1
    %s123 = scalar_select %p120, %s121, %s122
    %p126 = pneg %p120
    %p127 = scmp.eq.s32.totalorder %s13, 1
    %p128 = por %p126, %p127
    %p129 = scmp.ne.s32.totalorder %s121, %s124
    %p130 = scmp.eq.s32.totalorder %s13, 0
    %p131 = por %p129, %p130
    %p132 = scmp.ne.s32.totalorder %s121, %s124
    %p133 = scmp.eq.s32.totalorder %s18, 1
    %p134 = por %p132, %p133
    %p135 = scmp.ne.s32.totalorder %s124, %s125
    %p136 = scmp.eq.s32.totalorder %s18, 0
    %p137 = por %p135, %p136
    %p138 = scmp.ne.s32.totalorder %s124, %s125
    %p139 = scmp.eq.s32.totalorder %s19, 1
    %p140 = por %p138, %p139
    %p142 = scmp.ne.s32.totalorder %s125, %s141
    %p143 = scmp.eq.s32.totalorder %s19, 0
    %p144 = por %p142, %p143
    %s145 = ssub.s32 %s20, %s32
    %s146 = ssub.s32 %s21, %s28
    %s147 = sor.u32 %s145, %s146
    %p148 = scmp.eq.s32.totalorder %s147, 0
    %s150 = sadd.s32 %s149, 1
    %s151 = scalar_select %p148, %s149, %s150
    %p154 = pneg %p148
    %p155 = scmp.eq.s32.totalorder %s13, 1
    %p156 = por %p154, %p155
    %p157 = scmp.ne.s32.totalorder %s149, %s152
    %p158 = scmp.eq.s32.totalorder %s13, 0
    %p159 = por %p157, %p158
    %p160 = scmp.ne.s32.totalorder %s149, %s152
    %p161 = scmp.eq.s32.totalorder %s18, 1
    %p162 = por %p160, %p161
    %p163 = scmp.ne.s32.totalorder %s152, %s153
    %p164 = scmp.eq.s32.totalorder %s18, 0
    %p165 = por %p163, %p164
    %p166 = scmp.ne.s32.totalorder %s152, %s153
    %p167 = scmp.eq.s32.totalorder %s19, 1
    %p168 = por %p166, %p167
    %p170 = scmp.ne.s32.totalorder %s153, %s169
    %p171 = scmp.eq.s32.totalorder %s19, 0
    %p172 = por %p170, %p171
    %s174 = sadd.s32 %s173, 1
    %p177 = scmp.eq.s32.totalorder %s13, 1
    %p178 = scmp.ne.s32.totalorder %s173, %s175
    %p179 = scmp.eq.s32.totalorder %s13, 0
    %p180 = por %p178, %p179
    %p181 = scmp.ne.s32.totalorder %s173, %s175
    %p182 = scmp.eq.s32.totalorder %s18, 1
    %p183 = por %p181, %p182
    %p184 = scmp.ne.s32.totalorder %s175, %s176
    %p185 = scmp.eq.s32.totalorder %s18, 0
    %p186 = por %p184, %p185
    %p187 = scmp.ne.s32.totalorder %s175, %s176
    %p188 = scmp.eq.s32.totalorder %s19, 1
    %p189 = por %p187, %p188
    %p191 = scmp.ne.s32.totalorder %s176, %s190
    %p192 = scmp.eq.s32.totalorder %s19, 0
    %p193 = por %p191, %p192
    %s195 = sadd.s32 %s194, 1
    %p198 = scmp.eq.s32.totalorder %s13, 1
    %p199 = scmp.ne.s32.totalorder %s194, %s196
    %p200 = scmp.eq.s32.totalorder %s13, 0
    %p201 = por %p199, %p200
    %p202 = scmp.ne.s32.totalorder %s194, %s196
    %p203 = scmp.eq.s32.totalorder %s18, 1
    %p204 = por %p202, %p203
    %p205 = scmp.ne.s32.totalorder %s196, %s197
    %p206 = scmp.eq.s32.totalorder %s18, 0
    %p207 = por %p205, %p206
    %p208 = scmp.ne.s32.totalorder %s196, %s197
    %p209 = scmp.eq.s32.totalorder %s19, 1
    %p210 = por %p208, %p209
    %p212 = scmp.ne.s32.totalorder %s197, %s211
    %p213 = scmp.eq.s32.totalorder %s19, 0
    %p214 = por %p212, %p213
    %s215 = ssub.s32 %s20, %s32
    %s216 = ssub.s32 %s21, %s28
    %s217 = sor.u32 %s215, %s216
    %p218 = scmp.eq.s32.totalorder %s217, 0
    %s220 = sadd.s32 %s219, 1
    %s221 = scalar_select %p218, %s219, %s220
    %p224 = pneg %p218
    %p225 = scmp.eq.s32.totalorder %s13, 1
    %p226 = por %p224, %p225
    %p227 = scmp.ne.s32.totalorder %s219, %s222
    %p228 = scmp.eq.s32.totalorder %s13, 0
    %p229 = por %p227, %p228
    %p230 = scmp.ne.s32.totalorder %s219, %s222
    %p231 = scmp.eq.s32.totalorder %s18, 1
    %p232 = por %p230, %p231
    %p233 = scmp.ne.s32.totalorder %s222, %s223
    %p234 = scmp.eq.s32.totalorder %s18, 0
    %p235 = por %p233, %p234
    %p236 = scmp.ne.s32.totalorder %s222, %s223
    %p237 = scmp.eq.s32.totalorder %s19, 1
    %p238 = por %p236, %p237
    %p240 = scmp.ne.s32.totalorder %s223, %s239
    %p241 = scmp.eq.s32.totalorder %s19, 0
    %p242 = por %p240, %p241
    %p243 = scmp.le.s32.totalorder 1, %s13
    %p244 = scmp.lt.s32.totalorder %s13, 3
    %p245 = pnand %p243, %p244
    %p246 = pneg %p245
    // Predicated region
    $region9: #{forward.18} parent=5 // pred_check
      _
    $region10: #{forward.18} parent=5 // pred_check_branch
      %248 = sbr.rel (%p245) target = $region12
    $region11: #{forward.18} parent=5 // pred_region
      %s249 = ssub.s32 %s13, 1
      // Predicated region
      $region13: #{forward.18} parent=11 // pred_check
        %p250 = pneg %p186
      $region14: #{forward.18} parent=11 // pred_check_branch
        %252 = sbr.rel (%p250) target = $region16
      $region15: #{forward.18} parent=11 // pred_region
        _
      $region16: #{forward.18} parent=11 // pred_fallthru
        _
      // Predicated region
      $region17: #{forward.18} parent=11 // pred_check
        %p253 = pneg %p207
      $region18: #{forward.18} parent=11 // pred_check_branch
        %255 = sbr.rel (%p253) target = $region20
      $region19: #{forward.18} parent=11 // pred_region
        _
      $region20: #{forward.18} parent=11 // pred_fallthru
        _
    $region12: #{forward.18} parent=5 // pred_fallthru
      _
    %p256 = scmp.lt.s32.totalorder %s13, 2
    // Predicated region
    $region21: #{forward.18} parent=5 // pred_check
      %p257 = pneg %p256
    $region22: #{forward.18} parent=5 // pred_check_branch
      %259 = sbr.rel (%p257) target = $region24
    $region23: #{forward.18} parent=5 // pred_region
      // Predicated region
      $region25: #{forward.18} parent=23 // pred_check
        %p260 = pneg %p47
      $region26: #{forward.18} parent=23 // pred_check_branch
        %262 = sbr.rel (%p260) target = $region28
      $region27: #{forward.18} parent=23 // pred_region
        %p263 = scmp.lt.s32.totalorder %s20, 1
        %s264 = scalar_select %p263, %s20, 1
        %p265 = scmp.lt.s32.totalorder %s21, 0
        %s266 = scalar_select %p265, %s21, 0
        %s267 = sadd.s32 %s266, %s264
        %s268 = smul.addr %s267, 8
        %s269 = scalar_lea.vmem %s0, %s268
      $region28: #{forward.18} parent=23 // pred_fallthru
        _
      // Predicated region
      $region29: #{forward.18} parent=23 // pred_check
        %p270 = pneg %p75
      $region30: #{forward.18} parent=23 // pred_check_branch
        %272 = sbr.rel (%p270) target = $region32
      $region31: #{forward.18} parent=23 // pred_region
        %p273 = scmp.lt.s32.totalorder %s20, 1
        %s274 = scalar_select %p273, %s20, 1
        %p275 = scmp.lt.s32.totalorder %s21, 0
        %s276 = scalar_select %p275, %s21, 0
        %s277 = sadd.s32 %s276, %s274
        %s278 = smul.addr %s277, 8
        %s279 = scalar_lea.vmem %s1, %s278
      $region32: #{forward.18} parent=23 // pred_fallthru
        _
      // Predicated region
      $region33: #{forward.18} parent=23 // pred_check
        %p280 = pneg %p103
      $region34: #{forward.18} parent=23 // pred_check_branch
        %282 = sbr.rel (%p280) target = $region36
      $region35: #{forward.18} parent=23 // pred_region
        %p283 = scmp.lt.s32.totalorder %s20, 1
        %s284 = scalar_select %p283, %s20, 1
        %p285 = scmp.lt.s32.totalorder %s21, 0
        %s286 = scalar_select %p285, %s21, 0
        %s287 = sadd.s32 %s286, %s284
        %s288 = smul.addr %s287, 8
        %s289 = scalar_lea.vmem %s2, %s288
      $region36: #{forward.18} parent=23 // pred_fallthru
        _
      // Predicated region
      $region37: #{forward.18} parent=23 // pred_check
        %p290 = pneg %p131
      $region38: #{forward.18} parent=23 // pred_check_branch
        %292 = sbr.rel (%p290) target = $region40
      $region39: #{forward.18} parent=23 // pred_region
        %p293 = scmp.lt.s32.totalorder %s20, 1
        %s294 = scalar_select %p293, %s20, 1
        %p295 = scmp.lt.s32.totalorder %s21, 0
        %s296 = scalar_select %p295, %s21, 0
        %s297 = sadd.s32 %s296, %s294
        %s298 = smul.addr %s297, 8
        %s299 = scalar_lea.vmem %s3, %s298
      $region40: #{forward.18} parent=23 // pred_fallthru
        _
      // Predicated region
      $region41: #{forward.18} parent=23 // pred_check
        %p300 = pneg %p159
      $region42: #{forward.18} parent=23 // pred_check_branch
        %302 = sbr.rel (%p300) target = $region44
      $region43: #{forward.18} parent=23 // pred_region
        %p303 = scmp.lt.s32.totalorder %s20, 1
        %s304 = scalar_select %p303, %s20, 1
        %p305 = scmp.lt.s32.totalorder %s21, 0
        %s306 = scalar_select %p305, %s21, 0
        %s307 = sadd.s32 %s306, %s304
        %s308 = smul.addr %s307, 8
        %s309 = scalar_lea.vmem %s4, %s308
      $region44: #{forward.18} parent=23 // pred_fallthru
        _
    $region24: #{forward.18} parent=5 // pred_fallthru
      _
    %p310 = scmp.le.s32.totalorder 1, %s13
    %p311 = scmp.lt.s32.totalorder %s13, 3
    %p312 = pnand %p310, %p311
    %p313 = pneg %p312
    // Predicated region
    $region45: #{forward.18} parent=5 // pred_check
      _
    $region46: #{forward.18} parent=5 // pred_check_branch
      %315 = sbr.rel (%p312) target = $region48
    $region47: #{forward.18} parent=5 // pred_region
      %s316 = ssub.s32 %s13, 1
      %p317 = scmp.lt.s32.totalorder %s22, 1
      %s318 = scalar_select %p317, %s22, 1
      %p319 = scmp.lt.s32.totalorder %s23, 0
      %s320 = scalar_select %p319, %s23, 0
      %s321 = sadd.s32 %s320, %s318
      %s322 = smul.addr %s321, 8
      %s323 = scalar_lea.vmem %s0, %s322
      %p324 = pneg %p53
      %p325 = pneg %p50
      %p326 = scmp.lt.s32.totalorder %s22, 1
      %s327 = scalar_select %p326, %s22, 1
      %p328 = scmp.lt.s32.totalorder %s23, 0
      %s329 = scalar_select %p328, %s23, 0
      %s330 = sadd.s32 %s329, %s327
      %s331 = smul.addr %s330, 8
      %s332 = scalar_lea.vmem %s1, %s331
      %p333 = pneg %p81
      %p334 = pneg %p78
      %p335 = scmp.lt.s32.totalorder %s22, 1
      %s336 = scalar_select %p335, %s22, 1
      %p337 = scmp.lt.s32.totalorder %s23, 0
      %s338 = scalar_select %p337, %s23, 0
      %s339 = sadd.s32 %s338, %s336
      %s340 = smul.addr %s339, 8
      %s341 = scalar_lea.vmem %s2, %s340
      %p342 = pneg %p109
      %p343 = pneg %p106
      %p344 = scmp.lt.s32.totalorder %s22, 1
      %s345 = scalar_select %p344, %s22, 1
      %p346 = scmp.lt.s32.totalorder %s23, 0
      %s347 = scalar_select %p346, %s23, 0
      %s348 = sadd.s32 %s347, %s345
      %s349 = smul.addr %s348, 8
      %s350 = scalar_lea.vmem %s3, %s349
      %p351 = pneg %p137
      %p352 = pneg %p134
      %p353 = scmp.lt.s32.totalorder %s22, 1
      %s354 = scalar_select %p353, %s22, 1
      %p355 = scmp.lt.s32.totalorder %s23, 0
      %s356 = scalar_select %p355, %s23, 0
      %s357 = sadd.s32 %s356, %s354
      %s358 = smul.addr %s357, 8
      %s359 = scalar_lea.vmem %s4, %s358
      %p360 = pneg %p165
      %p361 = pneg %p162
      %p362 = pneg %p186
      %p363 = pneg %p183
      %p364 = pneg %p207
      %p365 = pneg %p204
      %p366 = pneg %p235
      %p367 = pneg %p232
      %p368 = scmp.lt.s32.totalorder %s22, 1
      %s369 = scalar_select %p368, %s22, 1
      %p370 = scmp.lt.s32.totalorder %s23, 0
      %s371 = scalar_select %p370, %s23, 0
      %s372 = sadd.s32 %s371, %s369
      %s373 = smul.addr %s372, 8
      %s374 = scalar_lea.vmem %s7, %s373
      %p375 = scmp.lt.s32.totalorder %s22, 1
      %s376 = scalar_select %p375, %s22, 1
      %p377 = scmp.lt.s32.totalorder %s23, 0
      %s378 = scalar_select %p377, %s23, 0
      %s379 = sadd.s32 %s378, %s376
      %s380 = smul.addr %s379, 8
      %s381 = scalar_lea.vmem %s0, %s380
      %p382 = scmp.lt.s32.totalorder %s22, 1
      %s383 = scalar_select %p382, %s22, 1
      %p384 = scmp.lt.s32.totalorder %s23, 0
      %s385 = scalar_select %p384, %s23, 0
      %s386 = sadd.s32 %s385, %s383
      %s387 = smul.addr %s386, 8
      %s388 = scalar_lea.vmem %s1, %s387
      %p389 = scmp.lt.s32.totalorder %s22, 1
      %s390 = scalar_select %p389, %s22, 1
      %p391 = scmp.lt.s32.totalorder %s23, 0
      %s392 = scalar_select %p391, %s23, 0
      %s393 = sadd.s32 %s392, %s390
      %s394 = smul.addr %s393, 8
      %s395 = scalar_lea.vmem %s2, %s394
      %p396 = scmp.lt.s32.totalorder %s22, 1
      %s397 = scalar_select %p396, %s22, 1
      %p398 = scmp.lt.s32.totalorder %s23, 0
      %s399 = scalar_select %p398, %s23, 0
      %s400 = sadd.s32 %s399, %s397
      %s401 = smul.addr %s400, 8
      %s402 = scalar_lea.vmem %s3, %s401
      %p403 = scmp.lt.s32.totalorder %s22, 1
      %s404 = scalar_select %p403, %s22, 1
      %p405 = scmp.lt.s32.totalorder %s23, 0
      %s406 = scalar_select %p405, %s23, 0
      %s407 = sadd.s32 %s406, %s404
      %s408 = smul.addr %s407, 8
      %s409 = scalar_lea.vmem %s4, %s408
      %p410 = scmp.lt.s32.totalorder %s22, 1
      %s411 = scalar_select %p410, %s22, 1
      %p412 = scmp.lt.s32.totalorder %s23, 0
      %s413 = scalar_select %p412, %s23, 0
      %s414 = sadd.s32 %s413, %s411
      %s415 = smul.addr %s414, 8
      %s416 = scalar_lea.vmem %s7, %s415
      %p417 = scmp.eq.s32.totalorder %s23, 0
      // Predicated region
      $region49: #{forward.18} parent=47 // pred_check
        %p418 = pneg %p417
      $region50: #{forward.18} parent=47 // pred_check_branch
        %420 = sbr.rel (%p418) target = $region52
      $region51: #{forward.18} parent=47 // pred_region
        %vm421 = vcmask 523264
        %422 = vst.msk [vmem:[#allocation4] sm:$0xff] %vm421, 0.0
        %423 = vst.msk [vmem:[#allocation4 + $0x8] sm:$0xff] %vm421, 0.0
      $region52: #{forward.18} parent=47 // pred_fallthru
        _
      %v424 = vld [vmem:[%s381] sm:$0xff]
      %v425 = vld [vmem:[%s409] sm:$0xff]
      %v426 = vld [vmem:[%s388] sm:$0xff]
      %v427 = vld [vmem:[%s395] sm:$0xff]
      %v428 = vld [vmem:[%s402] sm:$0xff]
      %v429 = vld [vmem:[%s5] sm:$0xff]
      %v430 = vld [vmem:[%s5 + $0x8] sm:$0xff]
      %v431 = vmax.f32 %v426, 0.0
      %v432 = vand.u32 2147483647, %v426
      %v433 = vsub.f32 0.0, %v432
      %v434 = vmul.f32 %v433, 1.442695
      %v435 = vpow.pop %v434
      %v436 = vadd.f32 %v435, 1.0
      %v437 = vlog2.pop %v436
      %v438 = vmul.f32 %v437, 0.6931472
      %v439 = vadd.f32 %v431, %v438
      %v440 = vmul.f32 %v439, %v424
      %v442 = vcombine.high %v439, %v439
      %v444 = vunpack.c.l.s4 1966171168
      %v445 = vunpack.c.0.s8 %v444
      %v446 = vlaneseq
      %v447 = vshrl.u32 %v446, 7
      %v448 = vsub.s32 %v445, %v447
      %v449 = vrot.slane %v439, %v448
      %v451 = vunpack.c.l.s4 1966171168
      %v452 = vunpack.c.0.s8 %v451
      %v453 = vlaneseq
      %v454 = vshrl.u32 %v453, 7
      %v455 = vsub.s32 %v452, %v454
      %v456 = vrot.slane %v442, %v455
      %v457 = vcombine.high %v449, %v449
      %v458 = vcombine.high %v456, %v456
      %v460 = vunpack.c.l.s4 1966171168
      %v461 = vunpack.c.0.s8 %v460
      %v462 = vlaneseq
      %v463 = vshrl.u32 %v462, 7
      %v464 = vsub.s32 %v461, %v463
      %v465 = vrot.slane %v449, %v464
      %v467 = vunpack.c.l.s4 1966171168
      %v468 = vunpack.c.0.s8 %v467
      %v469 = vlaneseq
      %v470 = vshrl.u32 %v469, 7
      %v471 = vsub.s32 %v468, %v470
      %v472 = vrot.slane %v456, %v471
      %v474 = vunpack.c.l.s4 1966171168
      %v475 = vunpack.c.0.s8 %v474
      %v476 = vlaneseq
      %v477 = vshrl.u32 %v476, 7
      %v478 = vsub.s32 %v475, %v477
      %v479 = vrot.slane %v457, %v478
      %v481 = vunpack.c.l.s4 1966171168
      %v482 = vunpack.c.0.s8 %v481
      %v483 = vlaneseq
      %v484 = vshrl.u32 %v483, 7
      %v485 = vsub.s32 %v482, %v484
      %v486 = vrot.slane %v458, %v485
      %v487 = vcombine.high %v465, %v465
      %v488 = vcombine.high %v472, %v472
      %v489 = vcombine.high %v479, %v479
      %v490 = vcombine.high %v486, %v486
      %v491 = vlaneseq
      %v492 = vshrl.u32 %v491, 7
      %v493 = vsub.s32 0, %v492
      %v494 = vrot.slane %v465, %v493
      %v495 = vlaneseq
      %v496 = vshrl.u32 %v495, 7
      %v497 = vsub.s32 0, %v496
      %v498 = vrot.slane %v479, %v497
      %v499 = vlaneseq
      %v500 = vshrl.u32 %v499, 7
      %v501 = vsub.s32 0, %v500
      %v502 = vrot.slane %v487, %v501
      %v503 = vlaneseq
      %v504 = vshrl.u32 %v503, 7
      %v505 = vsub.s32 0, %v504
      %v506 = vrot.slane %v489, %v505
      %v507 = vlaneseq
      %v508 = vshrl.u32 %v507, 7
      %v509 = vsub.s32 0, %v508
      %v510 = vrot.slane %v472, %v509
      %v511 = vlaneseq
      %v512 = vshrl.u32 %v511, 7
      %v513 = vsub.s32 0, %v512
      %v514 = vrot.slane %v486, %v513
      %v515 = vlaneseq
      %v516 = vshrl.u32 %v515, 7
      %v517 = vsub.s32 0, %v516
      %v518 = vrot.slane %v488, %v517
      %v519 = vlaneseq
      %v520 = vshrl.u32 %v519, 7
      %v521 = vsub.s32 0, %v520
      %v522 = vrot.slane %v490, %v521
      %v531 = vmul.f32 %v494, %v429
      %v532 = vmul.f32 %v494, %v430
      %v533 = vmul.f32 %v498, %v429
      %v534 = vmul.f32 %v498, %v430
      %v535 = vmul.f32 %v502, %v429
      %v536 = vmul.f32 %v502, %v430
      %v537 = vmul.f32 %v506, %v429
      %v538 = vmul.f32 %v506, %v430
      %v539 = vmul.f32 %v510, %v429
      %v540 = vmul.f32 %v510, %v430
      %v541 = vmul.f32 %v514, %v429
      %v542 = vmul.f32 %v514, %v430
      %v543 = vmul.f32 %v518, %v429
      %v544 = vmul.f32 %v518, %v430
      %v545 = vmul.f32 %v522, %v429
      %v546 = vmul.f32 %v522, %v430
      %v547 = vmul.f32 %v531, 1.442695
      %v548 = vpow.pop %v547
      %v549 = vmul.f32 %v532, 1.442695
      %v550 = vpow.pop %v549
      %v551 = vmul.f32 %v533, 1.442695
      %v552 = vpow.pop %v551
      %v553 = vmul.f32 %v534, 1.442695
      %v554 = vpow.pop %v553
      %v555 = vmul.f32 %v535, 1.442695
      %v556 = vpow.pop %v555
      %v557 = vmul.f32 %v536, 1.442695
      %v558 = vpow.pop %v557
      %v559 = vmul.f32 %v537, 1.442695
      %v560 = vpow.pop %v559
      %v561 = vmul.f32 %v538, 1.442695
      %v562 = vpow.pop %v561
      %v563 = vmul.f32 %v539, 1.442695
      %v564 = vpow.pop %v563
      %v565 = vmul.f32 %v540, 1.442695
      %v566 = vpow.pop %v565
      %v567 = vmul.f32 %v541, 1.442695
      %v568 = vpow.pop %v567
      %v569 = vmul.f32 %v542, 1.442695
      %v570 = vpow.pop %v569
      %v571 = vmul.f32 %v543, 1.442695
      %v572 = vpow.pop %v571
      %v573 = vmul.f32 %v544, 1.442695
      %v574 = vpow.pop %v573
      %v575 = vmul.f32 %v545, 1.442695
      %v576 = vpow.pop %v575
      %v577 = vmul.f32 %v546, 1.442695
      %v578 = vpow.pop %v577
      %vm579 = vcmask 523264
      %580 = vst.msk [vmem:[#allocation2] sm:$0xff] %vm579, %v548
      %581 = vst.msk [vmem:[#allocation2 + $0x8] sm:$0xff] %vm579, %v550
      %582 = vst.msk [vmem:[#allocation2 + $0x10] sm:$0xff] %vm579, %v552
      %583 = vst.msk [vmem:[#allocation2 + $0x18] sm:$0xff] %vm579, %v554
      %584 = vst.msk [vmem:[#allocation2 + $0x20] sm:$0xff] %vm579, %v556
      %585 = vst.msk [vmem:[#allocation2 + $0x28] sm:$0xff] %vm579, %v558
      %586 = vst.msk [vmem:[#allocation2 + $0x30] sm:$0xff] %vm579, %v560
      %587 = vst.msk [vmem:[#allocation2 + $0x38] sm:$0xff] %vm579, %v562
      %588 = vst.msk [vmem:[#allocation2 + $0x40] sm:$0xff] %vm579, %v564
      %589 = vst.msk [vmem:[#allocation2 + $0x48] sm:$0xff] %vm579, %v566
      %590 = vst.msk [vmem:[#allocation2 + $0x50] sm:$0xff] %vm579, %v568
      %591 = vst.msk [vmem:[#allocation2 + $0x58] sm:$0xff] %vm579, %v570
      %592 = vst.msk [vmem:[#allocation2 + $0x60] sm:$0xff] %vm579, %v572
      %593 = vst.msk [vmem:[#allocation2 + $0x68] sm:$0xff] %vm579, %v574
      %594 = vst.msk [vmem:[#allocation2 + $0x70] sm:$0xff] %vm579, %v576
      %595 = vst.msk [vmem:[#allocation2 + $0x78] sm:$0xff] %vm579, %v578
      %v596 = vlaneseq
      %v597 = vshrl.u32 %v596, 7
      %v598 = vsub.s32 0, %v597
      %v599 = vrot.slane %v427, %v598
      %601 = vbcast.lane.b32.xlu0 %v599, 256
      %v602 = vpop.permute.xlu0 %601
      %s604 = sor.u32 256, 8
      %605 = vbcast.lane.b32.xlu0 %v599, %s604
      %v606 = vpop.permute.xlu0 %605
      %v607 = vlaneseq
      %v608 = vshrl.u32 %v607, 7
      %v609 = vsub.s32 1, %v608
      %v610 = vrot.slane %v427, %v609
      %612 = vbcast.lane.b32.xlu0 %v610, 256
      %v613 = vpop.permute.xlu0 %612
      %s615 = sor.u32 256, 8
      %616 = vbcast.lane.b32.xlu0 %v610, %s615
      %v617 = vpop.permute.xlu0 %616
      %v618 = vlaneseq
      %v619 = vshrl.u32 %v618, 7
      %v620 = vsub.s32 2, %v619
      %v621 = vrot.slane %v427, %v620
      %623 = vbcast.lane.b32.xlu0 %v621, 256
      %v624 = vpop.permute.xlu0 %623
      %s626 = sor.u32 256, 8
      %627 = vbcast.lane.b32.xlu0 %v621, %s626
      %v628 = vpop.permute.xlu0 %627
      %v629 = vlaneseq
      %v630 = vshrl.u32 %v629, 7
      %v631 = vsub.s32 3, %v630
      %v632 = vrot.slane %v427, %v631
      %634 = vbcast.lane.b32.xlu0 %v632, 256
      %v635 = vpop.permute.xlu0 %634
      %s637 = sor.u32 256, 8
      %638 = vbcast.lane.b32.xlu0 %v632, %s637
      %v639 = vpop.permute.xlu0 %638
      %v640 = vlaneseq
      %v641 = vshrl.u32 %v640, 7
      %v642 = vsub.s32 4, %v641
      %v643 = vrot.slane %v427, %v642
      %645 = vbcast.lane.b32.xlu0 %v643, 256
      %v646 = vpop.permute.xlu0 %645
      %s648 = sor.u32 256, 8
      %649 = vbcast.lane.b32.xlu0 %v643, %s648
      %v650 = vpop.permute.xlu0 %649
      %v651 = vlaneseq
      %v652 = vshrl.u32 %v651, 7
      %v653 = vsub.s32 5, %v652
      %v654 = vrot.slane %v427, %v653
      %656 = vbcast.lane.b32.xlu0 %v654, 256
      %v657 = vpop.permute.xlu0 %656
      %s659 = sor.u32 256, 8
      %660 = vbcast.lane.b32.xlu0 %v654, %s659
      %v661 = vpop.permute.xlu0 %660
      %v662 = vlaneseq
      %v663 = vshrl.u32 %v662, 7
      %v664 = vsub.s32 6, %v663
      %v665 = vrot.slane %v427, %v664
      %667 = vbcast.lane.b32.xlu0 %v665, 256
      %v668 = vpop.permute.xlu0 %667
      %s670 = sor.u32 256, 8
      %671 = vbcast.lane.b32.xlu0 %v665, %s670
      %v672 = vpop.permute.xlu0 %671
      %v673 = vlaneseq
      %v674 = vshrl.u32 %v673, 7
      %v675 = vsub.s32 7, %v674
      %v676 = vrot.slane %v427, %v675
      %678 = vbcast.lane.b32.xlu0 %v676, 256
      %v679 = vpop.permute.xlu0 %678
      %s681 = sor.u32 256, 8
      %682 = vbcast.lane.b32.xlu0 %v676, %s681
      %v683 = vpop.permute.xlu0 %682
      %v685 = vcombine.high %v440, %v440
      %v687 = vunpack.c.l.s4 1966171168
      %v688 = vunpack.c.0.s8 %v687
      %v689 = vlaneseq
      %v690 = vshrl.u32 %v689, 7
      %v691 = vsub.s32 %v688, %v690
      %v692 = vrot.slane %v440, %v691
      %v694 = vunpack.c.l.s4 1966171168
      %v695 = vunpack.c.0.s8 %v694
      %v696 = vlaneseq
      %v697 = vshrl.u32 %v696, 7
      %v698 = vsub.s32 %v695, %v697
      %v699 = vrot.slane %v685, %v698
      %v700 = vcombine.high %v692, %v692
      %v701 = vcombine.high %v699, %v699
      %v703 = vunpack.c.l.s4 1966171168
      %v704 = vunpack.c.0.s8 %v703
      %v705 = vlaneseq
      %v706 = vshrl.u32 %v705, 7
      %v707 = vsub.s32 %v704, %v706
      %v708 = vrot.slane %v692, %v707
      %v710 = vunpack.c.l.s4 1966171168
      %v711 = vunpack.c.0.s8 %v710
      %v712 = vlaneseq
      %v713 = vshrl.u32 %v712, 7
      %v714 = vsub.s32 %v711, %v713
      %v715 = vrot.slane %v699, %v714
      %v717 = vunpack.c.l.s4 1966171168
      %v718 = vunpack.c.0.s8 %v717
      %v719 = vlaneseq
      %v720 = vshrl.u32 %v719, 7
      %v721 = vsub.s32 %v718, %v720
      %v722 = vrot.slane %v700, %v721
      %v724 = vunpack.c.l.s4 1966171168
      %v725 = vunpack.c.0.s8 %v724
      %v726 = vlaneseq
      %v727 = vshrl.u32 %v726, 7
      %v728 = vsub.s32 %v725, %v727
      %v729 = vrot.slane %v701, %v728
      %v730 = vcombine.high %v708, %v708
      %v731 = vcombine.high %v715, %v715
      %v732 = vcombine.high %v722, %v722
      %v733 = vcombine.high %v729, %v729
      %v734 = vlaneseq
      %v735 = vshrl.u32 %v734, 7
      %v736 = vsub.s32 0, %v735
      %v737 = vrot.slane %v708, %v736
      %v738 = vlaneseq
      %v739 = vshrl.u32 %v738, 7
      %v740 = vsub.s32 0, %v739
      %v741 = vrot.slane %v722, %v740
      %v742 = vlaneseq
      %v743 = vshrl.u32 %v742, 7
      %v744 = vsub.s32 0, %v743
      %v745 = vrot.slane %v730, %v744
      %v746 = vlaneseq
      %v747 = vshrl.u32 %v746, 7
      %v748 = vsub.s32 0, %v747
      %v749 = vrot.slane %v732, %v748
      %v750 = vlaneseq
      %v751 = vshrl.u32 %v750, 7
      %v752 = vsub.s32 0, %v751
      %v753 = vrot.slane %v715, %v752
      %v754 = vlaneseq
      %v755 = vshrl.u32 %v754, 7
      %v756 = vsub.s32 0, %v755
      %v757 = vrot.slane %v729, %v756
      %v758 = vlaneseq
      %v759 = vshrl.u32 %v758, 7
      %v760 = vsub.s32 0, %v759
      %v761 = vrot.slane %v731, %v760
      %v762 = vlaneseq
      %v763 = vshrl.u32 %v762, 7
      %v764 = vsub.s32 0, %v763
      %v765 = vrot.slane %v733, %v764
      %v774 = vmul.f32 %v602, %v737
      %v775 = vmul.f32 %v606, %v737
      %v776 = vmul.f32 %v613, %v741
      %v777 = vmul.f32 %v617, %v741
      %v778 = vmul.f32 %v624, %v745
      %v779 = vmul.f32 %v628, %v745
      %v780 = vmul.f32 %v635, %v749
      %v781 = vmul.f32 %v639, %v749
      %v782 = vmul.f32 %v646, %v753
      %v783 = vmul.f32 %v650, %v753
      %v784 = vmul.f32 %v657, %v757
      %v785 = vmul.f32 %v661, %v757
      %v786 = vmul.f32 %v668, %v761
      %v787 = vmul.f32 %v672, %v761
      %v788 = vmul.f32 %v679, %v765
      %v789 = vmul.f32 %v683, %v765
      %790 = vst.msk [vmem:[#allocation3] sm:$0xff] %vm579, %v774
      %791 = vst.msk [vmem:[#allocation3 + $0x8] sm:$0xff] %vm579, %v775
      %792 = vst.msk [vmem:[#allocation3 + $0x10] sm:$0xff] %vm579, %v776
      %793 = vst.msk [vmem:[#allocation3 + $0x18] sm:$0xff] %vm579, %v777
      %794 = vst.msk [vmem:[#allocation3 + $0x20] sm:$0xff] %vm579, %v778
      %795 = vst.msk [vmem:[#allocation3 + $0x28] sm:$0xff] %vm579, %v779
      %796 = vst.msk [vmem:[#allocation3 + $0x30] sm:$0xff] %vm579, %v780
      %797 = vst.msk [vmem:[#allocation3 + $0x38] sm:$0xff] %vm579, %v781
      %798 = vst.msk [vmem:[#allocation3 + $0x40] sm:$0xff] %vm579, %v782
      %799 = vst.msk [vmem:[#allocation3 + $0x48] sm:$0xff] %vm579, %v783
      %800 = vst.msk [vmem:[#allocation3 + $0x50] sm:$0xff] %vm579, %v784
      %801 = vst.msk [vmem:[#allocation3 + $0x58] sm:$0xff] %vm579, %v785
      %802 = vst.msk [vmem:[#allocation3 + $0x60] sm:$0xff] %vm579, %v786
      %803 = vst.msk [vmem:[#allocation3 + $0x68] sm:$0xff] %vm579, %v787
      %804 = vst.msk [vmem:[#allocation3 + $0x70] sm:$0xff] %vm579, %v788
      %805 = vst.msk [vmem:[#allocation3 + $0x78] sm:$0xff] %vm579, %v789
      %v806 = vld [vmem:[#allocation4] sm:$0xff]
      %v807 = vld [vmem:[#allocation4 + $0x8] sm:$0xff]
      %v808 = vld [vmem:[#allocation2] sm:$0xff]
      %v809 = vld [vmem:[#allocation2 + $0x8] sm:$0xff]
      %v810 = vmul.f32 %v808, %v806
      %v811 = vmul.f32 %v809, %v807
      %v812 = vld [vmem:[#allocation3] sm:$0xff]
      %v813 = vld [vmem:[#allocation3 + $0x8] sm:$0xff]
      %v814 = vadd.f32 %v810, %v812
      %v815 = vadd.f32 %v811, %v813
      %816 = vst.msk [vmem:[#allocation3] sm:$0xff] %vm579, %v814
      %817 = vst.msk [vmem:[#allocation3 + $0x8] sm:$0xff] %vm579, %v815
      %s818 = scalar_lea.vmem [#allocation2], 16
      %v819 = vld [vmem:[%s818] sm:$0xff]
      %v820 = vld [vmem:[%s818 + $0x8] sm:$0xff]
      %v821 = vmul.f32 %v819, %v814
      %v822 = vmul.f32 %v820, %v815
      %s823 = scalar_lea.vmem [#allocation3], 16
      %v824 = vld [vmem:[%s823] sm:$0xff]
      %v825 = vld [vmem:[%s823 + $0x8] sm:$0xff]
      %v826 = vadd.f32 %v821, %v824
      %v827 = vadd.f32 %v822, %v825
      %828 = vst.msk [vmem:[%s823] sm:$0xff] %vm579, %v826
      %829 = vst.msk [vmem:[%s823 + $0x8] sm:$0xff] %vm579, %v827
      %s830 = scalar_lea.vmem [#allocation2], 32
      %v831 = vld [vmem:[%s830] sm:$0xff]
      %v832 = vld [vmem:[%s830 + $0x8] sm:$0xff]
      %v833 = vmul.f32 %v831, %v826
      %v834 = vmul.f32 %v832, %v827
      %s835 = scalar_lea.vmem [#allocation3], 32
      %v836 = vld [vmem:[%s835] sm:$0xff]
      %v837 = vld [vmem:[%s835 + $0x8] sm:$0xff]
      %v838 = vadd.f32 %v833, %v836
      %v839 = vadd.f32 %v834, %v837
      %840 = vst.msk [vmem:[%s835] sm:$0xff] %vm579, %v838
      %841 = vst.msk [vmem:[%s835 + $0x8] sm:$0xff] %vm579, %v839
      %s842 = scalar_lea.vmem [#allocation2], 48
      %v843 = vld [vmem:[%s842] sm:$0xff]
      %v844 = vld [vmem:[%s842 + $0x8] sm:$0xff]
      %v845 = vmul.f32 %v843, %v838
      %v846 = vmul.f32 %v844, %v839
      %s847 = scalar_lea.vmem [#allocation3], 48
      %v848 = vld [vmem:[%s847] sm:$0xff]
      %v849 = vld [vmem:[%s847 + $0x8] sm:$0xff]
      %v850 = vadd.f32 %v845, %v848
      %v851 = vadd.f32 %v846, %v849
      %852 = vst.msk [vmem:[%s847] sm:$0xff] %vm579, %v850
      %853 = vst.msk [vmem:[%s847 + $0x8] sm:$0xff] %vm579, %v851
      %s854 = scalar_lea.vmem [#allocation2], 64
      %v855 = vld [vmem:[%s854] sm:$0xff]
      %v856 = vld [vmem:[%s854 + $0x8] sm:$0xff]
      %v857 = vmul.f32 %v855, %v850
      %v858 = vmul.f32 %v856, %v851
      %s859 = scalar_lea.vmem [#allocation3], 64
      %v860 = vld [vmem:[%s859] sm:$0xff]
      %v861 = vld [vmem:[%s859 + $0x8] sm:$0xff]
      %v862 = vadd.f32 %v857, %v860
      %v863 = vadd.f32 %v858, %v861
      %864 = vst.msk [vmem:[%s859] sm:$0xff] %vm579, %v862
      %865 = vst.msk [vmem:[%s859 + $0x8] sm:$0xff] %vm579, %v863
      %s866 = scalar_lea.vmem [#allocation2], 80
      %v867 = vld [vmem:[%s866] sm:$0xff]
      %v868 = vld [vmem:[%s866 + $0x8] sm:$0xff]
      %v869 = vmul.f32 %v867, %v862
      %v870 = vmul.f32 %v868, %v863
      %s871 = scalar_lea.vmem [#allocation3], 80
      %v872 = vld [vmem:[%s871] sm:$0xff]
      %v873 = vld [vmem:[%s871 + $0x8] sm:$0xff]
      %v874 = vadd.f32 %v869, %v872
      %v875 = vadd.f32 %v870, %v873
      %876 = vst.msk [vmem:[%s871] sm:$0xff] %vm579, %v874
      %877 = vst.msk [vmem:[%s871 + $0x8] sm:$0xff] %vm579, %v875
      %s878 = scalar_lea.vmem [#allocation2], 96
      %v879 = vld [vmem:[%s878] sm:$0xff]
      %v880 = vld [vmem:[%s878 + $0x8] sm:$0xff]
      %v881 = vmul.f32 %v879, %v874
      %v882 = vmul.f32 %v880, %v875
      %s883 = scalar_lea.vmem [#allocation3], 96
      %v884 = vld [vmem:[%s883] sm:$0xff]
      %v885 = vld [vmem:[%s883 + $0x8] sm:$0xff]
      %v886 = vadd.f32 %v881, %v884
      %v887 = vadd.f32 %v882, %v885
      %888 = vst.msk [vmem:[%s883] sm:$0xff] %vm579, %v886
      %889 = vst.msk [vmem:[%s883 + $0x8] sm:$0xff] %vm579, %v887
      %s890 = scalar_lea.vmem [#allocation2], 112
      %v891 = vld [vmem:[%s890] sm:$0xff]
      %v892 = vld [vmem:[%s890 + $0x8] sm:$0xff]
      %v893 = vmul.f32 %v891, %v886
      %v894 = vmul.f32 %v892, %v887
      %s895 = scalar_lea.vmem [#allocation3], 112
      %v896 = vld [vmem:[%s895] sm:$0xff]
      %v897 = vld [vmem:[%s895 + $0x8] sm:$0xff]
      %v898 = vadd.f32 %v893, %v896
      %v899 = vadd.f32 %v894, %v897
      %900 = vst.msk [vmem:[%s895] sm:$0xff] %vm579, %v898
      %901 = vst.msk [vmem:[%s895 + $0x8] sm:$0xff] %vm579, %v899
      %902 = vst.msk [vmem:[#allocation4] sm:$0xff] %vm579, %v898
      %903 = vst.msk [vmem:[#allocation4 + $0x8] sm:$0xff] %vm579, %v899
      %v904 = vld [vmem:[#allocation3] sm:$0xff]
      %v905 = vld [vmem:[#allocation3 + $0x8] sm:$0xff]
      %v906 = vld [vmem:[#allocation3 + $0x10] sm:$0xff]
      %v907 = vld [vmem:[#allocation3 + $0x18] sm:$0xff]
      %v908 = vld [vmem:[#allocation3 + $0x20] sm:$0xff]
      %v909 = vld [vmem:[#allocation3 + $0x28] sm:$0xff]
      %v910 = vld [vmem:[#allocation3 + $0x30] sm:$0xff]
      %v911 = vld [vmem:[#allocation3 + $0x38] sm:$0xff]
      %v912 = vld [vmem:[#allocation3 + $0x40] sm:$0xff]
      %v913 = vld [vmem:[#allocation3 + $0x48] sm:$0xff]
      %v914 = vld [vmem:[#allocation3 + $0x50] sm:$0xff]
      %v915 = vld [vmem:[#allocation3 + $0x58] sm:$0xff]
      %v916 = vld [vmem:[#allocation3 + $0x60] sm:$0xff]
      %v917 = vld [vmem:[#allocation3 + $0x68] sm:$0xff]
      %v918 = vld [vmem:[#allocation3 + $0x70] sm:$0xff]
      %v919 = vld [vmem:[#allocation3 + $0x78] sm:$0xff]
      %v920 = vlaneseq
      %v921 = vshrl.u32 %v920, 7
      %v922 = vsub.s32 0, %v921
      %v923 = vrot.slane %v428, %v922
      %925 = vbcast.lane.b32.xlu0 %v923, 256
      %v926 = vpop.permute.xlu0 %925
      %s928 = sor.u32 256, 8
      %929 = vbcast.lane.b32.xlu0 %v923, %s928
      %v930 = vpop.permute.xlu0 %929
      %v931 = vlaneseq
      %v932 = vshrl.u32 %v931, 7
      %v933 = vsub.s32 1, %v932
      %v934 = vrot.slane %v428, %v933
      %936 = vbcast.lane.b32.xlu0 %v934, 256
      %v937 = vpop.permute.xlu0 %936
      %s939 = sor.u32 256, 8
      %940 = vbcast.lane.b32.xlu0 %v934, %s939
      %v941 = vpop.permute.xlu0 %940
      %v942 = vlaneseq
      %v943 = vshrl.u32 %v942, 7
      %v944 = vsub.s32 2, %v943
      %v945 = vrot.slane %v428, %v944
      %947 = vbcast.lane.b32.xlu0 %v945, 256
      %v948 = vpop.permute.xlu0 %947
      %s950 = sor.u32 256, 8
      %951 = vbcast.lane.b32.xlu0 %v945, %s950
      %v952 = vpop.permute.xlu0 %951
      %v953 = vlaneseq
      %v954 = vshrl.u32 %v953, 7
      %v955 = vsub.s32 3, %v954
      %v956 = vrot.slane %v428, %v955
      %958 = vbcast.lane.b32.xlu0 %v956, 256
      %v959 = vpop.permute.xlu0 %958
      %s961 = sor.u32 256, 8
      %962 = vbcast.lane.b32.xlu0 %v956, %s961
      %v963 = vpop.permute.xlu0 %962
      %v964 = vlaneseq
      %v965 = vshrl.u32 %v964, 7
      %v966 = vsub.s32 4, %v965
      %v967 = vrot.slane %v428, %v966
      %969 = vbcast.lane.b32.xlu0 %v967, 256
      %v970 = vpop.permute.xlu0 %969
      %s972 = sor.u32 256, 8
      %973 = vbcast.lane.b32.xlu0 %v967, %s972
      %v974 = vpop.permute.xlu0 %973
      %v975 = vlaneseq
      %v976 = vshrl.u32 %v975, 7
      %v977 = vsub.s32 5, %v976
      %v978 = vrot.slane %v428, %v977
      %980 = vbcast.lane.b32.xlu0 %v978, 256
      %v981 = vpop.permute.xlu0 %980
      %s983 = sor.u32 256, 8
      %984 = vbcast.lane.b32.xlu0 %v978, %s983
      %v985 = vpop.permute.xlu0 %984
      %v986 = vlaneseq
      %v987 = vshrl.u32 %v986, 7
      %v988 = vsub.s32 6, %v987
      %v989 = vrot.slane %v428, %v988
      %991 = vbcast.lane.b32.xlu0 %v989, 256
      %v992 = vpop.permute.xlu0 %991
      %s994 = sor.u32 256, 8
      %995 = vbcast.lane.b32.xlu0 %v989, %s994
      %v996 = vpop.permute.xlu0 %995
      %v997 = vlaneseq
      %v998 = vshrl.u32 %v997, 7
      %v999 = vsub.s32 7, %v998
      %v1000 = vrot.slane %v428, %v999
      %1002 = vbcast.lane.b32.xlu0 %v1000, 256
      %v1003 = vpop.permute.xlu0 %1002
      %s1005 = sor.u32 256, 8
      %1006 = vbcast.lane.b32.xlu0 %v1000, %s1005
      %v1007 = vpop.permute.xlu0 %1006
      %v1008 = vmul.f32 %v904, %v926
      %v1009 = vmul.f32 %v905, %v930
      %v1010 = vmul.f32 %v906, %v937
      %v1011 = vmul.f32 %v907, %v941
      %v1012 = vmul.f32 %v908, %v948
      %v1013 = vmul.f32 %v909, %v952
      %v1014 = vmul.f32 %v910, %v959
      %v1015 = vmul.f32 %v911, %v963
      %v1016 = vmul.f32 %v912, %v970
      %v1017 = vmul.f32 %v913, %v974
      %v1018 = vmul.f32 %v914, %v981
      %v1019 = vmul.f32 %v915, %v985
      %v1020 = vmul.f32 %v916, %v992
      %v1021 = vmul.f32 %v917, %v996
      %v1022 = vmul.f32 %v918, %v1003
      %v1023 = vmul.f32 %v919, %v1007
      %v1024 = vsel %vm579, %v1008, 0.0
      %v1025 = vsel %vm579, %v1009, 0.0
      %v1026 = vadd.f32 %v1024, %v1025
      %v1027 = vrot.slane %v1026, 4
      %v1028 = vadd.f32 %v1026, %v1027
      %v1029 = vrot.slane %v1028, 2
      %v1030 = vadd.f32 %v1028, %v1029
      %v1031 = vrot.slane %v1030, 1
      %v1032 = vadd.f32 %v1030, %v1031
      %v1033 = vsel %vm579, %v1010, 0.0
      %v1034 = vsel %vm579, %v1011, 0.0
      %v1035 = vadd.f32 %v1033, %v1034
      %v1036 = vrot.slane %v1035, 4
      %v1037 = vadd.f32 %v1035, %v1036
      %v1038 = vrot.slane %v1037, 2
      %v1039 = vadd.f32 %v1037, %v1038
      %v1040 = vrot.slane %v1039, 1
      %v1041 = vadd.f32 %v1039, %v1040
      %v1042 = vsel %vm579, %v1012, 0.0
      %v1043 = vsel %vm579, %v1013, 0.0
      %v1044 = vadd.f32 %v1042, %v1043
      %v1045 = vrot.slane %v1044, 4
      %v1046 = vadd.f32 %v1044, %v1045
      %v1047 = vrot.slane %v1046, 2
      %v1048 = vadd.f32 %v1046, %v1047
      %v1049 = vrot.slane %v1048, 1
      %v1050 = vadd.f32 %v1048, %v1049
      %v1051 = vsel %vm579, %v1014, 0.0
      %v1052 = vsel %vm579, %v1015, 0.0
      %v1053 = vadd.f32 %v1051, %v1052
      %v1054 = vrot.slane %v1053, 4
      %v1055 = vadd.f32 %v1053, %v1054
      %v1056 = vrot.slane %v1055, 2
      %v1057 = vadd.f32 %v1055, %v1056
      %v1058 = vrot.slane %v1057, 1
      %v1059 = vadd.f32 %v1057, %v1058
      %v1060 = vsel %vm579, %v1016, 0.0
      %v1061 = vsel %vm579, %v1017, 0.0
      %v1062 = vadd.f32 %v1060, %v1061
      %v1063 = vrot.slane %v1062, 4
      %v1064 = vadd.f32 %v1062, %v1063
      %v1065 = vrot.slane %v1064, 2
      %v1066 = vadd.f32 %v1064, %v1065
      %v1067 = vrot.slane %v1066, 1
      %v1068 = vadd.f32 %v1066, %v1067
      %v1069 = vsel %vm579, %v1018, 0.0
      %v1070 = vsel %vm579, %v1019, 0.0
      %v1071 = vadd.f32 %v1069, %v1070
      %v1072 = vrot.slane %v1071, 4
      %v1073 = vadd.f32 %v1071, %v1072
      %v1074 = vrot.slane %v1073, 2
      %v1075 = vadd.f32 %v1073, %v1074
      %v1076 = vrot.slane %v1075, 1
      %v1077 = vadd.f32 %v1075, %v1076
      %v1078 = vsel %vm579, %v1020, 0.0
      %v1079 = vsel %vm579, %v1021, 0.0
      %v1080 = vadd.f32 %v1078, %v1079
      %v1081 = vrot.slane %v1080, 4
      %v1082 = vadd.f32 %v1080, %v1081
      %v1083 = vrot.slane %v1082, 2
      %v1084 = vadd.f32 %v1082, %v1083
      %v1085 = vrot.slane %v1084, 1
      %v1086 = vadd.f32 %v1084, %v1085
      %v1087 = vsel %vm579, %v1022, 0.0
      %v1088 = vsel %vm579, %v1023, 0.0
      %v1089 = vadd.f32 %v1087, %v1088
      %v1090 = vrot.slane %v1089, 4
      %v1091 = vadd.f32 %v1089, %v1090
      %v1092 = vrot.slane %v1091, 2
      %v1093 = vadd.f32 %v1091, %v1092
      %v1094 = vrot.slane %v1093, 1
      %v1095 = vadd.f32 %v1093, %v1094
      %v1096 = vld [vmem:[%s6] sm:$0x1]
      %v1098 = vlaneseq
      %v1099 = vshrl.u32 %v1098, 7
      %v1100 = vsub.s32 0, %v1099
      %v1101 = vrot.slane %v1096, %v1100
      %v1103 = vmul.f32 %v1101, %v424
      %v1105 = vrot.slane %v1103, 1
      %v1106 = vrot.slane %v1103, 2
      %v1107 = vrot.slane %v1103, 3
      %v1108 = vrot.slane %v1103, 4
      %v1109 = vrot.slane %v1103, 5
      %v1110 = vrot.slane %v1103, 6
      %v1111 = vrot.slane %v1103, 7
      %v1120 = vadd.f32 %v1032, %v1103
      %v1121 = vadd.f32 %v1041, %v1105
      %v1122 = vadd.f32 %v1050, %v1106
      %v1123 = vadd.f32 %v1059, %v1107
      %v1124 = vadd.f32 %v1068, %v1108
      %v1125 = vadd.f32 %v1077, %v1109
      %v1126 = vadd.f32 %v1086, %v1110
      %v1127 = vadd.f32 %v1095, %v1111
      %v1128 = vxor.u32 %v425, 2147483648
      %v1129 = vmul.f32 %v1128, 1.442695
      %v1130 = vpow.pop %v1129
      %v1131 = vadd.f32 %v1130, 1.0
      %v1132 = vrcp.pop %v1131
      %v1133 = vmul.f32 1.0, %v1132
      %v1134 = vmul.f32 %v425, %v1133
      %v1136 = vrot.slane %v1134, 1
      %v1137 = vrot.slane %v1134, 2
      %v1138 = vrot.slane %v1134, 3
      %v1139 = vrot.slane %v1134, 4
      %v1140 = vrot.slane %v1134, 5
      %v1141 = vrot.slane %v1134, 6
      %v1142 = vrot.slane %v1134, 7
      %v1151 = vmul.f32 %v1120, %v1134
      %v1152 = vmul.f32 %v1121, %v1136
      %v1153 = vmul.f32 %v1122, %v1137
      %v1154 = vmul.f32 %v1123, %v1138
      %v1155 = vmul.f32 %v1124, %v1139
      %v1156 = vmul.f32 %v1125, %v1140
      %v1157 = vmul.f32 %v1126, %v1141
      %v1158 = vmul.f32 %v1127, %v1142
      %v1167 = vrot.slane %v1152, 7
      %vm1168 = vcmask 1041409
      %v1169 = vsel %vm1168, %v1167, %v1151
      %v1170 = vrot.slane %v1153, 6
      %vm1171 = vcmask 1042434
      %v1172 = vsel %vm1171, %v1170, %v1169
      %v1173 = vrot.slane %v1154, 5
      %vm1174 = vcmask 1043459
      %v1175 = vsel %vm1174, %v1173, %v1172
      %v1176 = vrot.slane %v1155, 4
      %vm1177 = vcmask 1044484
      %v1178 = vsel %vm1177, %v1176, %v1175
      %v1179 = vrot.slane %v1156, 3
      %vm1180 = vcmask 1045509
      %v1181 = vsel %vm1180, %v1179, %v1178
      %v1182 = vrot.slane %v1157, 2
      %vm1183 = vcmask 1046534
      %v1184 = vsel %vm1183, %v1182, %v1181
      %v1185 = vrot.slane %v1158, 1
      %vm1186 = vcmask 1047559
      %v1187 = vsel %vm1186, %v1185, %v1184
      %1189 = vst.msk [vmem:[%s416] sm:$0xff] %vm579, %v1187
      %p1190 = scmp.lt.s32.totalorder %s22, 1
      %s1191 = scalar_select %p1190, %s22, 1
      %p1192 = scmp.lt.s32.totalorder %s23, 0
      %s1193 = scalar_select %p1192, %s23, 0
      %s1194 = sadd.s32 %s1193, %s1191
      %s1195 = smul.addr %s1194, 8
      %s1196 = scalar_lea.vmem %s7, %s1195
      // Predicated region
      $region53: #{forward.18} parent=47 // pred_check
        %p1197 = pneg %p232
      $region54: #{forward.18} parent=47 // pred_check_branch
        %1199 = sbr.rel (%p1197) target = $region56
      $region55: #{forward.18} parent=47 // pred_region
        _
      $region56: #{forward.18} parent=47 // pred_fallthru
        _
    $region48: #{forward.18} parent=5 // pred_fallthru
      _
    %p1200 = scmp.le.s32.totalorder 2, %s13
    // Predicated region
    $region57: #{forward.18} parent=5 // pred_check
      %p1201 = pneg %p1200
    $region58: #{forward.18} parent=5 // pred_check_branch
      %1203 = sbr.rel (%p1201) target = $region60
    $region59: #{forward.18} parent=5 // pred_region
      %s1204 = ssub.s32 %s13, 2
      // Predicated region
      $region61: #{forward.18} parent=59 // pred_check
        %p1205 = pneg %p238
      $region62: #{forward.18} parent=59 // pred_check_branch
        %1207 = sbr.rel (%p1205) target = $region64
      $region63: #{forward.18} parent=59 // pred_region
        %p1208 = scmp.lt.s32.totalorder %s24, 1
        %s1209 = scalar_select %p1208, %s24, 1
        %p1210 = scmp.lt.s32.totalorder %s25, 0
        %s1211 = scalar_select %p1210, %s25, 0
        %s1212 = sadd.s32 %s1211, %s1209
        %s1213 = smul.addr %s1212, 8
        %s1214 = scalar_lea.vmem %s7, %s1213
      $region64: #{forward.18} parent=59 // pred_fallthru
        _
    $region60: #{forward.18} parent=5 // pred_fallthru
      _
  $region6: #{forward.18} parent=0 // loop_footer
    %s17 = sadd.s32 1, %s13
  $region7: #{forward.18} parent=0 // loop_footer_branch
    %12 = sbr.rel target = $region3
  $region8: #{forward.18} parent=0 // loop_exit
    _

// kernel: forward.21
$region0: #{forward.21}
  #allocation0 [shape = 'u32[]', space=smem, size = 0x4, offset = 0x4, fixed_abs, tag = 'smem constant byte address 0x4 - core index']
  #allocation1 [shape = 'u32[144,128]{1,0:T(1,128)}', space=vmem, size = 0x12000, scoped, tag = 'internal scratch']
  %s0 = inlined_call_operand.vmem [shape: f32[16,32], index: 0, kind: input, shape index: {}]
  %s1 = inlined_call_operand.vmem [shape: f32[16,32], index: 1, kind: input, shape index: {}]
  %s2 = inlined_call_operand.vmem [shape: f32[1,32], index: 2, kind: input, shape index: {}]
  %s3 = inlined_call_operand.vmem [shape: f32[1,32], index: 3, kind: input, shape index: {}]
  %s4 = inlined_call_operand.vmem [shape: bf16[32,64], index: 4, kind: input, shape index: {}]
  %s5 = inlined_call_operand.vmem [shape: bf16[32,64], index: 5, kind: input, shape index: {}]
  %s6 = inlined_call_operand.vmem [shape: f32[16,64], index: 6, kind: output, shape index: {0}]
  %s7 = inlined_call_operand.vmem [shape: f32[16,64], index: 7, kind: output, shape index: {1}]
  %s8 = inlined_call_operand.vmem [shape: f32[16,32], index: 8, kind: output, shape index: {2}]
  %9 = xla_tuple %s6, %s7, %s8
  %s10 = sld [smem:[#allocation0]]
  $region50: #{forward.21} parent=0
    _
  %s12 = ssub.s32 1, %s10
  %s13 = scalar_select 0, %s12, %s10
  // Predicated region
  $region2: #{forward.21} parent=0 // pred_check
    _
  $region3: #{forward.21} parent=0 // pred_check_branch
    %15 = sbr.rel (0) target = $region5
  $region4: #{forward.21} parent=0 // pred_region
    _
  $region5: #{forward.21} parent=0 // pred_fallthru
    _
  // Predicated region
  $region6: #{forward.21} parent=0 // pred_check
    _
  $region7: #{forward.21} parent=0 // pred_check_branch
    %17 = sbr.rel (0) target = $region9
  $region8: #{forward.21} parent=0 // pred_region
    _
  $region9: #{forward.21} parent=0 // pred_fallthru
    _
  // Predicated region
  $region10: #{forward.21} parent=0 // pred_check
    _
  $region11: #{forward.21} parent=0 // pred_check_branch
    %19 = sbr.rel (0) target = $region13
  $region12: #{forward.21} parent=0 // pred_region
    _
  $region13: #{forward.21} parent=0 // pred_fallthru
    _
  // Predicated region
  $region14: #{forward.21} parent=0 // pred_check
    _
  $region15: #{forward.21} parent=0 // pred_check_branch
    %21 = sbr.rel (0) target = $region17
  $region16: #{forward.21} parent=0 // pred_region
    _
  $region17: #{forward.21} parent=0 // pred_fallthru
    _
  // Predicated region
  $region18: #{forward.21} parent=0 // pred_check
    _
  $region19: #{forward.21} parent=0 // pred_check_branch
    %23 = sbr.rel (0) target = $region21
  $region20: #{forward.21} parent=0 // pred_region
    _
  $region21: #{forward.21} parent=0 // pred_fallthru
    _
  // Predicated region
  $region22: #{forward.21} parent=0 // pred_check
    _
  $region23: #{forward.21} parent=0 // pred_check_branch
    %25 = sbr.rel (0) target = $region25
  $region24: #{forward.21} parent=0 // pred_region
    _
  $region25: #{forward.21} parent=0 // pred_fallthru
    _
  %v27 = vld [vmem:[%s0] sm:$0xff]
  %v28 = vld [vmem:[%s0 + $0x8] sm:$0xff]
  %v29 = vld [vmem:[%s1] sm:$0xff]
  %v30 = vld [vmem:[%s1 + $0x8] sm:$0xff]
  %v31 = vadd.f32 %v27, %v29
  %v32 = vadd.f32 %v28, %v30
  %v33 = vld [vmem:[%s2] sm:$0x1]
  %v34 = vld [vmem:[%s3] sm:$0x1]
  %vm35 = vcmask 261120
  %v36 = vsel %vm35, %v31, 0.0
  %37 = vadd.xlane.f32.xlu0 %v36
  %v38 = vpop.xlane.xlu0 %37
  %v39 = vsel %vm35, %v32, 0.0
  %40 = vadd.xlane.f32.xlu0 %v39
  %v41 = vpop.xlane.xlu0 %40
  %v42 = vrcp.pop 32.0
  %v43 = vmul.f32 %v38, %v42
  %v44 = vmul.f32 %v41, %v42
  %v45 = vsub.f32 %v31, %v43
  %v46 = vsub.f32 %v32, %v44
  %v47 = vmul.f32 %v45, %v45
  %v48 = vmul.f32 %v46, %v46
  %v49 = vsel %vm35, %v47, 0.0
  %50 = vadd.xlane.f32.xlu0 %v49
  %v51 = vpop.xlane.xlu0 %50
  %v52 = vsel %vm35, %v48, 0.0
  %53 = vadd.xlane.f32.xlu0 %v52
  %v54 = vpop.xlane.xlu0 %53
  %v55 = vmul.f32 %v51, %v42
  %v56 = vmul.f32 %v54, %v42
  %v57 = vadd.f32 %v55, 1e-05
  %v58 = vadd.f32 %v56, 1e-05
  %v59 = vrsqrt.pop %v57
  %v60 = vrsqrt.pop %v58
  %v61 = vmul.f32 %v45, %v59
  %v62 = vmul.f32 %v46, %v60
  %v64 = vlaneseq
  %v65 = vshrl.u32 %v64, 7
  %v66 = vsub.s32 0, %v65
  %v67 = vrot.slane %v33, %v66
  %v69 = vmul.f32 %v61, %v67
  %v70 = vmul.f32 %v62, %v67
  %v72 = vlaneseq
  %v73 = vshrl.u32 %v72, 7
  %v74 = vsub.s32 0, %v73
  %v75 = vrot.slane %v34, %v74
  %v77 = vadd.f32 %v69, %v75
  %v78 = vadd.f32 %v70, %v75
  %v79 = vpack.c.bf16 %v78, %v77
  %v80 = vld [vmem:[%s4] sm:$0xf]
  %v81 = vld [vmem:[%s4 + $0x4] sm:$0xf]
  %v82 = vld [vmem:[%s4 + $0x8] sm:$0xf]
  %v83 = vld [vmem:[%s4 + $0xc] sm:$0xf]
  %v88 = vunpack.c.l.b16 %v80
  %v89 = vunpack.c.l.b16 %v81
  %v90 = vunpack.c.l.b16 %v82
  %v91 = vunpack.c.l.b16 %v83
  %v92 = vpack.c.b16 %v89, %v88
  %v93 = vpack.c.b16 %v91, %v90
  %v97 = vsel %vm35, %v79, 0
  %99 = vmatprep.subr.bf16.mxu0 0
  %100 = vmatpush1.bf16.msra.mxu0 %v92
  %101 = vmatprep.subr.bf16.mxu0 0
  %102 = vmatpush1.bf16.msra.mxu0 %v93
  %103 = vmatprep.subr.bf16.mxu0 0
  %104 = vmatpush1.bf16.msra.mxu0 0
  %105 = vmatprep.subr.bf16.mxu0 0
  %106 = vmatpush1.bf16.msra.mxu0 0
  %107 = vmatprep.subr.bf16.mxu0 0
  %108 = vmatpush1.bf16.msra.mxu0 0
  %109 = vmatprep.subr.bf16.mxu0 0
  %110 = vmatpush1.bf16.msra.mxu0 0
  %111 = vmatprep.subr.bf16.mxu0 0
  %112 = vmatpush1.bf16.msra.mxu0 0
  %113 = vmatprep.subr.bf16.mxu0 0
  %114 = vmatpush1.bf16.msra.mxu0 0
  %115 = vmatprep.subr.bf16.mxu0 0
  %116 = vmatpush1.bf16.msra.mxu0 0
  %117 = vmatprep.subr.bf16.mxu0 0
  %118 = vmatpush1.bf16.msra.mxu0 0
  %119 = vmatprep.subr.bf16.mxu0 0
  %120 = vmatpush1.bf16.msra.mxu0 0
  %121 = vmatprep.subr.bf16.mxu0 0
  %122 = vmatpush1.bf16.msra.mxu0 0
  %123 = vmatprep.subr.bf16.mxu0 0
  %124 = vmatpush1.bf16.msra.mxu0 0
  %125 = vmatprep.subr.bf16.mxu0 0
  %126 = vmatpush1.bf16.msra.mxu0 0
  %127 = vmatprep.subr.bf16.mxu0 0
  %128 = vmatpush1.bf16.msra.mxu0 0
  %129 = vmatprep.subr.bf16.mxu0 0
  %130 = vmatpush1.bf16.msra.mxu0 0
  %131 = vmatprep.mubr.bf16.mxu0 0
  %132 = vmatmul.mubr.bf16.gmra.mrb[0].mxu0 %v97
  %v133 = vpop.f32.mrb[0].mxu0
  %v134 = vadd.f32 0.0, %v133
  %v135 = vpop.f32.mrb[0].mxu0
  %v136 = vpop.f32.mrb[0].mxu0
  %v137 = vadd.f32 0.0, %v136
  %v138 = vpop.f32.mrb[0].mxu0
  %139 = vdwg.mxu0
  %vm140 = vcmask 523264
  %141 = vst.msk [vmem:[%s6] sm:$0xff] %vm140, %v134
  %142 = vst.msk [vmem:[%s6 + $0x8] sm:$0xff] %vm140, %v137
  %v143 = vld [vmem:[%s5] sm:$0xf]
  %v144 = vld [vmem:[%s5 + $0x4] sm:$0xf]
  %v145 = vld [vmem:[%s5 + $0x8] sm:$0xf]
  %v146 = vld [vmem:[%s5 + $0xc] sm:$0xf]
  %v151 = vunpack.c.l.b16 %v143
  %v152 = vunpack.c.l.b16 %v144
  %v153 = vunpack.c.l.b16 %v145
  %v154 = vunpack.c.l.b16 %v146
  %v155 = vpack.c.b16 %v152, %v151
  %v156 = vpack.c.b16 %v154, %v153
  %159 = vmatprep.subr.bf16.mxu0 0
  %160 = vmatpush1.bf16.msra.mxu0 %v155
  %161 = vmatprep.subr.bf16.mxu0 0
  %162 = vmatpush1.bf16.msra.mxu0 %v156
  %163 = vmatprep.subr.bf16.mxu0 0
  %164 = vmatpush1.bf16.msra.mxu0 0
  %165 = vmatprep.subr.bf16.mxu0 0
  %166 = vmatpush1.bf16.msra.mxu0 0
  %167 = vmatprep.subr.bf16.mxu0 0
  %168 = vmatpush1.bf16.msra.mxu0 0
  %169 = vmatprep.subr.bf16.mxu0 0
  %170 = vmatpush1.bf16.msra.mxu0 0
  %171 = vmatprep.subr.bf16.mxu0 0
  %172 = vmatpush1.bf16.msra.mxu0 0
  %173 = vmatprep.subr.bf16.mxu0 0
  %174 = vmatpush1.bf16.msra.mxu0 0
  %175 = vmatprep.subr.bf16.mxu0 0
  %176 = vmatpush1.bf16.msra.mxu0 0
  %177 = vmatprep.subr.bf16.mxu0 0
  %178 = vmatpush1.bf16.msra.mxu0 0
  %179 = vmatprep.subr.bf16.mxu0 0
  %180 = vmatpush1.bf16.msra.mxu0 0
  %181 = vmatprep.subr.bf16.mxu0 0
  %182 = vmatpush1.bf16.msra.mxu0 0
  %183 = vmatprep.subr.bf16.mxu0 0
  %184 = vmatpush1.bf16.msra.mxu0 0
  %185 = vmatprep.subr.bf16.mxu0 0
  %186 = vmatpush1.bf16.msra.mxu0 0
  %187 = vmatprep.subr.bf16.mxu0 0
  %188 = vmatpush1.bf16.msra.mxu0 0
  %189 = vmatprep.subr.bf16.mxu0 0
  %190 = vmatpush1.bf16.msra.mxu0 0
  %191 = vmatprep.mubr.bf16.mxu0 0
  %192 = vmatmul.mubr.bf16.gmra.mrb[0].mxu0 %v97
  %v193 = vpop.f32.mrb[0].mxu0
  %v194 = vadd.f32 0.0, %v193
  %v195 = vpop.f32.mrb[0].mxu0
  %v196 = vpop.f32.mrb[0].mxu0
  %v197 = vadd.f32 0.0, %v196
  %v198 = vpop.f32.mrb[0].mxu0
  %199 = vdwg.mxu0
  %200 = vst.msk [vmem:[%s7] sm:$0xff] %vm140, %v194
  %201 = vst.msk [vmem:[%s7 + $0x8] sm:$0xff] %vm140, %v197
  %202 = vst.msk [vmem:[%s8] sm:$0xff] %vm35, %v31
  %203 = vst.msk [vmem:[%s8 + $0x8] sm:$0xff] %vm35, %v32
  // Predicated region
  $region26: #{forward.21} parent=0 // pred_check
    _
  $region27: #{forward.21} parent=0 // pred_check_branch
    %205 = sbr.rel (0) target = $region29
  $region28: #{forward.21} parent=0 // pred_region
    _
  $region29: #{forward.21} parent=0 // pred_fallthru
    _
  // Predicated region
  $region30: #{forward.21} parent=0 // pred_check
    _
  $region31: #{forward.21} parent=0 // pred_check_branch
    %207 = sbr.rel (0) target = $region33
  $region32: #{forward.21} parent=0 // pred_region
    _
  $region33: #{forward.21} parent=0 // pred_fallthru
    _
  // Predicated region
  $region34: #{forward.21} parent=0 // pred_check
    _
  $region35: #{forward.21} parent=0 // pred_check_branch
    %209 = sbr.rel (0) target = $region37
  $region36: #{forward.21} parent=0 // pred_region
    _
  $region37: #{forward.21} parent=0 // pred_fallthru
    _
  // Predicated region
  $region38: #{forward.21} parent=0 // pred_check
    _
  $region39: #{forward.21} parent=0 // pred_check_branch
    %211 = sbr.rel (0) target = $region41
  $region40: #{forward.21} parent=0 // pred_region
    _
  $region41: #{forward.21} parent=0 // pred_fallthru
    _
  // Predicated region
  $region42: #{forward.21} parent=0 // pred_check
    _
  $region43: #{forward.21} parent=0 // pred_check_branch
    %213 = sbr.rel (0) target = $region45
  $region44: #{forward.21} parent=0 // pred_region
    _
  $region45: #{forward.21} parent=0 // pred_fallthru
    _
  // Predicated region
  $region46: #{forward.21} parent=0 // pred_check
    _
  $region47: #{forward.21} parent=0 // pred_check_branch
    %215 = sbr.rel (0) target = $region49
  $region48: #{forward.21} parent=0 // pred_region
    _
  $region49: #{forward.21} parent=0 // pred_fallthru
    _

// kernel: forward.26
$region0: #{forward.26}
  #allocation0 [shape = 'u32[]', space=smem, size = 0x4, offset = 0x4, fixed_abs, tag = 'smem constant byte address 0x4 - core index']
  #allocation1 [shape = 'u32[144,128]{1,0:T(1,128)}', space=vmem, size = 0x12000, scoped, tag = 'internal scratch']
  %s0 = inlined_call_operand.vmem [shape: f32[2,32], index: 0, kind: input, shape index: {}]
  %s1 = inlined_call_operand.vmem [shape: bf16[32,128], index: 1, kind: input, shape index: {}]
  %s2 = inlined_call_operand.vmem [shape: bf16[32,128], index: 2, kind: input, shape index: {}]
  %s3 = inlined_call_operand.vmem [shape: bf16[128,32], index: 3, kind: input, shape index: {}]
  %s4 = inlined_call_operand.vmem [shape: f32[2,32], index: 4, kind: output, shape index: {}]
  %s5 = sld [smem:[#allocation0]]
  $region26: #{forward.26} parent=0
    _
  %s7 = ssub.s32 1, %s5
  %s8 = scalar_select 0, %s7, %s5
  // Predicated region
  $region2: #{forward.26} parent=0 // pred_check
    _
  $region3: #{forward.26} parent=0 // pred_check_branch
    %10 = sbr.rel (0) target = $region5
  $region4: #{forward.26} parent=0 // pred_region
    _
  $region5: #{forward.26} parent=0 // pred_fallthru
    _
  // Predicated region
  $region6: #{forward.26} parent=0 // pred_check
    _
  $region7: #{forward.26} parent=0 // pred_check_branch
    %12 = sbr.rel (0) target = $region9
  $region8: #{forward.26} parent=0 // pred_region
    _
  $region9: #{forward.26} parent=0 // pred_fallthru
    _
  // Predicated region
  $region10: #{forward.26} parent=0 // pred_check
    _
  $region11: #{forward.26} parent=0 // pred_check_branch
    %14 = sbr.rel (0) target = $region13
  $region12: #{forward.26} parent=0 // pred_region
    _
  $region13: #{forward.26} parent=0 // pred_fallthru
    _
  // Predicated region
  $region14: #{forward.26} parent=0 // pred_check
    _
  $region15: #{forward.26} parent=0 // pred_check_branch
    %16 = sbr.rel (0) target = $region17
  $region16: #{forward.26} parent=0 // pred_region
    _
  $region17: #{forward.26} parent=0 // pred_fallthru
    _
  %v18 = vld [vmem:[%s0] sm:$0x3]
  %v19 = vpack.c.bf16 %v18, %v18
  %v20 = vld [vmem:[%s1] sm:$0xf]
  %v21 = vld [vmem:[%s1 + $0x4] sm:$0xf]
  %v22 = vld [vmem:[%s1 + $0x8] sm:$0xf]
  %v23 = vld [vmem:[%s1 + $0xc] sm:$0xf]
  %v28 = vunpack.c.l.b16 %v20
  %v29 = vunpack.c.l.b16 %v21
  %v30 = vunpack.c.l.b16 %v22
  %v31 = vunpack.c.l.b16 %v23
  %v32 = vpack.c.b16 %v29, %v28
  %v33 = vpack.c.b16 %v31, %v30
  %vm36 = vcmask 261120
  %v38 = vsel %vm36, %v19, 0
  %40 = vmatprep.subr.bf16.mxu0 0
  %41 = vmatpush1.bf16.msra.mxu0 %v32
  %42 = vmatprep.subr.bf16.mxu0 0
  %43 = vmatpush1.bf16.msra.mxu0 %v33
  %44 = vmatprep.subr.bf16.mxu0 0
  %45 = vmatpush1.bf16.msra.mxu0 0
  %46 = vmatprep.subr.bf16.mxu0 0
  %47 = vmatpush1.bf16.msra.mxu0 0
  %48 = vmatprep.subr.bf16.mxu0 0
  %49 = vmatpush1.bf16.msra.mxu0 0
  %50 = vmatprep.subr.bf16.mxu0 0
  %51 = vmatpush1.bf16.msra.mxu0 0
  %52 = vmatprep.subr.bf16.mxu0 0
  %53 = vmatpush1.bf16.msra.mxu0 0
  %54 = vmatprep.subr.bf16.mxu0 0
  %55 = vmatpush1.bf16.msra.mxu0 0
  %56 = vmatprep.subr.bf16.mxu0 0
  %57 = vmatpush1.bf16.msra.mxu0 0
  %58 = vmatprep.subr.bf16.mxu0 0
  %59 = vmatpush1.bf16.msra.mxu0 0
  %60 = vmatprep.subr.bf16.mxu0 0
  %61 = vmatpush1.bf16.msra.mxu0 0
  %62 = vmatprep.subr.bf16.mxu0 0
  %63 = vmatpush1.bf16.msra.mxu0 0
  %64 = vmatprep.subr.bf16.mxu0 0
  %65 = vmatpush1.bf16.msra.mxu0 0
  %66 = vmatprep.subr.bf16.mxu0 0
  %67 = vmatpush1.bf16.msra.mxu0 0
  %68 = vmatprep.subr.bf16.mxu0 0
  %69 = vmatpush1.bf16.msra.mxu0 0
  %70 = vmatprep.subr.bf16.mxu0 0
  %71 = vmatpush1.bf16.msra.mxu0 0
  %72 = vmatprep.mubr.bf16.mxu0 0
  %73 = vmatmul.mubr.bf16.gmra.mrb[0].mxu0 %v38
  %v74 = vpop.f32.mrb[0].mxu0
  %v75 = vadd.f32 0.0, %v74
  %v76 = vpop.f32.mrb[0].mxu0
  %v77 = vpop.f32.mrb[0].mxu0
  %v78 = vpop.f32.mrb[0].mxu0
  %79 = vdwg.mxu0
  %v80 = vld [vmem:[%s2] sm:$0xf]
  %v81 = vld [vmem:[%s2 + $0x4] sm:$0xf]
  %v82 = vld [vmem:[%s2 + $0x8] sm:$0xf]
  %v83 = vld [vmem:[%s2 + $0xc] sm:$0xf]
  %v88 = vunpack.c.l.b16 %v80
  %v89 = vunpack.c.l.b16 %v81
  %v90 = vunpack.c.l.b16 %v82
  %v91 = vunpack.c.l.b16 %v83
  %v92 = vpack.c.b16 %v89, %v88
  %v93 = vpack.c.b16 %v91, %v90
  %96 = vmatprep.subr.bf16.mxu0 0
  %97 = vmatpush1.bf16.msra.mxu0 %v92
  %98 = vmatprep.subr.bf16.mxu0 0
  %99 = vmatpush1.bf16.msra.mxu0 %v93
  %100 = vmatprep.subr.bf16.mxu0 0
  %101 = vmatpush1.bf16.msra.mxu0 0
  %102 = vmatprep.subr.bf16.mxu0 0
  %103 = vmatpush1.bf16.msra.mxu0 0
  %104 = vmatprep.subr.bf16.mxu0 0
  %105 = vmatpush1.bf16.msra.mxu0 0
  %106 = vmatprep.subr.bf16.mxu0 0
  %107 = vmatpush1.bf16.msra.mxu0 0
  %108 = vmatprep.subr.bf16.mxu0 0
  %109 = vmatpush1.bf16.msra.mxu0 0
  %110 = vmatprep.subr.bf16.mxu0 0
  %111 = vmatpush1.bf16.msra.mxu0 0
  %112 = vmatprep.subr.bf16.mxu0 0
  %113 = vmatpush1.bf16.msra.mxu0 0
  %114 = vmatprep.subr.bf16.mxu0 0
  %115 = vmatpush1.bf16.msra.mxu0 0
  %116 = vmatprep.subr.bf16.mxu0 0
  %117 = vmatpush1.bf16.msra.mxu0 0
  %118 = vmatprep.subr.bf16.mxu0 0
  %119 = vmatpush1.bf16.msra.mxu0 0
  %120 = vmatprep.subr.bf16.mxu0 0
  %121 = vmatpush1.bf16.msra.mxu0 0
  %122 = vmatprep.subr.bf16.mxu0 0
  %123 = vmatpush1.bf16.msra.mxu0 0
  %124 = vmatprep.subr.bf16.mxu0 0
  %125 = vmatpush1.bf16.msra.mxu0 0
  %126 = vmatprep.subr.bf16.mxu0 0
  %127 = vmatpush1.bf16.msra.mxu0 0
  %128 = vmatprep.mubr.bf16.mxu0 0
  %129 = vmatmul.mubr.bf16.gmra.mrb[0].mxu0 %v38
  %v130 = vpop.f32.mrb[0].mxu0
  %v131 = vadd.f32 0.0, %v130
  %v132 = vpop.f32.mrb[0].mxu0
  %v133 = vpop.f32.mrb[0].mxu0
  %v134 = vpop.f32.mrb[0].mxu0
  %135 = vdwg.mxu0
  %v136 = vxor.u32 %v131, 2147483648
  %v137 = vmul.f32 %v136, 1.442695
  %v138 = vpow.pop %v137
  %v139 = vadd.f32 %v138, 1.0
  %v140 = vrcp.pop %v139
  %v141 = vmul.f32 1.0, %v140
  %v142 = vmul.f32 %v131, %v141
  %v143 = vmul.f32 %v75, %v142
  %v144 = vpack.c.bf16 %v143, %v143
  %v145 = vld [vmem:[%s3] sm:$0xf]
  %v146 = vld [vmem:[%s3 + $0x4] sm:$0xf]
  %v147 = vld [vmem:[%s3 + $0x8] sm:$0xf]
  %v148 = vld [vmem:[%s3 + $0xc] sm:$0xf]
  %v149 = vld [vmem:[%s3 + $0x10] sm:$0xf]
  %v150 = vld [vmem:[%s3 + $0x14] sm:$0xf]
  %v151 = vld [vmem:[%s3 + $0x18] sm:$0xf]
  %v152 = vld [vmem:[%s3 + $0x1c] sm:$0xf]
  %v153 = vld [vmem:[%s3 + $0x20] sm:$0xf]
  %v154 = vld [vmem:[%s3 + $0x24] sm:$0xf]
  %v155 = vld [vmem:[%s3 + $0x28] sm:$0xf]
  %v156 = vld [vmem:[%s3 + $0x2c] sm:$0xf]
  %v157 = vld [vmem:[%s3 + $0x30] sm:$0xf]
  %v158 = vld [vmem:[%s3 + $0x34] sm:$0xf]
  %v159 = vld [vmem:[%s3 + $0x38] sm:$0xf]
  %v160 = vld [vmem:[%s3 + $0x3c] sm:$0xf]
  %v177 = vunpack.c.l.b16 %v145
  %v178 = vunpack.c.l.b16 %v146
  %v179 = vunpack.c.l.b16 %v147
  %v180 = vunpack.c.l.b16 %v148
  %v181 = vunpack.c.l.b16 %v149
  %v182 = vunpack.c.l.b16 %v150
  %v183 = vunpack.c.l.b16 %v151
  %v184 = vunpack.c.l.b16 %v152
  %v185 = vunpack.c.l.b16 %v153
  %v186 = vunpack.c.l.b16 %v154
  %v187 = vunpack.c.l.b16 %v155
  %v188 = vunpack.c.l.b16 %v156
  %v189 = vunpack.c.l.b16 %v157
  %v190 = vunpack.c.l.b16 %v158
  %v191 = vunpack.c.l.b16 %v159
  %v192 = vunpack.c.l.b16 %v160
  %v193 = vpack.c.b16 %v178, %v177
  %v194 = vpack.c.b16 %v180, %v179
  %v195 = vpack.c.b16 %v182, %v181
  %v196 = vpack.c.b16 %v184, %v183
  %v197 = vpack.c.b16 %v186, %v185
  %v198 = vpack.c.b16 %v188, %v187
  %v199 = vpack.c.b16 %v190, %v189
  %v200 = vpack.c.b16 %v192, %v191
  %209 = vmatprep.subr.bf16.mxu0 0
  %210 = vmatpush1.bf16.msra.mxu0 %v193
  %211 = vmatprep.subr.bf16.mxu0 0
  %212 = vmatpush1.bf16.msra.mxu0 %v194
  %213 = vmatprep.subr.bf16.mxu0 0
  %214 = vmatpush1.bf16.msra.mxu0 %v195
  %215 = vmatprep.subr.bf16.mxu0 0
  %216 = vmatpush1.bf16.msra.mxu0 %v196
  %217 = vmatprep.subr.bf16.mxu0 0
  %218 = vmatpush1.bf16.msra.mxu0 %v197
  %219 = vmatprep.subr.bf16.mxu0 0
  %220 = vmatpush1.bf16.msra.mxu0 %v198
  %221 = vmatprep.subr.bf16.mxu0 0
  %222 = vmatpush1.bf16.msra.mxu0 %v199
  %223 = vmatprep.subr.bf16.mxu0 0
  %224 = vmatpush1.bf16.msra.mxu0 %v200
  %225 = vmatprep.subr.bf16.mxu0 0
  %226 = vmatpush1.bf16.msra.mxu0 0
  %227 = vmatprep.subr.bf16.mxu0 0
  %228 = vmatpush1.bf16.msra.mxu0 0
  %229 = vmatprep.subr.bf16.mxu0 0
  %230 = vmatpush1.bf16.msra.mxu0 0
  %231 = vmatprep.subr.bf16.mxu0 0
  %232 = vmatpush1.bf16.msra.mxu0 0
  %233 = vmatprep.subr.bf16.mxu0 0
  %234 = vmatpush1.bf16.msra.mxu0 0
  %235 = vmatprep.subr.bf16.mxu0 0
  %236 = vmatpush1.bf16.msra.mxu0 0
  %237 = vmatprep.subr.bf16.mxu0 0
  %238 = vmatpush1.bf16.msra.mxu0 0
  %239 = vmatprep.subr.bf16.mxu0 0
  %240 = vmatpush1.bf16.msra.mxu0 0
  %241 = vmatprep.mubr.bf16.mxu0 0
  %242 = vmatmul.mubr.bf16.gmra.mrb[0].mxu0 %v144
  %v243 = vpop.f32.mrb[0].mxu0
  %v244 = vadd.f32 0.0, %v243
  %v245 = vpop.f32.mrb[0].mxu0
  %v246 = vpop.f32.mrb[0].mxu0
  %v247 = vpop.f32.mrb[0].mxu0
  %248 = vdwg.mxu0
  %vm249 = vcmask 254976
  %250 = vst.msk [vmem:[%s4] sm:$0x3] %vm249, %v244
  // Predicated region
  $region18: #{forward.26} parent=0 // pred_check
    _
  $region19: #{forward.26} parent=0 // pred_check_branch
    %252 = sbr.rel (0) target = $region21
  $region20: #{forward.26} parent=0 // pred_region
    _
  $region21: #{forward.26} parent=0 // pred_fallthru
    _
  // Predicated region
  $region22: #{forward.26} parent=0 // pred_check
    _
  $region23: #{forward.26} parent=0 // pred_check_branch
    %254 = sbr.rel (0) target = $region25
  $region24: #{forward.26} parent=0 // pred_region
    _
  $region25: #{forward.26} parent=0 // pred_fallthru
    _

// kernel: forward.25
$region0: #{forward.25}
  #allocation0 [shape = 'u32[]', space=smem, size = 0x4, offset = 0x4, fixed_abs, tag = 'smem constant byte address 0x4 - core index']
  #allocation1 [shape = 'u32[144,128]{1,0:T(1,128)}', space=vmem, size = 0x12000, scoped, tag = 'internal scratch']
  %s0 = inlined_call_operand.vmem [shape: f32[2,64], index: 0, kind: input, shape index: {}]
  %s1 = inlined_call_operand.vmem [shape: f32[2,32], index: 1, kind: input, shape index: {}]
  %s2 = inlined_call_operand.vmem [shape: bf16[64,32], index: 2, kind: input, shape index: {}]
  %s3 = inlined_call_operand.vmem [shape: f32[1,32], index: 3, kind: input, shape index: {}]
  %s4 = inlined_call_operand.vmem [shape: f32[1,32], index: 4, kind: input, shape index: {}]
  %s5 = inlined_call_operand.vmem [shape: f32[2,32], index: 5, kind: output, shape index: {0}]
  %s6 = inlined_call_operand.hbm [shape: f32[2,32], index: 6, kind: output, shape index: {1}]
  %7 = xla_tuple %s5, %s6
  %s8 = sld [smem:[#allocation0]]
  $region38: #{forward.25} parent=0
    _
  %s10 = ssub.s32 1, %s8
  %s11 = scalar_select 0, %s10, %s8
  $region1: #{forward.25} parent=0
    #allocation2 [shape = 'u8[1024]{0}', space=vmem, size = 0x400, scoped, tag = 'output window, operand 1, single buffered']
    #allocation3 [shape = 's32[1]{0}', space=sflag, size = 0x4, scoped, tag = 'scoped memory for forward.25']
    %12 = vsyncpa [#allocation3], 0
    // Predicated region
    $region2: #{forward.25} parent=1 // pred_check
      _
    $region3: #{forward.25} parent=1 // pred_check_branch
      %14 = sbr.rel (0) target = $region5
    $region4: #{forward.25} parent=1 // pred_region
      _
    $region5: #{forward.25} parent=1 // pred_fallthru
      _
    // Predicated region
    $region6: #{forward.25} parent=1 // pred_check
      _
    $region7: #{forward.25} parent=1 // pred_check_branch
      %16 = sbr.rel (0) target = $region9
    $region8: #{forward.25} parent=1 // pred_region
      _
    $region9: #{forward.25} parent=1 // pred_fallthru
      _
    // Predicated region
    $region10: #{forward.25} parent=1 // pred_check
      _
    $region11: #{forward.25} parent=1 // pred_check_branch
      %18 = sbr.rel (0) target = $region13
    $region12: #{forward.25} parent=1 // pred_region
      _
    $region13: #{forward.25} parent=1 // pred_fallthru
      _
    // Predicated region
    $region14: #{forward.25} parent=1 // pred_check
      _
    $region15: #{forward.25} parent=1 // pred_check_branch
      %20 = sbr.rel (0) target = $region17
    $region16: #{forward.25} parent=1 // pred_region
      _
    $region17: #{forward.25} parent=1 // pred_fallthru
      _
    // Predicated region
    $region18: #{forward.25} parent=1 // pred_check
      _
    $region19: #{forward.25} parent=1 // pred_check_branch
      %22 = sbr.rel (0) target = $region21
    $region20: #{forward.25} parent=1 // pred_region
      _
    $region21: #{forward.25} parent=1 // pred_fallthru
      _
    %v24 = vld [vmem:[%s0] sm:$0x3]
    %v25 = vpack.c.bf16 %v24, %v24
    %v26 = vld [vmem:[%s2] sm:$0xf]
    %v27 = vld [vmem:[%s2 + $0x4] sm:$0xf]
    %v28 = vld [vmem:[%s2 + $0x8] sm:$0xf]
    %v29 = vld [vmem:[%s2 + $0xc] sm:$0xf]
    %v30 = vld [vmem:[%s2 + $0x10] sm:$0xf]
    %v31 = vld [vmem:[%s2 + $0x14] sm:$0xf]
    %v32 = vld [vmem:[%s2 + $0x18] sm:$0xf]
    %v33 = vld [vmem:[%s2 + $0x1c] sm:$0xf]
    %v34 = vld [vmem:[%s1] sm:$0x3]
    %v43 = vunpack.c.l.b16 %v26
    %v44 = vunpack.c.l.b16 %v27
    %v45 = vunpack.c.l.b16 %v28
    %v46 = vunpack.c.l.b16 %v29
    %v47 = vunpack.c.l.b16 %v30
    %v48 = vunpack.c.l.b16 %v31
    %v49 = vunpack.c.l.b16 %v32
    %v50 = vunpack.c.l.b16 %v33
    %v51 = vpack.c.b16 %v44, %v43
    %v52 = vpack.c.b16 %v46, %v45
    %v53 = vpack.c.b16 %v48, %v47
    %v54 = vpack.c.b16 %v50, %v49
    %vm59 = vcmask 523264
    %v61 = vsel %vm59, %v25, 0
    %63 = vmatprep.subr.bf16.mxu0 0
    %64 = vmatpush1.bf16.msra.mxu0 %v51
    %65 = vmatprep.subr.bf16.mxu0 0
    %66 = vmatpush1.bf16.msra.mxu0 %v52
    %67 = vmatprep.subr.bf16.mxu0 0
    %68 = vmatpush1.bf16.msra.mxu0 %v53
    %69 = vmatprep.subr.bf16.mxu0 0
    %70 = vmatpush1.bf16.msra.mxu0 %v54
    %71 = vmatprep.subr.bf16.mxu0 0
    %72 = vmatpush1.bf16.msra.mxu0 0
    %73 = vmatprep.subr.bf16.mxu0 0
    %74 = vmatpush1.bf16.msra.mxu0 0
    %75 = vmatprep.subr.bf16.mxu0 0
    %76 = vmatpush1.bf16.msra.mxu0 0
    %77 = vmatprep.subr.bf16.mxu0 0
    %78 = vmatpush1.bf16.msra.mxu0 0
    %79 = vmatprep.subr.bf16.mxu0 0
    %80 = vmatpush1.bf16.msra.mxu0 0
    %81 = vmatprep.subr.bf16.mxu0 0
    %82 = vmatpush1.bf16.msra.mxu0 0
    %83 = vmatprep.subr.bf16.mxu0 0
    %84 = vmatpush1.bf16.msra.mxu0 0
    %85 = vmatprep.subr.bf16.mxu0 0
    %86 = vmatpush1.bf16.msra.mxu0 0
    %87 = vmatprep.subr.bf16.mxu0 0
    %88 = vmatpush1.bf16.msra.mxu0 0
    %89 = vmatprep.subr.bf16.mxu0 0
    %90 = vmatpush1.bf16.msra.mxu0 0
    %91 = vmatprep.subr.bf16.mxu0 0
    %92 = vmatpush1.bf16.msra.mxu0 0
    %93 = vmatprep.subr.bf16.mxu0 0
    %94 = vmatpush1.bf16.msra.mxu0 0
    %95 = vmatprep.mubr.bf16.mxu0 0
    %96 = vmatmul.mubr.bf16.gmra.mrb[0].mxu0 %v61
    %v97 = vpop.f32.mrb[0].mxu0
    %v98 = vadd.f32 %v34, %v97
    %v99 = vpop.f32.mrb[0].mxu0
    %v100 = vpop.f32.mrb[0].mxu0
    %v101 = vpop.f32.mrb[0].mxu0
    %102 = vdwg.mxu0
    %v103 = vld [vmem:[%s3] sm:$0x1]
    %v104 = vld [vmem:[%s4] sm:$0x1]
    %vm105 = vcmask 254976
    %v106 = vsel %vm105, %v98, 0.0
    %107 = vadd.xlane.f32.xlu0 %v106
    %v108 = vpop.xlane.xlu0 %107
    %v109 = vrcp.pop 32.0
    %v110 = vmul.f32 %v108, %v109
    %v111 = vsub.f32 %v98, %v110
    %v112 = vmul.f32 %v111, %v111
    %v113 = vsel %vm105, %v112, 0.0
    %114 = vadd.xlane.f32.xlu0 %v113
    %v115 = vpop.xlane.xlu0 %114
    %v116 = vmul.f32 %v115, %v109
    %v117 = vadd.f32 %v116, 1e-05
    %v118 = vrsqrt.pop %v117
    %v119 = vmul.f32 %v111, %v118
    %v121 = vlaneseq
    %v122 = vshrl.u32 %v121, 7
    %v123 = vsub.s32 0, %v122
    %v124 = vrot.slane %v103, %v123
    %v126 = vmul.f32 %v119, %v124
    %v128 = vlaneseq
    %v129 = vshrl.u32 %v128, 7
    %v130 = vsub.s32 0, %v129
    %v131 = vrot.slane %v104, %v130
    %v133 = vadd.f32 %v126, %v131
    %134 = vst.msk [vmem:[%s5] sm:$0x3] %vm105, %v133
    %135 = vst.msk [vmem:[#allocation2] sm:$0x3] %vm105, %v98
    // Predicated region
    $region22: #{forward.25} parent=1 // pred_check
      _
    $region23: #{forward.25} parent=1 // pred_check_branch
      %137 = sbr.rel (0) target = $region25
    $region24: #{forward.25} parent=1 // pred_region
      _
    $region25: #{forward.25} parent=1 // pred_fallthru
      _
    // Predicated region
    $region26: #{forward.25} parent=1 // pred_check
      _
    $region27: #{forward.25} parent=1 // pred_check_branch
      %139 = sbr.rel (0) target = $region29
    $region28: #{forward.25} parent=1 // pred_region
      %s141 = ssub.s32 32, 32
      %142 = vsyncadd [#allocation3], %s141
      %s144 = sshll.u32 [#allocation2], 4
      %s145 = int_to_ptr.vmem [resolvable:$true] %s144
      %147 = dma.vmem_to_hbm [thread:$0]  %s145, 32, %s6, [#allocation3]
    $region29: #{forward.25} parent=1 // pred_fallthru
      _
    // Predicated region
    $region30: #{forward.25} parent=1 // pred_check
      _
    $region31: #{forward.25} parent=1 // pred_check_branch
      %149 = sbr.rel (0) target = $region33
    $region32: #{forward.25} parent=1 // pred_region
      _
    $region33: #{forward.25} parent=1 // pred_fallthru
      _
    // Predicated region
    $region34: #{forward.25} parent=1 // pred_check
      _
    $region35: #{forward.25} parent=1 // pred_check_branch
      %151 = sbr.rel (0) target = $region37
    $region36: #{forward.25} parent=1 // pred_region
      %152 = dma.done [#allocation3], 32
    $region37: #{forward.25} parent=1 // pred_fallthru
      _
    %153 = vsyncpa [#allocation3], 1

// kernel: forward.27
$region0: #{forward.27}
  #allocation0 [shape = 'u32[]', space=smem, size = 0x4, offset = 0x4, fixed_abs, tag = 'smem constant byte address 0x4 - core index']
  #allocation1 [shape = 'u32[144,128]{1,0:T(1,128)}', space=vmem, size = 0x12000, scoped, tag = 'internal scratch']
  #allocation2 [shape = 'f32[2,1]{1,0:T(2,128)}', space=vmem, size = 0x400, scoped, tag = 'scratch operand']
  #allocation3 [shape = 'f32[1,1]{1,0:T(1,128)S(1)}', space=vmem, size = 0x200, scoped, tag = 'scoped memory for forward.27']
  %s0 = inlined_call_operand.vmem [shape: f32[2,32], index: 0, kind: input, shape index: {}]
  %s1 = inlined_call_operand.vmem [shape: bf16[32,1], index: 1, kind: input, shape index: {}]
  %s2 = inlined_call_operand.<no memory space> [shape: f32[1,1], index: 2, kind: input, shape index: {}]
  %s3 = inlined_call_operand.vmem [shape: f32[2,1], index: 3, kind: output, shape index: {}]
  %s4 = sld [smem:[#allocation0]]
  $region30: #{forward.27} parent=0
    _
  %s6 = ssub.s32 1, %s4
  %s7 = scalar_select 0, %s6, %s4
  %v8 = vstv %s2
  %9 = vst [vmem:[#allocation3] sm:$0x1] %v8
  // Predicated region
  $region2: #{forward.27} parent=0 // pred_check
    _
  $region3: #{forward.27} parent=0 // pred_check_branch
    %11 = sbr.rel (0) target = $region5
  $region4: #{forward.27} parent=0 // pred_region
    _
  $region5: #{forward.27} parent=0 // pred_fallthru
    _
  // Predicated region
  $region6: #{forward.27} parent=0 // pred_check
    _
  $region7: #{forward.27} parent=0 // pred_check_branch
    %13 = sbr.rel (0) target = $region9
  $region8: #{forward.27} parent=0 // pred_region
    _
  $region9: #{forward.27} parent=0 // pred_fallthru
    _
  // Predicated region
  $region10: #{forward.27} parent=0 // pred_check
    _
  $region11: #{forward.27} parent=0 // pred_check_branch
    %15 = sbr.rel (0) target = $region13
  $region12: #{forward.27} parent=0 // pred_region
    _
  $region13: #{forward.27} parent=0 // pred_fallthru
    _
  %p17 = scmp.eq.s32.totalorder 0, 0
  // Predicated region
  $region14: #{forward.27} parent=0 // pred_check
    %p18 = pneg %p17
  $region15: #{forward.27} parent=0 // pred_check_branch
    %20 = sbr.rel (%p18) target = $region17
  $region16: #{forward.27} parent=0 // pred_region
    %vm21 = vcmask 1024
    %22 = vst.msk [vmem:[#allocation2] sm:$0x3] %vm21, 0.0
  $region17: #{forward.27} parent=0 // pred_fallthru
    _
  %v23 = vld [vmem:[#allocation2] sm:$0x3]
  %v24 = vld [vmem:[%s0] sm:$0x3]
  %v25 = vpack.c.bf16 %v24, %v24
  %v26 = vld [vmem:[%s1] sm:$0xf]
  %v27 = vld [vmem:[%s1 + $0x4] sm:$0xf]
  %v28 = vld [vmem:[%s1 + $0x8] sm:$0xf]
  %v29 = vld [vmem:[%s1 + $0xc] sm:$0xf]
  %v34 = vunpack.c.l.b16 %v26
  %v35 = vunpack.c.l.b16 %v27
  %v36 = vunpack.c.l.b16 %v28
  %v37 = vunpack.c.l.b16 %v29
  %v38 = vpack.c.b16 %v35, %v34
  %v39 = vpack.c.b16 %v37, %v36
  %vm42 = vcmask 261120
  %v44 = vsel %vm42, %v25, 0
  %46 = vmatprep.subr.bf16.mxu0 0
  %47 = vmatpush1.bf16.msra.mxu0 %v38
  %48 = vmatprep.subr.bf16.mxu0 0
  %49 = vmatpush1.bf16.msra.mxu0 %v39
  %50 = vmatprep.subr.bf16.mxu0 0
  %51 = vmatpush1.bf16.msra.mxu0 0
  %52 = vmatprep.subr.bf16.mxu0 0
  %53 = vmatpush1.bf16.msra.mxu0 0
  %54 = vmatprep.subr.bf16.mxu0 0
  %55 = vmatpush1.bf16.msra.mxu0 0
  %56 = vmatprep.subr.bf16.mxu0 0
  %57 = vmatpush1.bf16.msra.mxu0 0
  %58 = vmatprep.subr.bf16.mxu0 0
  %59 = vmatpush1.bf16.msra.mxu0 0
  %60 = vmatprep.subr.bf16.mxu0 0
  %61 = vmatpush1.bf16.msra.mxu0 0
  %62 = vmatprep.subr.bf16.mxu0 0
  %63 = vmatpush1.bf16.msra.mxu0 0
  %64 = vmatprep.subr.bf16.mxu0 0
  %65 = vmatpush1.bf16.msra.mxu0 0
  %66 = vmatprep.subr.bf16.mxu0 0
  %67 = vmatpush1.bf16.msra.mxu0 0
  %68 = vmatprep.subr.bf16.mxu0 0
  %69 = vmatpush1.bf16.msra.mxu0 0
  %70 = vmatprep.subr.bf16.mxu0 0
  %71 = vmatpush1.bf16.msra.mxu0 0
  %72 = vmatprep.subr.bf16.mxu0 0
  %73 = vmatpush1.bf16.msra.mxu0 0
  %74 = vmatprep.subr.bf16.mxu0 0
  %75 = vmatpush1.bf16.msra.mxu0 0
  %76 = vmatprep.subr.bf16.mxu0 0
  %77 = vmatpush1.bf16.msra.mxu0 0
  %78 = vmatprep.mubr.bf16.mxu0 0
  %79 = vmatmul.mubr.bf16.gmra.mrb[0].mxu0 %v44
  %v80 = vpop.f32.mrb[0].mxu0
  %v81 = vadd.f32 0.0, %v80
  %v82 = vpop.f32.mrb[0].mxu0
  %v83 = vpop.f32.mrb[0].mxu0
  %v84 = vpop.f32.mrb[0].mxu0
  %85 = vdwg.mxu0
  %v86 = vadd.f32 %v23, %v81
  %vm87 = vcmask 1024
  %88 = vst.msk [vmem:[#allocation2] sm:$0x3] %vm87, %v86
  // Predicated region
  $region18: #{forward.27} parent=0 // pred_check
    %p89 = pneg %p17
  $region19: #{forward.27} parent=0 // pred_check_branch
    %91 = sbr.rel (%p89) target = $region21
  $region20: #{forward.27} parent=0 // pred_region
    %v92 = vld [vmem:[#allocation2] sm:$0x3]
    %v93 = vld [vmem:[#allocation3] sm:$0x1]
    %v95 = vlaneseq
    %v96 = vshrl.u32 %v95, 7
    %v97 = vsub.s32 0, %v96
    %v98 = vrot.slane %v93, %v97
    %v100 = vadd.f32 %v92, %v98
    %101 = vst.msk [vmem:[%s3] sm:$0x3] %vm87, %v100
  $region21: #{forward.27} parent=0 // pred_fallthru
    _
  // Predicated region
  $region22: #{forward.27} parent=0 // pred_check
    _
  $region23: #{forward.27} parent=0 // pred_check_branch
    %103 = sbr.rel (0) target = $region25
  $region24: #{forward.27} parent=0 // pred_region
    _
  $region25: #{forward.27} parent=0 // pred_fallthru
    _
  // Predicated region
  $region26: #{forward.27} parent=0 // pred_check
    _
  $region27: #{forward.27} parent=0 // pred_check_branch
    %105 = sbr.rel (0) target = $region29
  $region28: #{forward.27} parent=0 // pred_region
    _
  $region29: #{forward.27} parent=0 // pred_fallthru
    _

</llo_original>
